<compile_context>
chip_gen: v7x
topology: tpu7x:2x2x1
jax: 0.10.0
libtpu: 0.0.40
codegen_flags: <defaults>
</compile_context>

<pallas_src>
import functools

import jax
import jax.numpy as jnp
from jax import lax
from jax.experimental import pallas as pl
from jax.experimental.pallas import tpu as pltpu

_H = 64            # GRU input/hidden size (fixed by the module)
_GW = 256          # packed gate lanes: [ r 0:64 | z 64:128 | n 128:192 | pad 192:256 ]

# Approximate resident weight/bias bytes (for VMEM budgeting; double-buffered).
_W_BYTES = (
    2 * _H * _GW * 2                              # wi_cat, wh_cat (bf16)
    + (_H * 256 + 256 * 128 + 128 * _H) * 2       # w1..w3 (bf16)
    + (2 * _GW + 256 + 128 + _H + _H + 1) * 4     # biases + w4 row + b4 (f32)
)


# -----------------------------------------------------------------------------
# Kernel: one batch tile.  Hoisted input projection, fused per-step hidden-gate
# matmul, shared r|z sigmoid, MLP head, sigmoid, lane-reduction output.
# -----------------------------------------------------------------------------
def _discriminator_kernel(
    x_ref,                      # (TB, T, 64)  batch-major input block (f32)
    wi_ref, wh_ref,             # (64, 256) bf16 packed input->gate / hidden->gate
    bx_ref,                     # (1, 256) f32  (bir+bhr | biz+bhz | bin | 0)
    bhn_ref,                    # (1, 256) f32  bhn in the n block, zeros elsewhere
    w1_ref, b1_ref,             # (64,256) bf16, (1,256) f32
    w2_ref, b2_ref,             # (256,128) bf16, (1,128) f32
    w3_ref, b3_ref,             # (128,64) bf16, (1,64) f32
    w4_ref, b4_ref,             # (1,64) f32, (1,1) f32
    out_ref,                    # (TB, 1) f32
    gx_scr,                     # VMEM scratch (TB, T, 256) f32
):
    TB = out_ref.shape[0]
    T = x_ref.shape[1]
    H = x_ref.shape[2]
    H2 = 2 * H

    # 1) Hoisted input->gate projection for ALL timesteps: one big
    #    (TB*T, 64) @ (64, 256) bf16 MXU matmul, f32 accumulation, biases folded.
    x2d = x_ref[...].reshape(TB * T, H).astype(jnp.bfloat16)
    gall = (jnp.dot(x2d, wi_ref[...], preferred_element_type=jnp.float32)
            + bx_ref[...])
    gx_scr[...] = gall.reshape(TB, T, _GW)

    wh = wh_ref[...]            # loop invariants hoisted out of the recurrence
    bhn = bhn_ref[...]

    # 2) GRU recurrence: one fused (TB,64)@(64,256) bf16 matmul per step.
    #    r|z are activated with a single 128-lane sigmoid; z comes out of the
    #    packed vreg via an XLU roll (lanes 64:128 -> 0:64).
    def gru_step(t, h):
        gx = gx_scr[:, t, :]                                           # (TB, 256)
        gh = (jnp.dot(h.astype(jnp.bfloat16), wh,
                      preferred_element_type=jnp.float32) + bhn)       # (TB, 256)
        rz = jax.nn.sigmoid(gx[:, :H2] + gh[:, :H2])                   # (TB, 128)
        r = rz[:, :H]
        z = pltpu.roll(rz, shift=H, axis=1)[:, :H]
        n = jnp.tanh(gx[:, H2:H2 + H] + r * gh[:, H2:H2 + H])
        return (1.0 - z) * n + z * h

    h = jnp.zeros((TB, H), jnp.float32)
    if T <= 32 and TB <= 64:
        # Small tiles: static unroll (static slices, tiny live ranges).
        for t in range(T):
            h = gru_step(t, h)
    else:
        # Larger tiles: keep live ranges bounded, modest unroll for LLO visibility.
        h = lax.fori_loop(0, T, gru_step, h, unroll=2)

    # 3) MLP head: bf16 MXU matmuls with f32 accumulation / elementwise.
    def leaky(v):
        return jnp.where(v > 0, v, 0.01 * v)     # PyTorch default negative_slope

    y = leaky(jnp.dot(h.astype(jnp.bfloat16), w1_ref[...],
                      preferred_element_type=jnp.float32) + b1_ref[...])
    y = leaky(jnp.dot(y.astype(jnp.bfloat16), w2_ref[...],
                      preferred_element_type=jnp.float32) + b2_ref[...])
    y = leaky(jnp.dot(y.astype(jnp.bfloat16), w3_ref[...],
                      preferred_element_type=jnp.float32) + b3_ref[...])
    # Final Linear(64,1): VPU multiply + lane reduction instead of an N=1 MXU matmul.
    logit = jnp.sum(y * w4_ref[...], axis=-1, keepdims=True) + b4_ref[...]
    out_ref[...] = jax.nn.sigmoid(logit).astype(out_ref.dtype)


# -----------------------------------------------------------------------------
# Generation-aware VMEM budgeting and batch-tile sizing.
# -----------------------------------------------------------------------------
@functools.lru_cache(maxsize=None)
def _tpu_generation():
    """Returns (vmem_capacity_bytes, tensorcores_per_chip) with safe fallbacks."""
    vmem_cap = 128 * 2**20
    try:
        info = pltpu.get_tpu_info()
        vmem_cap = int(getattr(info, "vmem_capacity_bytes", vmem_cap))
    except Exception:
        pass
    kind = ""
    try:
        kind = jax.devices()[0].device_kind.lower()
    except Exception:
        pass
    # v7x-class parts: 64 MiB VMEM per TensorCore, 2 TensorCores per chip.
    n_tc = 2 if ("v7" in kind or vmem_cap <= 96 * 2**20) else 1
    return vmem_cap, n_tc


def _budgets(vmem_cap):
    if vmem_cap <= 96 * 2**20:                  # v7x-class (64 MiB per core)
        return 24 * 2**20, 40 * 2**20
    return 56 * 2**20, 96 * 2**20               # v5e / v6e (128 MiB per core)


def _round_up8(n):
    return -(-n // 8) * 8


def _tile_bytes(T, tb):
    x_blk = 2 * tb * T * _H * 4          # double-buffered f32 x block
    x_bf = tb * T * _H * 2               # in-kernel bf16 copy feeding the MXU
    gx = tb * T * _GW * 4                # gate scratch (f32)
    gtmp = tb * T * _GW * 2              # projection temporaries headroom
    temps = 12 * tb * _GW * 4            # per-step gh/rz/n/h temporaries + slack
    outb = 2 * tb * 4                    # double-buffered output block
    return x_blk + x_bf + gx + gtmp + temps + outb + 2 * _W_BYTES


def _choose_batch_tile(B, T, budget, n_tc):
    cap = _round_up8(B)
    if n_tc >= 2 and B >= 16:
        # Guarantee >=2 batch tiles so the "parallel" grid axis can shard across
        # both TensorCores on v7x-class chips.
        cap = min(cap, _round_up8(-(-B // n_tc)))
    limit = min(cap, 512)                # M>512 buys no extra MXU fill
    cands = [512, 384, 256, 192, 128, 96, 64, 48, 32, 24, 16, 8, limit]
    cands = sorted({c for c in cands if 0 < c <= limit}, reverse=True)
    for tb in cands:
        if _tile_bytes(T, tb) <= budget:
            return tb
    # TODO(synk): extremely long sequences would need T-chunked gate precompute.
    return 8


# -----------------------------------------------------------------------------
# Parameter packing: gates concatenated as [r | z | n | pad] over 256 lanes,
# always-summed biases pre-combined, MXU weights cast to bf16.
# -----------------------------------------------------------------------------
def _pack_gru_params(p):
    pad_w = jnp.zeros((_H, _GW - 3 * _H), jnp.float32)
    pad_b = jnp.zeros((1, _GW - 3 * _H), jnp.float32)
    zeros_h = jnp.zeros((1, _H), jnp.float32)
    wi = jnp.concatenate([p["wir"], p["wiz"], p["win"], pad_w], axis=1)
    wh = jnp.concatenate([p["whr"], p["whz"], p["whn"], pad_w], axis=1)
    bx = jnp.concatenate([p["bir"] + p["bhr"], p["biz"] + p["bhz"],
                          p["bin"], pad_b], axis=1)
    bhn = jnp.concatenate([zeros_h, zeros_h, p["bhn"], pad_b], axis=1)
    return wi.astype(jnp.bfloat16), wh.astype(jnp.bfloat16), bx, bhn


# -----------------------------------------------------------------------------
# Wrapper
# -----------------------------------------------------------------------------
@jax.jit
def discriminator_forward(x, params):
    """x: [B, T, 64] float32 (batch_first, like PyTorch). Returns [B, 1] float32."""
    B, T, H = x.shape
    assert H == _H

    vmem_cap, n_tc = _tpu_generation()
    budget, limit_cap = _budgets(vmem_cap)
    TB = _choose_batch_tile(B, T, budget, n_tc)
    nb = -(-B // TB)
    B_pad = nb * TB
    x_p = x if B_pad == B else jnp.pad(x, ((0, B_pad - B), (0, 0), (0, 0)))

    wi_cat, wh_cat, bx_cat, bhn_pad = _pack_gru_params(params)
    w1 = params["w1"].astype(jnp.bfloat16)
    w2 = params["w2"].astype(jnp.bfloat16)
    w3 = params["w3"].astype(jnp.bfloat16)
    w4_row = params["w4"].T              # (1, 64) f32: VPU lane-reduction weight
    b1, b2, b3, b4 = params["b1"], params["b2"], params["b3"], params["b4"]

    const = lambda shape: pl.BlockSpec(shape, lambda b: tuple(0 for _ in shape))
    in_specs = [
        pl.BlockSpec((TB, T, H), lambda b: (b, 0, 0)),     # x batch tile (pipelined)
        const((_H, _GW)), const((_H, _GW)),                # wi_cat, wh_cat
        const((1, _GW)), const((1, _GW)),                  # bx_cat, bhn_pad
        const((_H, 256)), const((1, 256)),                 # w1, b1
        const((256, 128)), const((1, 128)),                # w2, b2
        const((128, _H)), const((1, _H)),                  # w3, b3
        const((1, _H)), const((1, 1)),                     # w4_row, b4
    ]

    vmem_limit = int(min(limit_cap,
                         max(16 * 2**20, (13 * _tile_bytes(T, TB)) // 10)))

    out = pl.pallas_call(
        _discriminator_kernel,
        out_shape=jax.ShapeDtypeStruct((B_pad, 1), jnp.float32),
        grid=(nb,),
        in_specs=in_specs,
        out_specs=pl.BlockSpec((TB, 1), lambda b: (b, 0)),
        scratch_shapes=[pltpu.VMEM((TB, T, _GW), jnp.float32)],
        compiler_params=pltpu.CompilerParams(
            dimension_semantics=("parallel",),
            vmem_limit_bytes=vmem_limit,
        ),
    )(x_p, wi_cat, wh_cat, bx_cat, bhn_pad,
      w1, b1, w2, b2, w3, b3, w4_row, b4)

    return out[:B] if B_pad != B else out


# -----------------------------------------------------------------------------
# Deterministic parameter init (shapes from the module's __init__).
# Stored pre-transposed so the math is `activation @ W_T + b`.
# -----------------------------------------------------------------------------
def init_params(key):
    H = _H
    keys = jax.random.split(key, 20)

    def u(k, shape, fan_in):
        bound = 1.0 / jnp.sqrt(fan_in)
        return jax.random.uniform(k, shape, jnp.float32, -bound, bound)

    p = {}
    p["wir"] = u(keys[0], (64, H), H)
    p["wiz"] = u(keys[1], (64, H), H)
    p["win"] = u(keys[2], (64, H), H)
    p["whr"] = u(keys[3], (H, H), H)
    p["whz"] = u(keys[4], (H, H), H)
    p["whn"] = u(keys[5], (H, H), H)
    p["bir"] = u(keys[6], (1, H), H)
    p["biz"] = u(keys[7], (1, H), H)
    p["bin"] = u(keys[8], (1, H), H)
    p["bhr"] = u(keys[9], (1, H), H)
    p["bhz"] = u(keys[10], (1, H), H)
    p["bhn"] = u(keys[11], (1, H), H)
    p["w1"] = u(keys[12], (64, 256), 64)
    p["b1"] = u(keys[13], (1, 256), 64)
    p["w2"] = u(keys[14], (256, 128), 256)
    p["b2"] = u(keys[15], (1, 128), 256)
    p["w3"] = u(keys[16], (128, 64), 128)
    p["b3"] = u(keys[17], (1, 64), 128)
    p["w4"] = u(keys[18], (64, 1), 64)
    p["b4"] = u(keys[19], (1, 1), 64)
    return p


# -----------------------------------------------------------------------------
# Pure-JAX f32 reference (mirrors PyTorch GRU + Sequential semantics exactly,
# built from the UNPACKED params so it also validates the packing).
# -----------------------------------------------------------------------------
def reference_forward(x, p):
    B, T, H = x.shape
    h = jnp.zeros((B, H), jnp.float32)
    for t in range(T):
        xt = x[:, t, :]
        r = jax.nn.sigmoid(xt @ p["wir"] + p["bir"] + h @ p["whr"] + p["bhr"])
        z = jax.nn.sigmoid(xt @ p["wiz"] + p["biz"] + h @ p["whz"] + p["bhz"])
        n = jnp.tanh(xt @ p["win"] + p["bin"] + r * (h @ p["whn"] + p["bhn"]))
        h = (1.0 - z) * n + z * h

    def lrelu(y):
        return jnp.where(y > 0, y, 0.01 * y)

    y = lrelu(h @ p["w1"] + p["b1"])
    y = lrelu(y @ p["w2"] + p["b2"])
    y = lrelu(y @ p["w3"] + p["b3"])
    return jax.nn.sigmoid(y @ p["w4"] + p["b4"])  # [B, 1]


if __name__ == "__main__":
    key = jax.random.PRNGKey(0)
    k_param, k_x = jax.random.split(key)

    B, T, H = 2, 8, 64
    params = init_params(k_param)
    x = jax.random.normal(k_x, (B, T, H), jnp.float32)

    out = jax.block_until_ready(discriminator_forward(x, params))
    ref = reference_forward(x, params)

    assert out.shape == (B, 1), out.shape
    # bf16 MXU operands with f32 accumulation => tolerance loosened vs f32 reference.
    assert jnp.allclose(out, ref, rtol=2e-2, atol=2e-2), (out, ref)

    print("KERNEL_OK")
</pallas_src>

<mosaic_0001>
module attributes {stable_mosaic.version = 11 : i64} {
  func.func @_discriminator_kernel(%arg0: i32, %arg1: memref<8x8x64xf32, #tpu.memory_space<vmem>>, %arg2: memref<64x256xbf16, #tpu.memory_space<vmem>>, %arg3: memref<64x256xbf16, #tpu.memory_space<vmem>>, %arg4: memref<1x256xf32, #tpu.memory_space<vmem>>, %arg5: memref<1x256xf32, #tpu.memory_space<vmem>>, %arg6: memref<64x256xbf16, #tpu.memory_space<vmem>>, %arg7: memref<1x256xf32, #tpu.memory_space<vmem>>, %arg8: memref<256x128xbf16, #tpu.memory_space<vmem>>, %arg9: memref<1x128xf32, #tpu.memory_space<vmem>>, %arg10: memref<128x64xbf16, #tpu.memory_space<vmem>>, %arg11: memref<1x64xf32, #tpu.memory_space<vmem>>, %arg12: memref<1x64xf32, #tpu.memory_space<vmem>>, %arg13: memref<1x1xf32, #tpu.memory_space<vmem>>, %arg14: memref<8x1xf32, #tpu.memory_space<vmem>>, %arg15: memref<8x8x256xf32, #tpu.memory_space<vmem>>) attributes {dimension_semantics = [#tpu.dimension_semantics<parallel>], iteration_bounds = array<i64: 1>, scalar_prefetch = 0 : i64, scratch_operands = 1 : i64, tpu.core_type = #tpu.core_type<tc>, window_params = [{transform_indices = @transform_0, window_bounds = array<i64: 8, 8, 64>}, {pipeline_mode = #tpu.pipeline_mode<synchronous>, transform_indices = @transform_1, window_bounds = array<i64: 64, 256>}, {pipeline_mode = #tpu.pipeline_mode<synchronous>, transform_indices = @transform_2, window_bounds = array<i64: 64, 256>}, {pipeline_mode = #tpu.pipeline_mode<synchronous>, transform_indices = @transform_3, window_bounds = array<i64: 1, 256>}, {pipeline_mode = #tpu.pipeline_mode<synchronous>, transform_indices = @transform_4, window_bounds = array<i64: 1, 256>}, {pipeline_mode = #tpu.pipeline_mode<synchronous>, transform_indices = @transform_5, window_bounds = array<i64: 64, 256>}, {pipeline_mode = #tpu.pipeline_mode<synchronous>, transform_indices = @transform_6, window_bounds = array<i64: 1, 256>}, {pipeline_mode = #tpu.pipeline_mode<synchronous>, transform_indices = @transform_7, window_bounds = array<i64: 256, 128>}, {pipeline_mode = #tpu.pipeline_mode<synchronous>, transform_indices = @transform_8, window_bounds = array<i64: 1, 128>}, {pipeline_mode = #tpu.pipeline_mode<synchronous>, transform_indices = @transform_9, window_bounds = array<i64: 128, 64>}, {pipeline_mode = #tpu.pipeline_mode<synchronous>, transform_indices = @transform_10, window_bounds = array<i64: 1, 64>}, {pipeline_mode = #tpu.pipeline_mode<synchronous>, transform_indices = @transform_11, window_bounds = array<i64: 1, 64>}, {pipeline_mode = #tpu.pipeline_mode<synchronous>, transform_indices = @transform_12, window_bounds = array<i64: 1, 1>}, {transform_indices = @transform_13, window_bounds = array<i64: 8, 1>}]} {
    %c0 = arith.constant 0 : index
    %c0_0 = arith.constant 0 : index
    %c0_1 = arith.constant 0 : index
    %0 = vector.load %arg1[%c0, %c0_0, %c0_1] : memref<8x8x64xf32, #tpu.memory_space<vmem>>, vector<8x8x64xf32>
    %1 = vector.shape_cast %0 : vector<8x8x64xf32> to vector<64x64xf32>
    %2 = arith.truncf %1 : vector<64x64xf32> to vector<64x64xbf16>
    %c0_2 = arith.constant 0 : index
    %c0_3 = arith.constant 0 : index
    %3 = vector.load %arg2[%c0_2, %c0_3] : memref<64x256xbf16, #tpu.memory_space<vmem>>, vector<64x256xbf16>
    %cst = arith.constant dense<0.000000e+00> : vector<64x256xf32>
    %4 = tpu.matmul %2, %3, %cst {dimension_numbers = #tpu.dot_dimension_numbers<[1], [0], [0], [1], [0, 0, 1, 1], [], []>} : vector<64x64xbf16>, vector<64x256xbf16>, vector<64x256xf32> -> vector<64x256xf32>
    %c0_4 = arith.constant 0 : index
    %c0_5 = arith.constant 0 : index
    %5 = vector.load %arg4[%c0_4, %c0_5] : memref<1x256xf32, #tpu.memory_space<vmem>>, vector<1x256xf32>
    %6 = vector.broadcast %5 : vector<1x256xf32> to vector<64x256xf32>
    %7 = arith.addf %4, %6 : vector<64x256xf32>
    %8 = vector.shape_cast %7 : vector<64x256xf32> to vector<8x8x256xf32>
    %c0_6 = arith.constant 0 : index
    %c0_7 = arith.constant 0 : index
    %c0_8 = arith.constant 0 : index
    %9 = vector.load %arg15[%c0_6, %c0_7, %c0_8] : memref<8x8x256xf32, #tpu.memory_space<vmem>>, vector<8x8x256xf32>
    tpu.vector_store %arg15[%c0_6, %c0_7, %c0_8], %8 {strides = array<i32>} : memref<8x8x256xf32, #tpu.memory_space<vmem>>, vector<8x8x256xf32>,
    %c0_9 = arith.constant 0 : index
    %c0_10 = arith.constant 0 : index
    %10 = vector.load %arg3[%c0_9, %c0_10] : memref<64x256xbf16, #tpu.memory_space<vmem>>, vector<64x256xbf16>
    %c0_11 = arith.constant 0 : index
    %c0_12 = arith.constant 0 : index
    %11 = vector.load %arg5[%c0_11, %c0_12] : memref<1x256xf32, #tpu.memory_space<vmem>>, vector<1x256xf32>
    %cst_13 = arith.constant 0.000000e+00 : f32
    %12 = vector.broadcast %cst_13 : f32 to vector<8x64xf32>
    %c0_14 = arith.constant 0 : index
    %c0_15 = arith.constant 0 : index
    %c0_16 = arith.constant 0 : index
    %13 = vector.load %arg15[%c0_14, %c0_15, %c0_16] : memref<8x8x256xf32, #tpu.memory_space<vmem>>, vector<8x1x256xf32>
    %14 = vector.shape_cast %13 : vector<8x1x256xf32> to vector<8x256xf32>
    %15 = arith.truncf %12 : vector<8x64xf32> to vector<8x64xbf16>
    %cst_17 = arith.constant dense<0.000000e+00> : vector<8x256xf32>
    %16 = tpu.matmul %15, %10, %cst_17 {dimension_numbers = #tpu.dot_dimension_numbers<[1], [0], [0], [1], [0, 0, 1, 1], [], []>} : vector<8x64xbf16>, vector<64x256xbf16>, vector<8x256xf32> -> vector<8x256xf32>
    %17 = vector.broadcast %11 : vector<1x256xf32> to vector<8x256xf32>
    %18 = arith.addf %16, %17 : vector<8x256xf32>
    %19 = vector.extract_strided_slice %14 {offsets = [0, 0], sizes = [8, 128], strides = [1, 1]} : vector<8x256xf32> to vector<8x128xf32>
    %20 = vector.extract_strided_slice %18 {offsets = [0, 0], sizes = [8, 128], strides = [1, 1]} : vector<8x256xf32> to vector<8x128xf32>
    %21 = arith.addf %19, %20 : vector<8x128xf32>
    %22 = arith.negf %21 : vector<8x128xf32>
    %23 = math.exp %22 : vector<8x128xf32>
    %cst_18 = arith.constant 1.000000e+00 : f32
    %24 = vector.broadcast %cst_18 : f32 to vector<8x128xf32>
    %25 = arith.addf %24, %23 : vector<8x128xf32>
    %26 = arith.divf %24, %25 : vector<8x128xf32>
    %27 = vector.extract_strided_slice %26 {offsets = [0, 0], sizes = [8, 64], strides = [1, 1]} : vector<8x128xf32> to vector<8x64xf32>
    %c64_i32 = arith.constant 64 : i32
    %28 = tpu.dynamic_rotate %26 by %c64_i32 dim 1 : vector<8x128xf32>, i32 -> vector<8x128xf32>
    %29 = vector.extract_strided_slice %28 {offsets = [0, 0], sizes = [8, 64], strides = [1, 1]} : vector<8x128xf32> to vector<8x64xf32>
    %30 = vector.extract_strided_slice %14 {offsets = [0, 128], sizes = [8, 64], strides = [1, 1]} : vector<8x256xf32> to vector<8x64xf32>
    %31 = vector.extract_strided_slice %18 {offsets = [0, 128], sizes = [8, 64], strides = [1, 1]} : vector<8x256xf32> to vector<8x64xf32>
    %32 = arith.mulf %27, %31 : vector<8x64xf32>
    %33 = arith.addf %30, %32 : vector<8x64xf32>
    %34 = math.tanh %33 : vector<8x64xf32>
    %cst_19 = arith.constant 1.000000e+00 : f32
    %35 = vector.broadcast %cst_19 : f32 to vector<8x64xf32>
    %36 = arith.subf %35, %29 : vector<8x64xf32>
    %37 = arith.mulf %36, %34 : vector<8x64xf32>
    %38 = arith.mulf %29, %12 : vector<8x64xf32>
    %39 = arith.addf %37, %38 : vector<8x64xf32>
    %c0_20 = arith.constant 0 : index
    %c1 = arith.constant 1 : index
    %c0_21 = arith.constant 0 : index
    %40 = vector.load %arg15[%c0_20, %c1, %c0_21] : memref<8x8x256xf32, #tpu.memory_space<vmem>>, vector<8x1x256xf32>
    %41 = vector.shape_cast %40 : vector<8x1x256xf32> to vector<8x256xf32>
    %42 = arith.truncf %39 : vector<8x64xf32> to vector<8x64xbf16>
    %cst_22 = arith.constant dense<0.000000e+00> : vector<8x256xf32>
    %43 = tpu.matmul %42, %10, %cst_22 {dimension_numbers = #tpu.dot_dimension_numbers<[1], [0], [0], [1], [0, 0, 1, 1], [], []>} : vector<8x64xbf16>, vector<64x256xbf16>, vector<8x256xf32> -> vector<8x256xf32>
    %44 = vector.broadcast %11 : vector<1x256xf32> to vector<8x256xf32>
    %45 = arith.addf %43, %44 : vector<8x256xf32>
    %46 = vector.extract_strided_slice %41 {offsets = [0, 0], sizes = [8, 128], strides = [1, 1]} : vector<8x256xf32> to vector<8x128xf32>
    %47 = vector.extract_strided_slice %45 {offsets = [0, 0], sizes = [8, 128], strides = [1, 1]} : vector<8x256xf32> to vector<8x128xf32>
    %48 = arith.addf %46, %47 : vector<8x128xf32>
    %49 = arith.negf %48 : vector<8x128xf32>
    %50 = math.exp %49 : vector<8x128xf32>
    %cst_23 = arith.constant 1.000000e+00 : f32
    %51 = vector.broadcast %cst_23 : f32 to vector<8x128xf32>
    %52 = arith.addf %51, %50 : vector<8x128xf32>
    %53 = arith.divf %51, %52 : vector<8x128xf32>
    %54 = vector.extract_strided_slice %53 {offsets = [0, 0], sizes = [8, 64], strides = [1, 1]} : vector<8x128xf32> to vector<8x64xf32>
    %c64_i32_24 = arith.constant 64 : i32
    %55 = tpu.dynamic_rotate %53 by %c64_i32_24 dim 1 : vector<8x128xf32>, i32 -> vector<8x128xf32>
    %56 = vector.extract_strided_slice %55 {offsets = [0, 0], sizes = [8, 64], strides = [1, 1]} : vector<8x128xf32> to vector<8x64xf32>
    %57 = vector.extract_strided_slice %41 {offsets = [0, 128], sizes = [8, 64], strides = [1, 1]} : vector<8x256xf32> to vector<8x64xf32>
    %58 = vector.extract_strided_slice %45 {offsets = [0, 128], sizes = [8, 64], strides = [1, 1]} : vector<8x256xf32> to vector<8x64xf32>
    %59 = arith.mulf %54, %58 : vector<8x64xf32>
    %60 = arith.addf %57, %59 : vector<8x64xf32>
    %61 = math.tanh %60 : vector<8x64xf32>
    %cst_25 = arith.constant 1.000000e+00 : f32
    %62 = vector.broadcast %cst_25 : f32 to vector<8x64xf32>
    %63 = arith.subf %62, %56 : vector<8x64xf32>
    %64 = arith.mulf %63, %61 : vector<8x64xf32>
    %65 = arith.mulf %56, %39 : vector<8x64xf32>
    %66 = arith.addf %64, %65 : vector<8x64xf32>
    %c0_26 = arith.constant 0 : index
    %c2 = arith.constant 2 : index
    %c0_27 = arith.constant 0 : index
    %67 = vector.load %arg15[%c0_26, %c2, %c0_27] : memref<8x8x256xf32, #tpu.memory_space<vmem>>, vector<8x1x256xf32>
    %68 = vector.shape_cast %67 : vector<8x1x256xf32> to vector<8x256xf32>
    %69 = arith.truncf %66 : vector<8x64xf32> to vector<8x64xbf16>
    %cst_28 = arith.constant dense<0.000000e+00> : vector<8x256xf32>
    %70 = tpu.matmul %69, %10, %cst_28 {dimension_numbers = #tpu.dot_dimension_numbers<[1], [0], [0], [1], [0, 0, 1, 1], [], []>} : vector<8x64xbf16>, vector<64x256xbf16>, vector<8x256xf32> -> vector<8x256xf32>
    %71 = vector.broadcast %11 : vector<1x256xf32> to vector<8x256xf32>
    %72 = arith.addf %70, %71 : vector<8x256xf32>
    %73 = vector.extract_strided_slice %68 {offsets = [0, 0], sizes = [8, 128], strides = [1, 1]} : vector<8x256xf32> to vector<8x128xf32>
    %74 = vector.extract_strided_slice %72 {offsets = [0, 0], sizes = [8, 128], strides = [1, 1]} : vector<8x256xf32> to vector<8x128xf32>
    %75 = arith.addf %73, %74 : vector<8x128xf32>
    %76 = arith.negf %75 : vector<8x128xf32>
    %77 = math.exp %76 : vector<8x128xf32>
    %cst_29 = arith.constant 1.000000e+00 : f32
    %78 = vector.broadcast %cst_29 : f32 to vector<8x128xf32>
    %79 = arith.addf %78, %77 : vector<8x128xf32>
    %80 = arith.divf %78, %79 : vector<8x128xf32>
    %81 = vector.extract_strided_slice %80 {offsets = [0, 0], sizes = [8, 64], strides = [1, 1]} : vector<8x128xf32> to vector<8x64xf32>
    %c64_i32_30 = arith.constant 64 : i32
    %82 = tpu.dynamic_rotate %80 by %c64_i32_30 dim 1 : vector<8x128xf32>, i32 -> vector<8x128xf32>
    %83 = vector.extract_strided_slice %82 {offsets = [0, 0], sizes = [8, 64], strides = [1, 1]} : vector<8x128xf32> to vector<8x64xf32>
    %84 = vector.extract_strided_slice %68 {offsets = [0, 128], sizes = [8, 64], strides = [1, 1]} : vector<8x256xf32> to vector<8x64xf32>
    %85 = vector.extract_strided_slice %72 {offsets = [0, 128], sizes = [8, 64], strides = [1, 1]} : vector<8x256xf32> to vector<8x64xf32>
    %86 = arith.mulf %81, %85 : vector<8x64xf32>
    %87 = arith.addf %84, %86 : vector<8x64xf32>
    %88 = math.tanh %87 : vector<8x64xf32>
    %cst_31 = arith.constant 1.000000e+00 : f32
    %89 = vector.broadcast %cst_31 : f32 to vector<8x64xf32>
    %90 = arith.subf %89, %83 : vector<8x64xf32>
    %91 = arith.mulf %90, %88 : vector<8x64xf32>
    %92 = arith.mulf %83, %66 : vector<8x64xf32>
    %93 = arith.addf %91, %92 : vector<8x64xf32>
    %c0_32 = arith.constant 0 : index
    %c3 = arith.constant 3 : index
    %c0_33 = arith.constant 0 : index
    %94 = vector.load %arg15[%c0_32, %c3, %c0_33] : memref<8x8x256xf32, #tpu.memory_space<vmem>>, vector<8x1x256xf32>
    %95 = vector.shape_cast %94 : vector<8x1x256xf32> to vector<8x256xf32>
    %96 = arith.truncf %93 : vector<8x64xf32> to vector<8x64xbf16>
    %cst_34 = arith.constant dense<0.000000e+00> : vector<8x256xf32>
    %97 = tpu.matmul %96, %10, %cst_34 {dimension_numbers = #tpu.dot_dimension_numbers<[1], [0], [0], [1], [0, 0, 1, 1], [], []>} : vector<8x64xbf16>, vector<64x256xbf16>, vector<8x256xf32> -> vector<8x256xf32>
    %98 = vector.broadcast %11 : vector<1x256xf32> to vector<8x256xf32>
    %99 = arith.addf %97, %98 : vector<8x256xf32>
    %100 = vector.extract_strided_slice %95 {offsets = [0, 0], sizes = [8, 128], strides = [1, 1]} : vector<8x256xf32> to vector<8x128xf32>
    %101 = vector.extract_strided_slice %99 {offsets = [0, 0], sizes = [8, 128], strides = [1, 1]} : vector<8x256xf32> to vector<8x128xf32>
    %102 = arith.addf %100, %101 : vector<8x128xf32>
    %103 = arith.negf %102 : vector<8x128xf32>
    %104 = math.exp %103 : vector<8x128xf32>
    %cst_35 = arith.constant 1.000000e+00 : f32
    %105 = vector.broadcast %cst_35 : f32 to vector<8x128xf32>
    %106 = arith.addf %105, %104 : vector<8x128xf32>
    %107 = arith.divf %105, %106 : vector<8x128xf32>
    %108 = vector.extract_strided_slice %107 {offsets = [0, 0], sizes = [8, 64], strides = [1, 1]} : vector<8x128xf32> to vector<8x64xf32>
    %c64_i32_36 = arith.constant 64 : i32
    %109 = tpu.dynamic_rotate %107 by %c64_i32_36 dim 1 : vector<8x128xf32>, i32 -> vector<8x128xf32>
    %110 = vector.extract_strided_slice %109 {offsets = [0, 0], sizes = [8, 64], strides = [1, 1]} : vector<8x128xf32> to vector<8x64xf32>
    %111 = vector.extract_strided_slice %95 {offsets = [0, 128], sizes = [8, 64], strides = [1, 1]} : vector<8x256xf32> to vector<8x64xf32>
    %112 = vector.extract_strided_slice %99 {offsets = [0, 128], sizes = [8, 64], strides = [1, 1]} : vector<8x256xf32> to vector<8x64xf32>
    %113 = arith.mulf %108, %112 : vector<8x64xf32>
    %114 = arith.addf %111, %113 : vector<8x64xf32>
    %115 = math.tanh %114 : vector<8x64xf32>
    %cst_37 = arith.constant 1.000000e+00 : f32
    %116 = vector.broadcast %cst_37 : f32 to vector<8x64xf32>
    %117 = arith.subf %116, %110 : vector<8x64xf32>
    %118 = arith.mulf %117, %115 : vector<8x64xf32>
    %119 = arith.mulf %110, %93 : vector<8x64xf32>
    %120 = arith.addf %118, %119 : vector<8x64xf32>
    %c0_38 = arith.constant 0 : index
    %c4 = arith.constant 4 : index
    %c0_39 = arith.constant 0 : index
    %121 = vector.load %arg15[%c0_38, %c4, %c0_39] : memref<8x8x256xf32, #tpu.memory_space<vmem>>, vector<8x1x256xf32>
    %122 = vector.shape_cast %121 : vector<8x1x256xf32> to vector<8x256xf32>
    %123 = arith.truncf %120 : vector<8x64xf32> to vector<8x64xbf16>
    %cst_40 = arith.constant dense<0.000000e+00> : vector<8x256xf32>
    %124 = tpu.matmul %123, %10, %cst_40 {dimension_numbers = #tpu.dot_dimension_numbers<[1], [0], [0], [1], [0, 0, 1, 1], [], []>} : vector<8x64xbf16>, vector<64x256xbf16>, vector<8x256xf32> -> vector<8x256xf32>
    %125 = vector.broadcast %11 : vector<1x256xf32> to vector<8x256xf32>
    %126 = arith.addf %124, %125 : vector<8x256xf32>
    %127 = vector.extract_strided_slice %122 {offsets = [0, 0], sizes = [8, 128], strides = [1, 1]} : vector<8x256xf32> to vector<8x128xf32>
    %128 = vector.extract_strided_slice %126 {offsets = [0, 0], sizes = [8, 128], strides = [1, 1]} : vector<8x256xf32> to vector<8x128xf32>
    %129 = arith.addf %127, %128 : vector<8x128xf32>
    %130 = arith.negf %129 : vector<8x128xf32>
    %131 = math.exp %130 : vector<8x128xf32>
    %cst_41 = arith.constant 1.000000e+00 : f32
    %132 = vector.broadcast %cst_41 : f32 to vector<8x128xf32>
    %133 = arith.addf %132, %131 : vector<8x128xf32>
    %134 = arith.divf %132, %133 : vector<8x128xf32>
    %135 = vector.extract_strided_slice %134 {offsets = [0, 0], sizes = [8, 64], strides = [1, 1]} : vector<8x128xf32> to vector<8x64xf32>
    %c64_i32_42 = arith.constant 64 : i32
    %136 = tpu.dynamic_rotate %134 by %c64_i32_42 dim 1 : vector<8x128xf32>, i32 -> vector<8x128xf32>
    %137 = vector.extract_strided_slice %136 {offsets = [0, 0], sizes = [8, 64], strides = [1, 1]} : vector<8x128xf32> to vector<8x64xf32>
    %138 = vector.extract_strided_slice %122 {offsets = [0, 128], sizes = [8, 64], strides = [1, 1]} : vector<8x256xf32> to vector<8x64xf32>
    %139 = vector.extract_strided_slice %126 {offsets = [0, 128], sizes = [8, 64], strides = [1, 1]} : vector<8x256xf32> to vector<8x64xf32>
    %140 = arith.mulf %135, %139 : vector<8x64xf32>
    %141 = arith.addf %138, %140 : vector<8x64xf32>
    %142 = math.tanh %141 : vector<8x64xf32>
    %cst_43 = arith.constant 1.000000e+00 : f32
    %143 = vector.broadcast %cst_43 : f32 to vector<8x64xf32>
    %144 = arith.subf %143, %137 : vector<8x64xf32>
    %145 = arith.mulf %144, %142 : vector<8x64xf32>
    %146 = arith.mulf %137, %120 : vector<8x64xf32>
    %147 = arith.addf %145, %146 : vector<8x64xf32>
    %c0_44 = arith.constant 0 : index
    %c5 = arith.constant 5 : index
    %c0_45 = arith.constant 0 : index
    %148 = vector.load %arg15[%c0_44, %c5, %c0_45] : memref<8x8x256xf32, #tpu.memory_space<vmem>>, vector<8x1x256xf32>
    %149 = vector.shape_cast %148 : vector<8x1x256xf32> to vector<8x256xf32>
    %150 = arith.truncf %147 : vector<8x64xf32> to vector<8x64xbf16>
    %cst_46 = arith.constant dense<0.000000e+00> : vector<8x256xf32>
    %151 = tpu.matmul %150, %10, %cst_46 {dimension_numbers = #tpu.dot_dimension_numbers<[1], [0], [0], [1], [0, 0, 1, 1], [], []>} : vector<8x64xbf16>, vector<64x256xbf16>, vector<8x256xf32> -> vector<8x256xf32>
    %152 = vector.broadcast %11 : vector<1x256xf32> to vector<8x256xf32>
    %153 = arith.addf %151, %152 : vector<8x256xf32>
    %154 = vector.extract_strided_slice %149 {offsets = [0, 0], sizes = [8, 128], strides = [1, 1]} : vector<8x256xf32> to vector<8x128xf32>
    %155 = vector.extract_strided_slice %153 {offsets = [0, 0], sizes = [8, 128], strides = [1, 1]} : vector<8x256xf32> to vector<8x128xf32>
    %156 = arith.addf %154, %155 : vector<8x128xf32>
    %157 = arith.negf %156 : vector<8x128xf32>
    %158 = math.exp %157 : vector<8x128xf32>
    %cst_47 = arith.constant 1.000000e+00 : f32
    %159 = vector.broadcast %cst_47 : f32 to vector<8x128xf32>
    %160 = arith.addf %159, %158 : vector<8x128xf32>
    %161 = arith.divf %159, %160 : vector<8x128xf32>
    %162 = vector.extract_strided_slice %161 {offsets = [0, 0], sizes = [8, 64], strides = [1, 1]} : vector<8x128xf32> to vector<8x64xf32>
    %c64_i32_48 = arith.constant 64 : i32
    %163 = tpu.dynamic_rotate %161 by %c64_i32_48 dim 1 : vector<8x128xf32>, i32 -> vector<8x128xf32>
    %164 = vector.extract_strided_slice %163 {offsets = [0, 0], sizes = [8, 64], strides = [1, 1]} : vector<8x128xf32> to vector<8x64xf32>
    %165 = vector.extract_strided_slice %149 {offsets = [0, 128], sizes = [8, 64], strides = [1, 1]} : vector<8x256xf32> to vector<8x64xf32>
    %166 = vector.extract_strided_slice %153 {offsets = [0, 128], sizes = [8, 64], strides = [1, 1]} : vector<8x256xf32> to vector<8x64xf32>
    %167 = arith.mulf %162, %166 : vector<8x64xf32>
    %168 = arith.addf %165, %167 : vector<8x64xf32>
    %169 = math.tanh %168 : vector<8x64xf32>
    %cst_49 = arith.constant 1.000000e+00 : f32
    %170 = vector.broadcast %cst_49 : f32 to vector<8x64xf32>
    %171 = arith.subf %170, %164 : vector<8x64xf32>
    %172 = arith.mulf %171, %169 : vector<8x64xf32>
    %173 = arith.mulf %164, %147 : vector<8x64xf32>
    %174 = arith.addf %172, %173 : vector<8x64xf32>
    %c0_50 = arith.constant 0 : index
    %c6 = arith.constant 6 : index
    %c0_51 = arith.constant 0 : index
    %175 = vector.load %arg15[%c0_50, %c6, %c0_51] : memref<8x8x256xf32, #tpu.memory_space<vmem>>, vector<8x1x256xf32>
    %176 = vector.shape_cast %175 : vector<8x1x256xf32> to vector<8x256xf32>
    %177 = arith.truncf %174 : vector<8x64xf32> to vector<8x64xbf16>
    %cst_52 = arith.constant dense<0.000000e+00> : vector<8x256xf32>
    %178 = tpu.matmul %177, %10, %cst_52 {dimension_numbers = #tpu.dot_dimension_numbers<[1], [0], [0], [1], [0, 0, 1, 1], [], []>} : vector<8x64xbf16>, vector<64x256xbf16>, vector<8x256xf32> -> vector<8x256xf32>
    %179 = vector.broadcast %11 : vector<1x256xf32> to vector<8x256xf32>
    %180 = arith.addf %178, %179 : vector<8x256xf32>
    %181 = vector.extract_strided_slice %176 {offsets = [0, 0], sizes = [8, 128], strides = [1, 1]} : vector<8x256xf32> to vector<8x128xf32>
    %182 = vector.extract_strided_slice %180 {offsets = [0, 0], sizes = [8, 128], strides = [1, 1]} : vector<8x256xf32> to vector<8x128xf32>
    %183 = arith.addf %181, %182 : vector<8x128xf32>
    %184 = arith.negf %183 : vector<8x128xf32>
    %185 = math.exp %184 : vector<8x128xf32>
    %cst_53 = arith.constant 1.000000e+00 : f32
    %186 = vector.broadcast %cst_53 : f32 to vector<8x128xf32>
    %187 = arith.addf %186, %185 : vector<8x128xf32>
    %188 = arith.divf %186, %187 : vector<8x128xf32>
    %189 = vector.extract_strided_slice %188 {offsets = [0, 0], sizes = [8, 64], strides = [1, 1]} : vector<8x128xf32> to vector<8x64xf32>
    %c64_i32_54 = arith.constant 64 : i32
    %190 = tpu.dynamic_rotate %188 by %c64_i32_54 dim 1 : vector<8x128xf32>, i32 -> vector<8x128xf32>
    %191 = vector.extract_strided_slice %190 {offsets = [0, 0], sizes = [8, 64], strides = [1, 1]} : vector<8x128xf32> to vector<8x64xf32>
    %192 = vector.extract_strided_slice %176 {offsets = [0, 128], sizes = [8, 64], strides = [1, 1]} : vector<8x256xf32> to vector<8x64xf32>
    %193 = vector.extract_strided_slice %180 {offsets = [0, 128], sizes = [8, 64], strides = [1, 1]} : vector<8x256xf32> to vector<8x64xf32>
    %194 = arith.mulf %189, %193 : vector<8x64xf32>
    %195 = arith.addf %192, %194 : vector<8x64xf32>
    %196 = math.tanh %195 : vector<8x64xf32>
    %cst_55 = arith.constant 1.000000e+00 : f32
    %197 = vector.broadcast %cst_55 : f32 to vector<8x64xf32>
    %198 = arith.subf %197, %191 : vector<8x64xf32>
    %199 = arith.mulf %198, %196 : vector<8x64xf32>
    %200 = arith.mulf %191, %174 : vector<8x64xf32>
    %201 = arith.addf %199, %200 : vector<8x64xf32>
    %c0_56 = arith.constant 0 : index
    %c7 = arith.constant 7 : index
    %c0_57 = arith.constant 0 : index
    %202 = vector.load %arg15[%c0_56, %c7, %c0_57] : memref<8x8x256xf32, #tpu.memory_space<vmem>>, vector<8x1x256xf32>
    %203 = vector.shape_cast %202 : vector<8x1x256xf32> to vector<8x256xf32>
    %204 = arith.truncf %201 : vector<8x64xf32> to vector<8x64xbf16>
    %cst_58 = arith.constant dense<0.000000e+00> : vector<8x256xf32>
    %205 = tpu.matmul %204, %10, %cst_58 {dimension_numbers = #tpu.dot_dimension_numbers<[1], [0], [0], [1], [0, 0, 1, 1], [], []>} : vector<8x64xbf16>, vector<64x256xbf16>, vector<8x256xf32> -> vector<8x256xf32>
    %206 = vector.broadcast %11 : vector<1x256xf32> to vector<8x256xf32>
    %207 = arith.addf %205, %206 : vector<8x256xf32>
    %208 = vector.extract_strided_slice %203 {offsets = [0, 0], sizes = [8, 128], strides = [1, 1]} : vector<8x256xf32> to vector<8x128xf32>
    %209 = vector.extract_strided_slice %207 {offsets = [0, 0], sizes = [8, 128], strides = [1, 1]} : vector<8x256xf32> to vector<8x128xf32>
    %210 = arith.addf %208, %209 : vector<8x128xf32>
    %211 = arith.negf %210 : vector<8x128xf32>
    %212 = math.exp %211 : vector<8x128xf32>
    %cst_59 = arith.constant 1.000000e+00 : f32
    %213 = vector.broadcast %cst_59 : f32 to vector<8x128xf32>
    %214 = arith.addf %213, %212 : vector<8x128xf32>
    %215 = arith.divf %213, %214 : vector<8x128xf32>
    %216 = vector.extract_strided_slice %215 {offsets = [0, 0], sizes = [8, 64], strides = [1, 1]} : vector<8x128xf32> to vector<8x64xf32>
    %c64_i32_60 = arith.constant 64 : i32
    %217 = tpu.dynamic_rotate %215 by %c64_i32_60 dim 1 : vector<8x128xf32>, i32 -> vector<8x128xf32>
    %218 = vector.extract_strided_slice %217 {offsets = [0, 0], sizes = [8, 64], strides = [1, 1]} : vector<8x128xf32> to vector<8x64xf32>
    %219 = vector.extract_strided_slice %203 {offsets = [0, 128], sizes = [8, 64], strides = [1, 1]} : vector<8x256xf32> to vector<8x64xf32>
    %220 = vector.extract_strided_slice %207 {offsets = [0, 128], sizes = [8, 64], strides = [1, 1]} : vector<8x256xf32> to vector<8x64xf32>
    %221 = arith.mulf %216, %220 : vector<8x64xf32>
    %222 = arith.addf %219, %221 : vector<8x64xf32>
    %223 = math.tanh %222 : vector<8x64xf32>
    %cst_61 = arith.constant 1.000000e+00 : f32
    %224 = vector.broadcast %cst_61 : f32 to vector<8x64xf32>
    %225 = arith.subf %224, %218 : vector<8x64xf32>
    %226 = arith.mulf %225, %223 : vector<8x64xf32>
    %227 = arith.mulf %218, %201 : vector<8x64xf32>
    %228 = arith.addf %226, %227 : vector<8x64xf32>
    %229 = arith.truncf %228 : vector<8x64xf32> to vector<8x64xbf16>
    %c0_62 = arith.constant 0 : index
    %c0_63 = arith.constant 0 : index
    %230 = vector.load %arg6[%c0_62, %c0_63] : memref<64x256xbf16, #tpu.memory_space<vmem>>, vector<64x256xbf16>
    %cst_64 = arith.constant dense<0.000000e+00> : vector<8x256xf32>
    %231 = tpu.matmul %229, %230, %cst_64 {dimension_numbers = #tpu.dot_dimension_numbers<[1], [0], [0], [1], [0, 0, 1, 1], [], []>} : vector<8x64xbf16>, vector<64x256xbf16>, vector<8x256xf32> -> vector<8x256xf32>
    %c0_65 = arith.constant 0 : index
    %c0_66 = arith.constant 0 : index
    %232 = vector.load %arg7[%c0_65, %c0_66] : memref<1x256xf32, #tpu.memory_space<vmem>>, vector<1x256xf32>
    %233 = vector.broadcast %232 : vector<1x256xf32> to vector<8x256xf32>
    %234 = arith.addf %231, %233 : vector<8x256xf32>
    %cst_67 = arith.constant 0.000000e+00 : f32
    %235 = vector.broadcast %cst_67 : f32 to vector<8x256xf32>
    %236 = arith.cmpf ogt, %234, %235 : vector<8x256xf32>
    %cst_68 = arith.constant 0.00999999977 : f32
    %237 = vector.broadcast %cst_68 : f32 to vector<8x256xf32>
    %238 = arith.mulf %237, %234 : vector<8x256xf32>
    %239 = arith.select %236, %234, %238 : vector<8x256xi1>, vector<8x256xf32>
    %240 = arith.truncf %239 : vector<8x256xf32> to vector<8x256xbf16>
    %c0_69 = arith.constant 0 : index
    %c0_70 = arith.constant 0 : index
    %241 = vector.load %arg8[%c0_69, %c0_70] : memref<256x128xbf16, #tpu.memory_space<vmem>>, vector<256x128xbf16>
    %cst_71 = arith.constant dense<0.000000e+00> : vector<8x128xf32>
    %242 = tpu.matmul %240, %241, %cst_71 {dimension_numbers = #tpu.dot_dimension_numbers<[1], [0], [0], [1], [0, 0, 1, 1], [], []>} : vector<8x256xbf16>, vector<256x128xbf16>, vector<8x128xf32> -> vector<8x128xf32>
    %c0_72 = arith.constant 0 : index
    %c0_73 = arith.constant 0 : index
    %243 = vector.load %arg9[%c0_72, %c0_73] : memref<1x128xf32, #tpu.memory_space<vmem>>, vector<1x128xf32>
    %244 = vector.broadcast %243 : vector<1x128xf32> to vector<8x128xf32>
    %245 = arith.addf %242, %244 : vector<8x128xf32>
    %cst_74 = arith.constant 0.000000e+00 : f32
    %246 = vector.broadcast %cst_74 : f32 to vector<8x128xf32>
    %247 = arith.cmpf ogt, %245, %246 : vector<8x128xf32>
    %cst_75 = arith.constant 0.00999999977 : f32
    %248 = vector.broadcast %cst_75 : f32 to vector<8x128xf32>
    %249 = arith.mulf %248, %245 : vector<8x128xf32>
    %250 = arith.select %247, %245, %249 : vector<8x128xi1>, vector<8x128xf32>
    %251 = arith.truncf %250 : vector<8x128xf32> to vector<8x128xbf16>
    %c0_76 = arith.constant 0 : index
    %c0_77 = arith.constant 0 : index
    %252 = vector.load %arg10[%c0_76, %c0_77] : memref<128x64xbf16, #tpu.memory_space<vmem>>, vector<128x64xbf16>
    %cst_78 = arith.constant dense<0.000000e+00> : vector<8x64xf32>
    %253 = tpu.matmul %251, %252, %cst_78 {dimension_numbers = #tpu.dot_dimension_numbers<[1], [0], [0], [1], [0, 0, 1, 1], [], []>} : vector<8x128xbf16>, vector<128x64xbf16>, vector<8x64xf32> -> vector<8x64xf32>
    %c0_79 = arith.constant 0 : index
    %c0_80 = arith.constant 0 : index
    %254 = vector.load %arg11[%c0_79, %c0_80] : memref<1x64xf32, #tpu.memory_space<vmem>>, vector<1x64xf32>
    %255 = vector.broadcast %254 : vector<1x64xf32> to vector<8x64xf32>
    %256 = arith.addf %253, %255 : vector<8x64xf32>
    %cst_81 = arith.constant 0.000000e+00 : f32
    %257 = vector.broadcast %cst_81 : f32 to vector<8x64xf32>
    %258 = arith.cmpf ogt, %256, %257 : vector<8x64xf32>
    %cst_82 = arith.constant 0.00999999977 : f32
    %259 = vector.broadcast %cst_82 : f32 to vector<8x64xf32>
    %260 = arith.mulf %259, %256 : vector<8x64xf32>
    %261 = arith.select %258, %256, %260 : vector<8x64xi1>, vector<8x64xf32>
    %c0_83 = arith.constant 0 : index
    %c0_84 = arith.constant 0 : index
    %262 = vector.load %arg12[%c0_83, %c0_84] : memref<1x64xf32, #tpu.memory_space<vmem>>, vector<1x64xf32>
    %263 = vector.broadcast %262 : vector<1x64xf32> to vector<8x64xf32>
    %264 = arith.mulf %261, %263 : vector<8x64xf32>
    %cst_85 = arith.constant dense<0.000000e+00> : vector<8xf32>
    %265 = vector.multi_reduction <add>, %264, %cst_85 [1] : vector<8x64xf32> to vector<8xf32>
    %266 = vector.shape_cast %265 : vector<8xf32> to vector<8x1xf32>
    %c0_86 = arith.constant 0 : index
    %c0_87 = arith.constant 0 : index
    %267 = vector.load %arg13[%c0_86, %c0_87] : memref<1x1xf32, #tpu.memory_space<vmem>>, vector<1x1xf32>
    %268 = vector.broadcast %267 : vector<1x1xf32> to vector<8x1xf32>
    %269 = arith.addf %266, %268 : vector<8x1xf32>
    %270 = arith.negf %269 : vector<8x1xf32>
    %271 = math.exp %270 : vector<8x1xf32>
    %cst_88 = arith.constant 1.000000e+00 : f32
    %272 = vector.broadcast %cst_88 : f32 to vector<8x1xf32>
    %273 = arith.addf %272, %271 : vector<8x1xf32>
    %274 = arith.divf %272, %273 : vector<8x1xf32>
    %c0_89 = arith.constant 0 : index
    %c0_90 = arith.constant 0 : index
    %275 = vector.load %arg14[%c0_89, %c0_90] : memref<8x1xf32, #tpu.memory_space<vmem>>, vector<8x1xf32>
    tpu.vector_store %arg14[%c0_89, %c0_90], %274 {strides = array<i32>} : memref<8x1xf32, #tpu.memory_space<vmem>>, vector<8x1xf32>,
    return
  }
  func.func @transform_0(%arg0: i32) -> (i32, i32, i32) {
    %c0_i32 = arith.constant 0 : i32
    %c0_i32_0 = arith.constant 0 : i32
    %c0_i32_1 = arith.constant 0 : i32
    return %arg0, %c0_i32, %c0_i32_0 : i32, i32, i32
  }
  func.func @transform_1(%arg0: i32) -> (i32, i32) {
    %c0_i32 = arith.constant 0 : i32
    %c0_i32_0 = arith.constant 0 : i32
    %c0_i32_1 = arith.constant 0 : i32
    return %c0_i32, %c0_i32_0 : i32, i32
  }
  func.func @transform_2(%arg0: i32) -> (i32, i32) {
    %c0_i32 = arith.constant 0 : i32
    %c0_i32_0 = arith.constant 0 : i32
    %c0_i32_1 = arith.constant 0 : i32
    return %c0_i32, %c0_i32_0 : i32, i32
  }
  func.func @transform_3(%arg0: i32) -> (i32, i32) {
    %c0_i32 = arith.constant 0 : i32
    %c0_i32_0 = arith.constant 0 : i32
    %c0_i32_1 = arith.constant 0 : i32
    return %c0_i32, %c0_i32_0 : i32, i32
  }
  func.func @transform_4(%arg0: i32) -> (i32, i32) {
    %c0_i32 = arith.constant 0 : i32
    %c0_i32_0 = arith.constant 0 : i32
    %c0_i32_1 = arith.constant 0 : i32
    return %c0_i32, %c0_i32_0 : i32, i32
  }
  func.func @transform_5(%arg0: i32) -> (i32, i32) {
    %c0_i32 = arith.constant 0 : i32
    %c0_i32_0 = arith.constant 0 : i32
    %c0_i32_1 = arith.constant 0 : i32
    return %c0_i32, %c0_i32_0 : i32, i32
  }
  func.func @transform_6(%arg0: i32) -> (i32, i32) {
    %c0_i32 = arith.constant 0 : i32
    %c0_i32_0 = arith.constant 0 : i32
    %c0_i32_1 = arith.constant 0 : i32
    return %c0_i32, %c0_i32_0 : i32, i32
  }
  func.func @transform_7(%arg0: i32) -> (i32, i32) {
    %c0_i32 = arith.constant 0 : i32
    %c0_i32_0 = arith.constant 0 : i32
    %c0_i32_1 = arith.constant 0 : i32
    return %c0_i32, %c0_i32_0 : i32, i32
  }
  func.func @transform_8(%arg0: i32) -> (i32, i32) {
    %c0_i32 = arith.constant 0 : i32
    %c0_i32_0 = arith.constant 0 : i32
    %c0_i32_1 = arith.constant 0 : i32
    return %c0_i32, %c0_i32_0 : i32, i32
  }
  func.func @transform_9(%arg0: i32) -> (i32, i32) {
    %c0_i32 = arith.constant 0 : i32
    %c0_i32_0 = arith.constant 0 : i32
    %c0_i32_1 = arith.constant 0 : i32
    return %c0_i32, %c0_i32_0 : i32, i32
  }
  func.func @transform_10(%arg0: i32) -> (i32, i32) {
    %c0_i32 = arith.constant 0 : i32
    %c0_i32_0 = arith.constant 0 : i32
    %c0_i32_1 = arith.constant 0 : i32
    return %c0_i32, %c0_i32_0 : i32, i32
  }
  func.func @transform_11(%arg0: i32) -> (i32, i32) {
    %c0_i32 = arith.constant 0 : i32
    %c0_i32_0 = arith.constant 0 : i32
    %c0_i32_1 = arith.constant 0 : i32
    return %c0_i32, %c0_i32_0 : i32, i32
  }
  func.func @transform_12(%arg0: i32) -> (i32, i32) {
    %c0_i32 = arith.constant 0 : i32
    %c0_i32_0 = arith.constant 0 : i32
    %c0_i32_1 = arith.constant 0 : i32
    return %c0_i32, %c0_i32_0 : i32, i32
  }
  func.func @transform_13(%arg0: i32) -> (i32, i32) {
    %c0_i32 = arith.constant 0 : i32
    %c0_i32_0 = arith.constant 0 : i32
    return %arg0, %c0_i32 : i32, i32
  }
}

</mosaic_0001>

<llo_original>
// kernel: discriminator_forward.1
$region0: #{discriminator_forward.1}
  #allocation0 [shape = 'u32[]', space=smem, size = 0x4, offset = 0x4, fixed_abs, tag = 'smem constant byte address 0x4 - core index']
  #allocation1 [shape = 'u32[144,128]{1,0:T(1,128)}', space=vmem, size = 0x12000, scoped, tag = 'internal scratch']
  #allocation2 [shape = 'f32[8,8,256]{2,1,0:T(8,128)}', space=vmem, size = 0x10000, scoped, tag = 'scratch operand']
  #allocation3 [shape = 'f32[1,1]{1,0:T(1,128)S(1)}', space=vmem, size = 0x200, scoped, tag = 'scoped memory for discriminator_forward.1']
  %s0 = inlined_call_operand.vmem [shape: f32[8,8,64], index: 0, kind: input, shape index: {}]
  %s1 = inlined_call_operand.vmem [shape: bf16[64,256], index: 1, kind: input, shape index: {}]
  %s2 = inlined_call_operand.vmem [shape: bf16[64,256], index: 2, kind: input, shape index: {}]
  %s3 = inlined_call_operand.vmem [shape: f32[1,256], index: 3, kind: input, shape index: {}]
  %s4 = inlined_call_operand.vmem [shape: f32[1,256], index: 4, kind: input, shape index: {}]
  %s5 = inlined_call_operand.vmem [shape: bf16[64,256], index: 5, kind: input, shape index: {}]
  %s6 = inlined_call_operand.vmem [shape: f32[1,256], index: 6, kind: input, shape index: {}]
  %s7 = inlined_call_operand.vmem [shape: bf16[256,128], index: 7, kind: input, shape index: {}]
  %s8 = inlined_call_operand.vmem [shape: f32[1,128], index: 8, kind: input, shape index: {}]
  %s9 = inlined_call_operand.vmem [shape: bf16[128,64], index: 9, kind: input, shape index: {}]
  %s10 = inlined_call_operand.vmem [shape: f32[1,64], index: 10, kind: input, shape index: {}]
  %s11 = inlined_call_operand.vmem [shape: f32[1,64], index: 11, kind: input, shape index: {}]
  %s12 = inlined_call_operand.<no memory space> [shape: f32[1,1], index: 12, kind: input, shape index: {}]
  %s13 = inlined_call_operand.vmem [shape: f32[8,1], index: 13, kind: output, shape index: {}]
  %s14 = sld [smem:[#allocation0]]
  $region62: #{discriminator_forward.1} parent=0
    _
  %s16 = ssub.s32 1, %s14
  %s17 = scalar_select 0, %s16, %s14
  %v18 = vstv %s12
  %19 = vst [vmem:[#allocation3] sm:$0x1] %v18
  // Predicated region
  $region2: #{discriminator_forward.1} parent=0 // pred_check
    _
  $region3: #{discriminator_forward.1} parent=0 // pred_check_branch
    %21 = sbr.rel (0) target = $region5
  $region4: #{discriminator_forward.1} parent=0 // pred_region
    _
  $region5: #{discriminator_forward.1} parent=0 // pred_fallthru
    _
  // Predicated region
  $region6: #{discriminator_forward.1} parent=0 // pred_check
    _
  $region7: #{discriminator_forward.1} parent=0 // pred_check_branch
    %23 = sbr.rel (0) target = $region9
  $region8: #{discriminator_forward.1} parent=0 // pred_region
    _
  $region9: #{discriminator_forward.1} parent=0 // pred_fallthru
    _
  // Predicated region
  $region10: #{discriminator_forward.1} parent=0 // pred_check
    _
  $region11: #{discriminator_forward.1} parent=0 // pred_check_branch
    %25 = sbr.rel (0) target = $region13
  $region12: #{discriminator_forward.1} parent=0 // pred_region
    _
  $region13: #{discriminator_forward.1} parent=0 // pred_fallthru
    _
  // Predicated region
  $region14: #{discriminator_forward.1} parent=0 // pred_check
    _
  $region15: #{discriminator_forward.1} parent=0 // pred_check_branch
    %27 = sbr.rel (0) target = $region17
  $region16: #{discriminator_forward.1} parent=0 // pred_region
    _
  $region17: #{discriminator_forward.1} parent=0 // pred_fallthru
    _
  // Predicated region
  $region18: #{discriminator_forward.1} parent=0 // pred_check
    _
  $region19: #{discriminator_forward.1} parent=0 // pred_check_branch
    %29 = sbr.rel (0) target = $region21
  $region20: #{discriminator_forward.1} parent=0 // pred_region
    _
  $region21: #{discriminator_forward.1} parent=0 // pred_fallthru
    _
  // Predicated region
  $region22: #{discriminator_forward.1} parent=0 // pred_check
    _
  $region23: #{discriminator_forward.1} parent=0 // pred_check_branch
    %31 = sbr.rel (0) target = $region25
  $region24: #{discriminator_forward.1} parent=0 // pred_region
    _
  $region25: #{discriminator_forward.1} parent=0 // pred_fallthru
    _
  // Predicated region
  $region26: #{discriminator_forward.1} parent=0 // pred_check
    _
  $region27: #{discriminator_forward.1} parent=0 // pred_check_branch
    %33 = sbr.rel (0) target = $region29
  $region28: #{discriminator_forward.1} parent=0 // pred_region
    _
  $region29: #{discriminator_forward.1} parent=0 // pred_fallthru
    _
  // Predicated region
  $region30: #{discriminator_forward.1} parent=0 // pred_check
    _
  $region31: #{discriminator_forward.1} parent=0 // pred_check_branch
    %35 = sbr.rel (0) target = $region33
  $region32: #{discriminator_forward.1} parent=0 // pred_region
    _
  $region33: #{discriminator_forward.1} parent=0 // pred_fallthru
    _
  // Predicated region
  $region34: #{discriminator_forward.1} parent=0 // pred_check
    _
  $region35: #{discriminator_forward.1} parent=0 // pred_check_branch
    %37 = sbr.rel (0) target = $region37
  $region36: #{discriminator_forward.1} parent=0 // pred_region
    _
  $region37: #{discriminator_forward.1} parent=0 // pred_fallthru
    _
  // Predicated region
  $region38: #{discriminator_forward.1} parent=0 // pred_check
    _
  $region39: #{discriminator_forward.1} parent=0 // pred_check_branch
    %39 = sbr.rel (0) target = $region41
  $region40: #{discriminator_forward.1} parent=0 // pred_region
    _
  $region41: #{discriminator_forward.1} parent=0 // pred_fallthru
    _
  // Predicated region
  $region42: #{discriminator_forward.1} parent=0 // pred_check
    _
  $region43: #{discriminator_forward.1} parent=0 // pred_check_branch
    %41 = sbr.rel (0) target = $region45
  $region44: #{discriminator_forward.1} parent=0 // pred_region
    _
  $region45: #{discriminator_forward.1} parent=0 // pred_fallthru
    _
  // Predicated region
  $region46: #{discriminator_forward.1} parent=0 // pred_check
    _
  $region47: #{discriminator_forward.1} parent=0 // pred_check_branch
    %43 = sbr.rel (0) target = $region49
  $region48: #{discriminator_forward.1} parent=0 // pred_region
    _
  $region49: #{discriminator_forward.1} parent=0 // pred_fallthru
    _
  // Predicated region
  $region50: #{discriminator_forward.1} parent=0 // pred_check
    _
  $region51: #{discriminator_forward.1} parent=0 // pred_check_branch
    %45 = sbr.rel (0) target = $region53
  $region52: #{discriminator_forward.1} parent=0 // pred_region
    _
  $region53: #{discriminator_forward.1} parent=0 // pred_fallthru
    _
  %v47 = vld [vmem:[%s0] sm:$0xff]
  %v48 = vld [vmem:[%s0 + $0x8] sm:$0xff]
  %v49 = vld [vmem:[%s0 + $0x10] sm:$0xff]
  %v50 = vld [vmem:[%s0 + $0x18] sm:$0xff]
  %v51 = vld [vmem:[%s0 + $0x20] sm:$0xff]
  %v52 = vld [vmem:[%s0 + $0x28] sm:$0xff]
  %v53 = vld [vmem:[%s0 + $0x30] sm:$0xff]
  %v54 = vld [vmem:[%s0 + $0x38] sm:$0xff]
  %v55 = vpack.c.bf16 %v48, %v47
  %v56 = vpack.c.bf16 %v50, %v49
  %v57 = vpack.c.bf16 %v52, %v51
  %v58 = vpack.c.bf16 %v54, %v53
  %v59 = vld [vmem:[%s1] sm:$0xff]
  %v60 = vld [vmem:[%s1 + $0x8] sm:$0xff]
  %v61 = vld [vmem:[%s1 + $0x10] sm:$0xff]
  %v62 = vld [vmem:[%s1 + $0x18] sm:$0xff]
  %v63 = vld [vmem:[%s1 + $0x20] sm:$0xff]
  %v64 = vld [vmem:[%s1 + $0x28] sm:$0xff]
  %v65 = vld [vmem:[%s1 + $0x30] sm:$0xff]
  %v66 = vld [vmem:[%s1 + $0x38] sm:$0xff]
  %v67 = vld [vmem:[%s3] sm:$0x3]
  %v69 = vlaneseq
  %v70 = vshrl.u32 %v69, 7
  %v71 = vsub.s32 0, %v70
  %v72 = vrot.slane %v67, %v71
  %v73 = vlaneseq
  %v74 = vshrl.u32 %v73, 7
  %v75 = vsub.s32 1, %v74
  %v76 = vrot.slane %v67, %v75
  %v87 = vunpack.c.l.b16 %v59
  %v88 = vunpack.c.h.b16 %v59
  %v89 = vunpack.c.l.b16 %v60
  %v90 = vunpack.c.h.b16 %v60
  %v91 = vunpack.c.l.b16 %v61
  %v92 = vunpack.c.h.b16 %v61
  %v93 = vunpack.c.l.b16 %v62
  %v94 = vunpack.c.h.b16 %v62
  %v95 = vunpack.c.l.b16 %v63
  %v96 = vunpack.c.h.b16 %v63
  %v97 = vunpack.c.l.b16 %v64
  %v98 = vunpack.c.h.b16 %v64
  %v99 = vunpack.c.l.b16 %v65
  %v100 = vunpack.c.h.b16 %v65
  %v101 = vunpack.c.l.b16 %v66
  %v102 = vunpack.c.h.b16 %v66
  %v103 = vpack.c.b16 %v89, %v87
  %v104 = vpack.c.b16 %v90, %v88
  %v105 = vpack.c.b16 %v93, %v91
  %v106 = vpack.c.b16 %v94, %v92
  %v107 = vpack.c.b16 %v97, %v95
  %v108 = vpack.c.b16 %v98, %v96
  %v109 = vpack.c.b16 %v101, %v99
  %v110 = vpack.c.b16 %v102, %v100
  %vm119 = vcmask 523264
  %v121 = vsel %vm119, %v55, 0
  %v124 = vsel %vm119, %v56, 0
  %v127 = vsel %vm119, %v57, 0
  %v130 = vsel %vm119, %v58, 0
  %132 = vmatprep.subr.bf16.mxu0 %v104
  %133 = vmatpush1.bf16.msra.mxu0 %v103
  %134 = vmatprep.subr.bf16.mxu0 %v106
  %135 = vmatpush1.bf16.msra.mxu0 %v105
  %136 = vmatprep.subr.bf16.mxu0 %v108
  %137 = vmatpush1.bf16.msra.mxu0 %v107
  %138 = vmatprep.subr.bf16.mxu0 %v110
  %139 = vmatpush1.bf16.msra.mxu0 %v109
  %140 = vmatprep.subr.bf16.mxu0 0
  %141 = vmatpush1.bf16.msra.mxu0 0
  %142 = vmatprep.subr.bf16.mxu0 0
  %143 = vmatpush1.bf16.msra.mxu0 0
  %144 = vmatprep.subr.bf16.mxu0 0
  %145 = vmatpush1.bf16.msra.mxu0 0
  %146 = vmatprep.subr.bf16.mxu0 0
  %147 = vmatpush1.bf16.msra.mxu0 0
  %148 = vmatprep.subr.bf16.mxu0 0
  %149 = vmatpush1.bf16.msra.mxu0 0
  %150 = vmatprep.subr.bf16.mxu0 0
  %151 = vmatpush1.bf16.msra.mxu0 0
  %152 = vmatprep.subr.bf16.mxu0 0
  %153 = vmatpush1.bf16.msra.mxu0 0
  %154 = vmatprep.subr.bf16.mxu0 0
  %155 = vmatpush1.bf16.msra.mxu0 0
  %156 = vmatprep.subr.bf16.mxu0 0
  %157 = vmatpush1.bf16.msra.mxu0 0
  %158 = vmatprep.subr.bf16.mxu0 0
  %159 = vmatpush1.bf16.msra.mxu0 0
  %160 = vmatprep.subr.bf16.mxu0 0
  %161 = vmatpush1.bf16.msra.mxu0 0
  %162 = vmatprep.subr.bf16.mxu0 0
  %163 = vmatpush1.bf16.msra.mxu0 0
  %164 = vmatprep.mubr.bf16.mxu0 0
  %165 = vmatmul.mubr.bf16.gmra.mrb[0].mxu0 %v121
  %v166 = vpop.f32.mrb[0].mxu0
  %v167 = vadd.f32 %v72, %v166
  %v168 = vpop.f32.mrb[0].mxu0
  %v169 = vadd.f32 %v76, %v168
  %v170 = vpop.f32.mrb[0].mxu0
  %v171 = vadd.f32 %v72, %v170
  %v172 = vpop.f32.mrb[0].mxu0
  %v173 = vadd.f32 %v76, %v172
  %174 = vmatprep.mubr.bf16.mxu0 0
  %175 = vmatmul.mubr.bf16.gmra.mrb[0].mxu0 %v124
  %v176 = vpop.f32.mrb[0].mxu0
  %v177 = vadd.f32 %v72, %v176
  %v178 = vpop.f32.mrb[0].mxu0
  %v179 = vadd.f32 %v76, %v178
  %v180 = vpop.f32.mrb[0].mxu0
  %v181 = vadd.f32 %v72, %v180
  %v182 = vpop.f32.mrb[0].mxu0
  %v183 = vadd.f32 %v76, %v182
  %184 = vmatprep.mubr.bf16.mxu0 0
  %185 = vmatmul.mubr.bf16.gmra.mrb[0].mxu0 %v127
  %v186 = vpop.f32.mrb[0].mxu0
  %v187 = vadd.f32 %v72, %v186
  %v188 = vpop.f32.mrb[0].mxu0
  %v189 = vadd.f32 %v76, %v188
  %v190 = vpop.f32.mrb[0].mxu0
  %v191 = vadd.f32 %v72, %v190
  %v192 = vpop.f32.mrb[0].mxu0
  %v193 = vadd.f32 %v76, %v192
  %194 = vmatprep.mubr.bf16.mxu0 0
  %195 = vmatmul.mubr.bf16.gmra.mrb[0].mxu0 %v130
  %v196 = vpop.f32.mrb[0].mxu0
  %v197 = vadd.f32 %v72, %v196
  %v198 = vpop.f32.mrb[0].mxu0
  %v199 = vadd.f32 %v76, %v198
  %v200 = vpop.f32.mrb[0].mxu0
  %v201 = vadd.f32 %v72, %v200
  %v202 = vpop.f32.mrb[0].mxu0
  %v203 = vadd.f32 %v76, %v202
  %204 = vdwg.mxu0
  %205 = vst [vmem:[#allocation2] sm:$0xff] %v167
  %206 = vst [vmem:[#allocation2 + $0x8] sm:$0xff] %v169
  %207 = vst [vmem:[#allocation2 + $0x10] sm:$0xff] %v171
  %208 = vst [vmem:[#allocation2 + $0x18] sm:$0xff] %v173
  %209 = vst [vmem:[#allocation2 + $0x20] sm:$0xff] %v177
  %210 = vst [vmem:[#allocation2 + $0x28] sm:$0xff] %v179
  %211 = vst [vmem:[#allocation2 + $0x30] sm:$0xff] %v181
  %212 = vst [vmem:[#allocation2 + $0x38] sm:$0xff] %v183
  %213 = vst [vmem:[#allocation2 + $0x40] sm:$0xff] %v187
  %214 = vst [vmem:[#allocation2 + $0x48] sm:$0xff] %v189
  %215 = vst [vmem:[#allocation2 + $0x50] sm:$0xff] %v191
  %216 = vst [vmem:[#allocation2 + $0x58] sm:$0xff] %v193
  %217 = vst [vmem:[#allocation2 + $0x60] sm:$0xff] %v197
  %218 = vst [vmem:[#allocation2 + $0x68] sm:$0xff] %v199
  %219 = vst [vmem:[#allocation2 + $0x70] sm:$0xff] %v201
  %220 = vst [vmem:[#allocation2 + $0x78] sm:$0xff] %v203
  %v221 = vld [vmem:[%s2] sm:$0xff]
  %v222 = vld [vmem:[%s2 + $0x8] sm:$0xff]
  %v223 = vld [vmem:[%s2 + $0x10] sm:$0xff]
  %v224 = vld [vmem:[%s2 + $0x18] sm:$0xff]
  %v225 = vld [vmem:[%s2 + $0x20] sm:$0xff]
  %v226 = vld [vmem:[%s2 + $0x28] sm:$0xff]
  %v227 = vld [vmem:[%s2 + $0x30] sm:$0xff]
  %v228 = vld [vmem:[%s2 + $0x38] sm:$0xff]
  %v229 = vld [vmem:[%s4] sm:$0x3]
  %v230 = vld [vmem:[#allocation2] ss:$8 sm:$0x3]
  %s231 = scalar_lea.vmem [#allocation2], 16
  %v232 = vld [vmem:[%s231] ss:$8 sm:$0x3]
  %s233 = scalar_lea.vmem [#allocation2], 32
  %v234 = vld [vmem:[%s233] ss:$8 sm:$0x3]
  %s235 = scalar_lea.vmem [#allocation2], 48
  %v236 = vld [vmem:[%s235] ss:$8 sm:$0x3]
  %s237 = scalar_lea.vmem [#allocation2], 64
  %v238 = vld [vmem:[%s237] ss:$8 sm:$0x3]
  %s239 = scalar_lea.vmem [#allocation2], 80
  %v240 = vld [vmem:[%s239] ss:$8 sm:$0x3]
  %s241 = scalar_lea.vmem [#allocation2], 96
  %v242 = vld [vmem:[%s241] ss:$8 sm:$0x3]
  %s243 = scalar_lea.vmem [#allocation2], 112
  %v244 = vld [vmem:[%s243] ss:$8 sm:$0x3]
  %v246 = vlaneseq
  %v247 = vshrl.u32 %v246, 7
  %v248 = vsub.s32 0, %v247
  %v249 = vrot.slane %v229, %v248
  %v250 = vlaneseq
  %v251 = vshrl.u32 %v250, 7
  %v252 = vsub.s32 1, %v251
  %v253 = vrot.slane %v229, %v252
  %v264 = vunpack.c.l.b16 %v221
  %v265 = vunpack.c.h.b16 %v221
  %v266 = vunpack.c.l.b16 %v222
  %v267 = vunpack.c.h.b16 %v222
  %v268 = vunpack.c.l.b16 %v223
  %v269 = vunpack.c.h.b16 %v223
  %v270 = vunpack.c.l.b16 %v224
  %v271 = vunpack.c.h.b16 %v224
  %v272 = vunpack.c.l.b16 %v225
  %v273 = vunpack.c.h.b16 %v225
  %v274 = vunpack.c.l.b16 %v226
  %v275 = vunpack.c.h.b16 %v226
  %v276 = vunpack.c.l.b16 %v227
  %v277 = vunpack.c.h.b16 %v227
  %v278 = vunpack.c.l.b16 %v228
  %v279 = vunpack.c.h.b16 %v228
  %v280 = vpack.c.b16 %v266, %v264
  %v281 = vpack.c.b16 %v267, %v265
  %v282 = vpack.c.b16 %v270, %v268
  %v283 = vpack.c.b16 %v271, %v269
  %v284 = vpack.c.b16 %v274, %v272
  %v285 = vpack.c.b16 %v275, %v273
  %v286 = vpack.c.b16 %v278, %v276
  %v287 = vpack.c.b16 %v279, %v277
  %v297 = vsel %vm119, 0, 0
  %299 = vmatprep.subr.bf16.mxu0 %v281
  %300 = vmatpush1.bf16.msra.mxu0 %v280
  %301 = vmatprep.subr.bf16.mxu0 %v283
  %302 = vmatpush1.bf16.msra.mxu0 %v282
  %303 = vmatprep.subr.bf16.mxu0 %v285
  %304 = vmatpush1.bf16.msra.mxu0 %v284
  %305 = vmatprep.subr.bf16.mxu0 %v287
  %306 = vmatpush1.bf16.msra.mxu0 %v286
  %307 = vmatprep.subr.bf16.mxu0 0
  %308 = vmatpush1.bf16.msra.mxu0 0
  %309 = vmatprep.subr.bf16.mxu0 0
  %310 = vmatpush1.bf16.msra.mxu0 0
  %311 = vmatprep.subr.bf16.mxu0 0
  %312 = vmatpush1.bf16.msra.mxu0 0
  %313 = vmatprep.subr.bf16.mxu0 0
  %314 = vmatpush1.bf16.msra.mxu0 0
  %315 = vmatprep.subr.bf16.mxu0 0
  %316 = vmatpush1.bf16.msra.mxu0 0
  %317 = vmatprep.subr.bf16.mxu0 0
  %318 = vmatpush1.bf16.msra.mxu0 0
  %319 = vmatprep.subr.bf16.mxu0 0
  %320 = vmatpush1.bf16.msra.mxu0 0
  %321 = vmatprep.subr.bf16.mxu0 0
  %322 = vmatpush1.bf16.msra.mxu0 0
  %323 = vmatprep.subr.bf16.mxu0 0
  %324 = vmatpush1.bf16.msra.mxu0 0
  %325 = vmatprep.subr.bf16.mxu0 0
  %326 = vmatpush1.bf16.msra.mxu0 0
  %327 = vmatprep.subr.bf16.mxu0 0
  %328 = vmatpush1.bf16.msra.mxu0 0
  %329 = vmatprep.subr.bf16.mxu0 0
  %330 = vmatpush1.bf16.msra.mxu0 0
  %331 = vmatprep.mubr.bf16.mxu0 0
  %332 = vmatmul.mubr.bf16.gmra.mrb[0].mxu0 %v297
  %v333 = vpop.f32.mrb[0].mxu0
  %v334 = vadd.f32 %v249, %v333
  %v335 = vpop.f32.mrb[0].mxu0
  %v336 = vadd.f32 %v253, %v335
  %v337 = vpop.f32.mrb[0].mxu0
  %v338 = vpop.f32.mrb[0].mxu0
  %339 = vdwg.mxu0
  %v341 = vcombine.high %v334, %v334
  %v343 = vunpack.c.l.s4 1966171168
  %v344 = vunpack.c.0.s8 %v343
  %v345 = vlaneseq
  %v346 = vshrl.u32 %v345, 7
  %v347 = vsub.s32 %v344, %v346
  %v348 = vrot.slane %v334, %v347
  %v350 = vunpack.c.l.s4 1966171168
  %v351 = vunpack.c.0.s8 %v350
  %v352 = vlaneseq
  %v353 = vshrl.u32 %v352, 7
  %v354 = vsub.s32 %v351, %v353
  %v355 = vrot.slane %v341, %v354
  %v356 = vcombine.high %v348, %v348
  %v357 = vcombine.high %v355, %v355
  %v359 = vunpack.c.l.s4 1966171168
  %v360 = vunpack.c.0.s8 %v359
  %v361 = vlaneseq
  %v362 = vshrl.u32 %v361, 7
  %v363 = vsub.s32 %v360, %v362
  %v364 = vrot.slane %v348, %v363
  %v366 = vunpack.c.l.s4 1966171168
  %v367 = vunpack.c.0.s8 %v366
  %v368 = vlaneseq
  %v369 = vshrl.u32 %v368, 7
  %v370 = vsub.s32 %v367, %v369
  %v371 = vrot.slane %v355, %v370
  %v373 = vunpack.c.l.s4 1966171168
  %v374 = vunpack.c.0.s8 %v373
  %v375 = vlaneseq
  %v376 = vshrl.u32 %v375, 7
  %v377 = vsub.s32 %v374, %v376
  %v378 = vrot.slane %v356, %v377
  %v380 = vunpack.c.l.s4 1966171168
  %v381 = vunpack.c.0.s8 %v380
  %v382 = vlaneseq
  %v383 = vshrl.u32 %v382, 7
  %v384 = vsub.s32 %v381, %v383
  %v385 = vrot.slane %v357, %v384
  %v386 = vcombine.high %v364, %v364
  %v387 = vcombine.high %v371, %v371
  %v388 = vcombine.high %v378, %v378
  %v389 = vcombine.high %v385, %v385
  %v398 = vadd.f32 %v230, %v364
  %v399 = vadd.f32 %v232, %v378
  %v400 = vadd.f32 %v234, %v386
  %v401 = vadd.f32 %v236, %v388
  %v402 = vadd.f32 %v238, %v371
  %v403 = vadd.f32 %v240, %v385
  %v404 = vadd.f32 %v242, %v387
  %v405 = vadd.f32 %v244, %v389
  %v406 = vxor.u32 %v398, 2147483648
  %v407 = vxor.u32 %v399, 2147483648
  %v408 = vxor.u32 %v400, 2147483648
  %v409 = vxor.u32 %v401, 2147483648
  %v410 = vxor.u32 %v402, 2147483648
  %v411 = vxor.u32 %v403, 2147483648
  %v412 = vxor.u32 %v404, 2147483648
  %v413 = vxor.u32 %v405, 2147483648
  %v414 = vmul.f32 %v406, 1.442695
  %v415 = vpow.pop %v414
  %v416 = vmul.f32 %v407, 1.442695
  %v417 = vpow.pop %v416
  %v418 = vmul.f32 %v408, 1.442695
  %v419 = vpow.pop %v418
  %v420 = vmul.f32 %v409, 1.442695
  %v421 = vpow.pop %v420
  %v422 = vmul.f32 %v410, 1.442695
  %v423 = vpow.pop %v422
  %v424 = vmul.f32 %v411, 1.442695
  %v425 = vpow.pop %v424
  %v426 = vmul.f32 %v412, 1.442695
  %v427 = vpow.pop %v426
  %v428 = vmul.f32 %v413, 1.442695
  %v429 = vpow.pop %v428
  %v430 = vadd.f32 %v415, 1.0
  %v431 = vadd.f32 %v417, 1.0
  %v432 = vadd.f32 %v419, 1.0
  %v433 = vadd.f32 %v421, 1.0
  %v434 = vadd.f32 %v423, 1.0
  %v435 = vadd.f32 %v425, 1.0
  %v436 = vadd.f32 %v427, 1.0
  %v437 = vadd.f32 %v429, 1.0
  %v438 = vrcp.pop %v430
  %v439 = vmul.f32 1.0, %v438
  %v440 = vrcp.pop %v431
  %v441 = vmul.f32 1.0, %v440
  %v442 = vrcp.pop %v432
  %v443 = vmul.f32 1.0, %v442
  %v444 = vrcp.pop %v433
  %v445 = vmul.f32 1.0, %v444
  %v446 = vrcp.pop %v434
  %v447 = vmul.f32 1.0, %v446
  %v448 = vrcp.pop %v435
  %v449 = vmul.f32 1.0, %v448
  %v450 = vrcp.pop %v436
  %v451 = vmul.f32 1.0, %v450
  %v452 = vrcp.pop %v437
  %v453 = vmul.f32 1.0, %v452
  %v462 = vcombine.low %v439, %v441
  %v463 = vcombine.low %v443, %v445
  %v464 = vcombine.low %v447, %v449
  %v465 = vcombine.low %v451, %v453
  %v467 = vunpack.c.l.s4 1966171168
  %v468 = vunpack.c.0.s8 %v467
  %v469 = vlaneseq
  %v470 = vshrl.u32 %v469, 7
  %v471 = vsub.s32 %v468, %v470
  %v472 = vrot.slane %v462, %v471
  %v474 = vunpack.c.l.s4 1966171168
  %v475 = vunpack.c.0.s8 %v474
  %v476 = vlaneseq
  %v477 = vshrl.u32 %v476, 7
  %v478 = vsub.s32 %v475, %v477
  %v479 = vrot.slane %v463, %v478
  %v481 = vunpack.c.l.s4 1966171168
  %v482 = vunpack.c.0.s8 %v481
  %v483 = vlaneseq
  %v484 = vshrl.u32 %v483, 7
  %v485 = vsub.s32 %v482, %v484
  %v486 = vrot.slane %v464, %v485
  %v488 = vunpack.c.l.s4 1966171168
  %v489 = vunpack.c.0.s8 %v488
  %v490 = vlaneseq
  %v491 = vshrl.u32 %v490, 7
  %v492 = vsub.s32 %v489, %v491
  %v493 = vrot.slane %v465, %v492
  %v494 = vcombine.low %v472, %v479
  %v495 = vcombine.low %v486, %v493
  %v497 = vunpack.c.l.s4 1966171168
  %v498 = vunpack.c.0.s8 %v497
  %v499 = vlaneseq
  %v500 = vshrl.u32 %v499, 7
  %v501 = vsub.s32 %v498, %v500
  %v502 = vrot.slane %v494, %v501
  %v504 = vunpack.c.l.s4 1966171168
  %v505 = vunpack.c.0.s8 %v504
  %v506 = vlaneseq
  %v507 = vshrl.u32 %v506, 7
  %v508 = vsub.s32 %v505, %v507
  %v509 = vrot.slane %v495, %v508
  %v510 = vcombine.low %v502, %v509
  %512 = vrot.lane.b32.xlu0 %v510, 64
  %v513 = vpop.permute.xlu0 %512
  %v515 = vcombine.high %v336, %v336
  %v517 = vunpack.c.l.s4 1966171168
  %v518 = vunpack.c.0.s8 %v517
  %v519 = vlaneseq
  %v520 = vshrl.u32 %v519, 7
  %v521 = vsub.s32 %v518, %v520
  %v522 = vrot.slane %v336, %v521
  %v524 = vunpack.c.l.s4 1966171168
  %v525 = vunpack.c.0.s8 %v524
  %v526 = vlaneseq
  %v527 = vshrl.u32 %v526, 7
  %v528 = vsub.s32 %v525, %v527
  %v529 = vrot.slane %v515, %v528
  %v530 = vcombine.high %v522, %v522
  %v531 = vcombine.high %v529, %v529
  %v533 = vunpack.c.l.s4 1966171168
  %v534 = vunpack.c.0.s8 %v533
  %v535 = vlaneseq
  %v536 = vshrl.u32 %v535, 7
  %v537 = vsub.s32 %v534, %v536
  %v538 = vrot.slane %v522, %v537
  %v540 = vunpack.c.l.s4 1966171168
  %v541 = vunpack.c.0.s8 %v540
  %v542 = vlaneseq
  %v543 = vshrl.u32 %v542, 7
  %v544 = vsub.s32 %v541, %v543
  %v545 = vrot.slane %v529, %v544
  %v547 = vunpack.c.l.s4 1966171168
  %v548 = vunpack.c.0.s8 %v547
  %v549 = vlaneseq
  %v550 = vshrl.u32 %v549, 7
  %v551 = vsub.s32 %v548, %v550
  %v552 = vrot.slane %v530, %v551
  %v554 = vunpack.c.l.s4 1966171168
  %v555 = vunpack.c.0.s8 %v554
  %v556 = vlaneseq
  %v557 = vshrl.u32 %v556, 7
  %v558 = vsub.s32 %v555, %v557
  %v559 = vrot.slane %v531, %v558
  %v560 = vcombine.high %v538, %v538
  %v561 = vcombine.high %v545, %v545
  %v562 = vcombine.high %v552, %v552
  %v563 = vcombine.high %v559, %v559
  %v572 = vmul.f32 %v439, %v538
  %v573 = vmul.f32 %v441, %v552
  %v574 = vmul.f32 %v443, %v560
  %v575 = vmul.f32 %v445, %v562
  %v576 = vmul.f32 %v447, %v545
  %v577 = vmul.f32 %v449, %v559
  %v578 = vmul.f32 %v451, %v561
  %v579 = vmul.f32 %v453, %v563
  %v588 = vrot.slane %v230, 1
  %v589 = vrot.slane %v232, 1
  %v590 = vrot.slane %v234, 1
  %v591 = vrot.slane %v236, 1
  %v592 = vrot.slane %v238, 1
  %v593 = vrot.slane %v240, 1
  %v594 = vrot.slane %v242, 1
  %v595 = vrot.slane %v244, 1
  %v604 = vadd.f32 %v588, %v572
  %v605 = vadd.f32 %v589, %v573
  %v606 = vadd.f32 %v590, %v574
  %v607 = vadd.f32 %v591, %v575
  %v608 = vadd.f32 %v592, %v576
  %v609 = vadd.f32 %v593, %v577
  %v610 = vadd.f32 %v594, %v578
  %v611 = vadd.f32 %v595, %v579
  %v612 = vtanh.pop %v604
  %v613 = vtanh.pop %v605
  %v614 = vtanh.pop %v606
  %v615 = vtanh.pop %v607
  %v616 = vtanh.pop %v608
  %v617 = vtanh.pop %v609
  %v618 = vtanh.pop %v610
  %v619 = vtanh.pop %v611
  %v620 = vsub.f32 1.0, %v513
  %v629 = vcombine.low %v612, %v613
  %v630 = vcombine.low %v614, %v615
  %v631 = vcombine.low %v616, %v617
  %v632 = vcombine.low %v618, %v619
  %v634 = vunpack.c.l.s4 1966171168
  %v635 = vunpack.c.0.s8 %v634
  %v636 = vlaneseq
  %v637 = vshrl.u32 %v636, 7
  %v638 = vsub.s32 %v635, %v637
  %v639 = vrot.slane %v629, %v638
  %v641 = vunpack.c.l.s4 1966171168
  %v642 = vunpack.c.0.s8 %v641
  %v643 = vlaneseq
  %v644 = vshrl.u32 %v643, 7
  %v645 = vsub.s32 %v642, %v644
  %v646 = vrot.slane %v630, %v645
  %v648 = vunpack.c.l.s4 1966171168
  %v649 = vunpack.c.0.s8 %v648
  %v650 = vlaneseq
  %v651 = vshrl.u32 %v650, 7
  %v652 = vsub.s32 %v649, %v651
  %v653 = vrot.slane %v631, %v652
  %v655 = vunpack.c.l.s4 1966171168
  %v656 = vunpack.c.0.s8 %v655
  %v657 = vlaneseq
  %v658 = vshrl.u32 %v657, 7
  %v659 = vsub.s32 %v656, %v658
  %v660 = vrot.slane %v632, %v659
  %v661 = vcombine.low %v639, %v646
  %v662 = vcombine.low %v653, %v660
  %v664 = vunpack.c.l.s4 1966171168
  %v665 = vunpack.c.0.s8 %v664
  %v666 = vlaneseq
  %v667 = vshrl.u32 %v666, 7
  %v668 = vsub.s32 %v665, %v667
  %v669 = vrot.slane %v661, %v668
  %v671 = vunpack.c.l.s4 1966171168
  %v672 = vunpack.c.0.s8 %v671
  %v673 = vlaneseq
  %v674 = vshrl.u32 %v673, 7
  %v675 = vsub.s32 %v672, %v674
  %v676 = vrot.slane %v662, %v675
  %v677 = vcombine.low %v669, %v676
  %v679 = vmul.f32 %v620, %v677
  %v680 = vmul.f32 %v513, 0.0
  %v681 = vadd.f32 %v679, %v680
  %s682 = scalar_lea.vmem [#allocation2], 1
  %v683 = vld [vmem:[%s682] ss:$8 sm:$0x3]
  %s684 = scalar_lea.vmem [#allocation2], 17
  %v685 = vld [vmem:[%s684] ss:$8 sm:$0x3]
  %s686 = scalar_lea.vmem [#allocation2], 33
  %v687 = vld [vmem:[%s686] ss:$8 sm:$0x3]
  %s688 = scalar_lea.vmem [#allocation2], 49
  %v689 = vld [vmem:[%s688] ss:$8 sm:$0x3]
  %s690 = scalar_lea.vmem [#allocation2], 65
  %v691 = vld [vmem:[%s690] ss:$8 sm:$0x3]
  %s692 = scalar_lea.vmem [#allocation2], 81
  %v693 = vld [vmem:[%s692] ss:$8 sm:$0x3]
  %s694 = scalar_lea.vmem [#allocation2], 97
  %v695 = vld [vmem:[%s694] ss:$8 sm:$0x3]
  %s696 = scalar_lea.vmem [#allocation2], 113
  %v697 = vld [vmem:[%s696] ss:$8 sm:$0x3]
  %v698 = vpack.c.bf16 %v681, %v681
  %v700 = vsel %vm119, %v698, 0
  %702 = vmatprep.subr.bf16.mxu0 %v281
  %703 = vmatpush1.bf16.msra.mxu0 %v280
  %704 = vmatprep.subr.bf16.mxu0 %v283
  %705 = vmatpush1.bf16.msra.mxu0 %v282
  %706 = vmatprep.subr.bf16.mxu0 %v285
  %707 = vmatpush1.bf16.msra.mxu0 %v284
  %708 = vmatprep.subr.bf16.mxu0 %v287
  %709 = vmatpush1.bf16.msra.mxu0 %v286
  %710 = vmatprep.subr.bf16.mxu0 0
  %711 = vmatpush1.bf16.msra.mxu0 0
  %712 = vmatprep.subr.bf16.mxu0 0
  %713 = vmatpush1.bf16.msra.mxu0 0
  %714 = vmatprep.subr.bf16.mxu0 0
  %715 = vmatpush1.bf16.msra.mxu0 0
  %716 = vmatprep.subr.bf16.mxu0 0
  %717 = vmatpush1.bf16.msra.mxu0 0
  %718 = vmatprep.subr.bf16.mxu0 0
  %719 = vmatpush1.bf16.msra.mxu0 0
  %720 = vmatprep.subr.bf16.mxu0 0
  %721 = vmatpush1.bf16.msra.mxu0 0
  %722 = vmatprep.subr.bf16.mxu0 0
  %723 = vmatpush1.bf16.msra.mxu0 0
  %724 = vmatprep.subr.bf16.mxu0 0
  %725 = vmatpush1.bf16.msra.mxu0 0
  %726 = vmatprep.subr.bf16.mxu0 0
  %727 = vmatpush1.bf16.msra.mxu0 0
  %728 = vmatprep.subr.bf16.mxu0 0
  %729 = vmatpush1.bf16.msra.mxu0 0
  %730 = vmatprep.subr.bf16.mxu0 0
  %731 = vmatpush1.bf16.msra.mxu0 0
  %732 = vmatprep.subr.bf16.mxu0 0
  %733 = vmatpush1.bf16.msra.mxu0 0
  %734 = vmatprep.mubr.bf16.mxu0 0
  %735 = vmatmul.mubr.bf16.gmra.mrb[0].mxu0 %v700
  %v736 = vpop.f32.mrb[0].mxu0
  %v737 = vadd.f32 %v249, %v736
  %v738 = vpop.f32.mrb[0].mxu0
  %v739 = vadd.f32 %v253, %v738
  %v740 = vpop.f32.mrb[0].mxu0
  %v741 = vpop.f32.mrb[0].mxu0
  %742 = vdwg.mxu0
  %v744 = vcombine.high %v737, %v737
  %v746 = vunpack.c.l.s4 1966171168
  %v747 = vunpack.c.0.s8 %v746
  %v748 = vlaneseq
  %v749 = vshrl.u32 %v748, 7
  %v750 = vsub.s32 %v747, %v749
  %v751 = vrot.slane %v737, %v750
  %v753 = vunpack.c.l.s4 1966171168
  %v754 = vunpack.c.0.s8 %v753
  %v755 = vlaneseq
  %v756 = vshrl.u32 %v755, 7
  %v757 = vsub.s32 %v754, %v756
  %v758 = vrot.slane %v744, %v757
  %v759 = vcombine.high %v751, %v751
  %v760 = vcombine.high %v758, %v758
  %v762 = vunpack.c.l.s4 1966171168
  %v763 = vunpack.c.0.s8 %v762
  %v764 = vlaneseq
  %v765 = vshrl.u32 %v764, 7
  %v766 = vsub.s32 %v763, %v765
  %v767 = vrot.slane %v751, %v766
  %v769 = vunpack.c.l.s4 1966171168
  %v770 = vunpack.c.0.s8 %v769
  %v771 = vlaneseq
  %v772 = vshrl.u32 %v771, 7
  %v773 = vsub.s32 %v770, %v772
  %v774 = vrot.slane %v758, %v773
  %v776 = vunpack.c.l.s4 1966171168
  %v777 = vunpack.c.0.s8 %v776
  %v778 = vlaneseq
  %v779 = vshrl.u32 %v778, 7
  %v780 = vsub.s32 %v777, %v779
  %v781 = vrot.slane %v759, %v780
  %v783 = vunpack.c.l.s4 1966171168
  %v784 = vunpack.c.0.s8 %v783
  %v785 = vlaneseq
  %v786 = vshrl.u32 %v785, 7
  %v787 = vsub.s32 %v784, %v786
  %v788 = vrot.slane %v760, %v787
  %v789 = vcombine.high %v767, %v767
  %v790 = vcombine.high %v774, %v774
  %v791 = vcombine.high %v781, %v781
  %v792 = vcombine.high %v788, %v788
  %v801 = vadd.f32 %v683, %v767
  %v802 = vadd.f32 %v685, %v781
  %v803 = vadd.f32 %v687, %v789
  %v804 = vadd.f32 %v689, %v791
  %v805 = vadd.f32 %v691, %v774
  %v806 = vadd.f32 %v693, %v788
  %v807 = vadd.f32 %v695, %v790
  %v808 = vadd.f32 %v697, %v792
  %v809 = vxor.u32 %v801, 2147483648
  %v810 = vxor.u32 %v802, 2147483648
  %v811 = vxor.u32 %v803, 2147483648
  %v812 = vxor.u32 %v804, 2147483648
  %v813 = vxor.u32 %v805, 2147483648
  %v814 = vxor.u32 %v806, 2147483648
  %v815 = vxor.u32 %v807, 2147483648
  %v816 = vxor.u32 %v808, 2147483648
  %v817 = vmul.f32 %v809, 1.442695
  %v818 = vpow.pop %v817
  %v819 = vmul.f32 %v810, 1.442695
  %v820 = vpow.pop %v819
  %v821 = vmul.f32 %v811, 1.442695
  %v822 = vpow.pop %v821
  %v823 = vmul.f32 %v812, 1.442695
  %v824 = vpow.pop %v823
  %v825 = vmul.f32 %v813, 1.442695
  %v826 = vpow.pop %v825
  %v827 = vmul.f32 %v814, 1.442695
  %v828 = vpow.pop %v827
  %v829 = vmul.f32 %v815, 1.442695
  %v830 = vpow.pop %v829
  %v831 = vmul.f32 %v816, 1.442695
  %v832 = vpow.pop %v831
  %v833 = vadd.f32 %v818, 1.0
  %v834 = vadd.f32 %v820, 1.0
  %v835 = vadd.f32 %v822, 1.0
  %v836 = vadd.f32 %v824, 1.0
  %v837 = vadd.f32 %v826, 1.0
  %v838 = vadd.f32 %v828, 1.0
  %v839 = vadd.f32 %v830, 1.0
  %v840 = vadd.f32 %v832, 1.0
  %v841 = vrcp.pop %v833
  %v842 = vmul.f32 1.0, %v841
  %v843 = vrcp.pop %v834
  %v844 = vmul.f32 1.0, %v843
  %v845 = vrcp.pop %v835
  %v846 = vmul.f32 1.0, %v845
  %v847 = vrcp.pop %v836
  %v848 = vmul.f32 1.0, %v847
  %v849 = vrcp.pop %v837
  %v850 = vmul.f32 1.0, %v849
  %v851 = vrcp.pop %v838
  %v852 = vmul.f32 1.0, %v851
  %v853 = vrcp.pop %v839
  %v854 = vmul.f32 1.0, %v853
  %v855 = vrcp.pop %v840
  %v856 = vmul.f32 1.0, %v855
  %v865 = vcombine.low %v842, %v844
  %v866 = vcombine.low %v846, %v848
  %v867 = vcombine.low %v850, %v852
  %v868 = vcombine.low %v854, %v856
  %v870 = vunpack.c.l.s4 1966171168
  %v871 = vunpack.c.0.s8 %v870
  %v872 = vlaneseq
  %v873 = vshrl.u32 %v872, 7
  %v874 = vsub.s32 %v871, %v873
  %v875 = vrot.slane %v865, %v874
  %v877 = vunpack.c.l.s4 1966171168
  %v878 = vunpack.c.0.s8 %v877
  %v879 = vlaneseq
  %v880 = vshrl.u32 %v879, 7
  %v881 = vsub.s32 %v878, %v880
  %v882 = vrot.slane %v866, %v881
  %v884 = vunpack.c.l.s4 1966171168
  %v885 = vunpack.c.0.s8 %v884
  %v886 = vlaneseq
  %v887 = vshrl.u32 %v886, 7
  %v888 = vsub.s32 %v885, %v887
  %v889 = vrot.slane %v867, %v888
  %v891 = vunpack.c.l.s4 1966171168
  %v892 = vunpack.c.0.s8 %v891
  %v893 = vlaneseq
  %v894 = vshrl.u32 %v893, 7
  %v895 = vsub.s32 %v892, %v894
  %v896 = vrot.slane %v868, %v895
  %v897 = vcombine.low %v875, %v882
  %v898 = vcombine.low %v889, %v896
  %v900 = vunpack.c.l.s4 1966171168
  %v901 = vunpack.c.0.s8 %v900
  %v902 = vlaneseq
  %v903 = vshrl.u32 %v902, 7
  %v904 = vsub.s32 %v901, %v903
  %v905 = vrot.slane %v897, %v904
  %v907 = vunpack.c.l.s4 1966171168
  %v908 = vunpack.c.0.s8 %v907
  %v909 = vlaneseq
  %v910 = vshrl.u32 %v909, 7
  %v911 = vsub.s32 %v908, %v910
  %v912 = vrot.slane %v898, %v911
  %v913 = vcombine.low %v905, %v912
  %915 = vrot.lane.b32.xlu0 %v913, 64
  %v916 = vpop.permute.xlu0 %915
  %v918 = vcombine.high %v739, %v739
  %v920 = vunpack.c.l.s4 1966171168
  %v921 = vunpack.c.0.s8 %v920
  %v922 = vlaneseq
  %v923 = vshrl.u32 %v922, 7
  %v924 = vsub.s32 %v921, %v923
  %v925 = vrot.slane %v739, %v924
  %v927 = vunpack.c.l.s4 1966171168
  %v928 = vunpack.c.0.s8 %v927
  %v929 = vlaneseq
  %v930 = vshrl.u32 %v929, 7
  %v931 = vsub.s32 %v928, %v930
  %v932 = vrot.slane %v918, %v931
  %v933 = vcombine.high %v925, %v925
  %v934 = vcombine.high %v932, %v932
  %v936 = vunpack.c.l.s4 1966171168
  %v937 = vunpack.c.0.s8 %v936
  %v938 = vlaneseq
  %v939 = vshrl.u32 %v938, 7
  %v940 = vsub.s32 %v937, %v939
  %v941 = vrot.slane %v925, %v940
  %v943 = vunpack.c.l.s4 1966171168
  %v944 = vunpack.c.0.s8 %v943
  %v945 = vlaneseq
  %v946 = vshrl.u32 %v945, 7
  %v947 = vsub.s32 %v944, %v946
  %v948 = vrot.slane %v932, %v947
  %v950 = vunpack.c.l.s4 1966171168
  %v951 = vunpack.c.0.s8 %v950
  %v952 = vlaneseq
  %v953 = vshrl.u32 %v952, 7
  %v954 = vsub.s32 %v951, %v953
  %v955 = vrot.slane %v933, %v954
  %v957 = vunpack.c.l.s4 1966171168
  %v958 = vunpack.c.0.s8 %v957
  %v959 = vlaneseq
  %v960 = vshrl.u32 %v959, 7
  %v961 = vsub.s32 %v958, %v960
  %v962 = vrot.slane %v934, %v961
  %v963 = vcombine.high %v941, %v941
  %v964 = vcombine.high %v948, %v948
  %v965 = vcombine.high %v955, %v955
  %v966 = vcombine.high %v962, %v962
  %v975 = vmul.f32 %v842, %v941
  %v976 = vmul.f32 %v844, %v955
  %v977 = vmul.f32 %v846, %v963
  %v978 = vmul.f32 %v848, %v965
  %v979 = vmul.f32 %v850, %v948
  %v980 = vmul.f32 %v852, %v962
  %v981 = vmul.f32 %v854, %v964
  %v982 = vmul.f32 %v856, %v966
  %v991 = vrot.slane %v683, 1
  %v992 = vrot.slane %v685, 1
  %v993 = vrot.slane %v687, 1
  %v994 = vrot.slane %v689, 1
  %v995 = vrot.slane %v691, 1
  %v996 = vrot.slane %v693, 1
  %v997 = vrot.slane %v695, 1
  %v998 = vrot.slane %v697, 1
  %v1007 = vadd.f32 %v991, %v975
  %v1008 = vadd.f32 %v992, %v976
  %v1009 = vadd.f32 %v993, %v977
  %v1010 = vadd.f32 %v994, %v978
  %v1011 = vadd.f32 %v995, %v979
  %v1012 = vadd.f32 %v996, %v980
  %v1013 = vadd.f32 %v997, %v981
  %v1014 = vadd.f32 %v998, %v982
  %v1015 = vtanh.pop %v1007
  %v1016 = vtanh.pop %v1008
  %v1017 = vtanh.pop %v1009
  %v1018 = vtanh.pop %v1010
  %v1019 = vtanh.pop %v1011
  %v1020 = vtanh.pop %v1012
  %v1021 = vtanh.pop %v1013
  %v1022 = vtanh.pop %v1014
  %v1023 = vsub.f32 1.0, %v916
  %v1032 = vcombine.low %v1015, %v1016
  %v1033 = vcombine.low %v1017, %v1018
  %v1034 = vcombine.low %v1019, %v1020
  %v1035 = vcombine.low %v1021, %v1022
  %v1037 = vunpack.c.l.s4 1966171168
  %v1038 = vunpack.c.0.s8 %v1037
  %v1039 = vlaneseq
  %v1040 = vshrl.u32 %v1039, 7
  %v1041 = vsub.s32 %v1038, %v1040
  %v1042 = vrot.slane %v1032, %v1041
  %v1044 = vunpack.c.l.s4 1966171168
  %v1045 = vunpack.c.0.s8 %v1044
  %v1046 = vlaneseq
  %v1047 = vshrl.u32 %v1046, 7
  %v1048 = vsub.s32 %v1045, %v1047
  %v1049 = vrot.slane %v1033, %v1048
  %v1051 = vunpack.c.l.s4 1966171168
  %v1052 = vunpack.c.0.s8 %v1051
  %v1053 = vlaneseq
  %v1054 = vshrl.u32 %v1053, 7
  %v1055 = vsub.s32 %v1052, %v1054
  %v1056 = vrot.slane %v1034, %v1055
  %v1058 = vunpack.c.l.s4 1966171168
  %v1059 = vunpack.c.0.s8 %v1058
  %v1060 = vlaneseq
  %v1061 = vshrl.u32 %v1060, 7
  %v1062 = vsub.s32 %v1059, %v1061
  %v1063 = vrot.slane %v1035, %v1062
  %v1064 = vcombine.low %v1042, %v1049
  %v1065 = vcombine.low %v1056, %v1063
  %v1067 = vunpack.c.l.s4 1966171168
  %v1068 = vunpack.c.0.s8 %v1067
  %v1069 = vlaneseq
  %v1070 = vshrl.u32 %v1069, 7
  %v1071 = vsub.s32 %v1068, %v1070
  %v1072 = vrot.slane %v1064, %v1071
  %v1074 = vunpack.c.l.s4 1966171168
  %v1075 = vunpack.c.0.s8 %v1074
  %v1076 = vlaneseq
  %v1077 = vshrl.u32 %v1076, 7
  %v1078 = vsub.s32 %v1075, %v1077
  %v1079 = vrot.slane %v1065, %v1078
  %v1080 = vcombine.low %v1072, %v1079
  %v1082 = vmul.f32 %v1023, %v1080
  %v1083 = vmul.f32 %v916, %v681
  %v1084 = vadd.f32 %v1082, %v1083
  %s1085 = scalar_lea.vmem [#allocation2], 2
  %v1086 = vld [vmem:[%s1085] ss:$8 sm:$0x3]
  %s1087 = scalar_lea.vmem [#allocation2], 18
  %v1088 = vld [vmem:[%s1087] ss:$8 sm:$0x3]
  %s1089 = scalar_lea.vmem [#allocation2], 34
  %v1090 = vld [vmem:[%s1089] ss:$8 sm:$0x3]
  %s1091 = scalar_lea.vmem [#allocation2], 50
  %v1092 = vld [vmem:[%s1091] ss:$8 sm:$0x3]
  %s1093 = scalar_lea.vmem [#allocation2], 66
  %v1094 = vld [vmem:[%s1093] ss:$8 sm:$0x3]
  %s1095 = scalar_lea.vmem [#allocation2], 82
  %v1096 = vld [vmem:[%s1095] ss:$8 sm:$0x3]
  %s1097 = scalar_lea.vmem [#allocation2], 98
  %v1098 = vld [vmem:[%s1097] ss:$8 sm:$0x3]
  %s1099 = scalar_lea.vmem [#allocation2], 114
  %v1100 = vld [vmem:[%s1099] ss:$8 sm:$0x3]
  %v1101 = vpack.c.bf16 %v1084, %v1084
  %v1103 = vsel %vm119, %v1101, 0
  %1105 = vmatprep.subr.bf16.mxu0 %v281
  %1106 = vmatpush1.bf16.msra.mxu0 %v280
  %1107 = vmatprep.subr.bf16.mxu0 %v283
  %1108 = vmatpush1.bf16.msra.mxu0 %v282
  %1109 = vmatprep.subr.bf16.mxu0 %v285
  %1110 = vmatpush1.bf16.msra.mxu0 %v284
  %1111 = vmatprep.subr.bf16.mxu0 %v287
  %1112 = vmatpush1.bf16.msra.mxu0 %v286
  %1113 = vmatprep.subr.bf16.mxu0 0
  %1114 = vmatpush1.bf16.msra.mxu0 0
  %1115 = vmatprep.subr.bf16.mxu0 0
  %1116 = vmatpush1.bf16.msra.mxu0 0
  %1117 = vmatprep.subr.bf16.mxu0 0
  %1118 = vmatpush1.bf16.msra.mxu0 0
  %1119 = vmatprep.subr.bf16.mxu0 0
  %1120 = vmatpush1.bf16.msra.mxu0 0
  %1121 = vmatprep.subr.bf16.mxu0 0
  %1122 = vmatpush1.bf16.msra.mxu0 0
  %1123 = vmatprep.subr.bf16.mxu0 0
  %1124 = vmatpush1.bf16.msra.mxu0 0
  %1125 = vmatprep.subr.bf16.mxu0 0
  %1126 = vmatpush1.bf16.msra.mxu0 0
  %1127 = vmatprep.subr.bf16.mxu0 0
  %1128 = vmatpush1.bf16.msra.mxu0 0
  %1129 = vmatprep.subr.bf16.mxu0 0
  %1130 = vmatpush1.bf16.msra.mxu0 0
  %1131 = vmatprep.subr.bf16.mxu0 0
  %1132 = vmatpush1.bf16.msra.mxu0 0
  %1133 = vmatprep.subr.bf16.mxu0 0
  %1134 = vmatpush1.bf16.msra.mxu0 0
  %1135 = vmatprep.subr.bf16.mxu0 0
  %1136 = vmatpush1.bf16.msra.mxu0 0
  %1137 = vmatprep.mubr.bf16.mxu0 0
  %1138 = vmatmul.mubr.bf16.gmra.mrb[0].mxu0 %v1103
  %v1139 = vpop.f32.mrb[0].mxu0
  %v1140 = vadd.f32 %v249, %v1139
  %v1141 = vpop.f32.mrb[0].mxu0
  %v1142 = vadd.f32 %v253, %v1141
  %v1143 = vpop.f32.mrb[0].mxu0
  %v1144 = vpop.f32.mrb[0].mxu0
  %1145 = vdwg.mxu0
  %v1147 = vcombine.high %v1140, %v1140
  %v1149 = vunpack.c.l.s4 1966171168
  %v1150 = vunpack.c.0.s8 %v1149
  %v1151 = vlaneseq
  %v1152 = vshrl.u32 %v1151, 7
  %v1153 = vsub.s32 %v1150, %v1152
  %v1154 = vrot.slane %v1140, %v1153
  %v1156 = vunpack.c.l.s4 1966171168
  %v1157 = vunpack.c.0.s8 %v1156
  %v1158 = vlaneseq
  %v1159 = vshrl.u32 %v1158, 7
  %v1160 = vsub.s32 %v1157, %v1159
  %v1161 = vrot.slane %v1147, %v1160
  %v1162 = vcombine.high %v1154, %v1154
  %v1163 = vcombine.high %v1161, %v1161
  %v1165 = vunpack.c.l.s4 1966171168
  %v1166 = vunpack.c.0.s8 %v1165
  %v1167 = vlaneseq
  %v1168 = vshrl.u32 %v1167, 7
  %v1169 = vsub.s32 %v1166, %v1168
  %v1170 = vrot.slane %v1154, %v1169
  %v1172 = vunpack.c.l.s4 1966171168
  %v1173 = vunpack.c.0.s8 %v1172
  %v1174 = vlaneseq
  %v1175 = vshrl.u32 %v1174, 7
  %v1176 = vsub.s32 %v1173, %v1175
  %v1177 = vrot.slane %v1161, %v1176
  %v1179 = vunpack.c.l.s4 1966171168
  %v1180 = vunpack.c.0.s8 %v1179
  %v1181 = vlaneseq
  %v1182 = vshrl.u32 %v1181, 7
  %v1183 = vsub.s32 %v1180, %v1182
  %v1184 = vrot.slane %v1162, %v1183
  %v1186 = vunpack.c.l.s4 1966171168
  %v1187 = vunpack.c.0.s8 %v1186
  %v1188 = vlaneseq
  %v1189 = vshrl.u32 %v1188, 7
  %v1190 = vsub.s32 %v1187, %v1189
  %v1191 = vrot.slane %v1163, %v1190
  %v1192 = vcombine.high %v1170, %v1170
  %v1193 = vcombine.high %v1177, %v1177
  %v1194 = vcombine.high %v1184, %v1184
  %v1195 = vcombine.high %v1191, %v1191
  %v1204 = vadd.f32 %v1086, %v1170
  %v1205 = vadd.f32 %v1088, %v1184
  %v1206 = vadd.f32 %v1090, %v1192
  %v1207 = vadd.f32 %v1092, %v1194
  %v1208 = vadd.f32 %v1094, %v1177
  %v1209 = vadd.f32 %v1096, %v1191
  %v1210 = vadd.f32 %v1098, %v1193
  %v1211 = vadd.f32 %v1100, %v1195
  %v1212 = vxor.u32 %v1204, 2147483648
  %v1213 = vxor.u32 %v1205, 2147483648
  %v1214 = vxor.u32 %v1206, 2147483648
  %v1215 = vxor.u32 %v1207, 2147483648
  %v1216 = vxor.u32 %v1208, 2147483648
  %v1217 = vxor.u32 %v1209, 2147483648
  %v1218 = vxor.u32 %v1210, 2147483648
  %v1219 = vxor.u32 %v1211, 2147483648
  %v1220 = vmul.f32 %v1212, 1.442695
  %v1221 = vpow.pop %v1220
  %v1222 = vmul.f32 %v1213, 1.442695
  %v1223 = vpow.pop %v1222
  %v1224 = vmul.f32 %v1214, 1.442695
  %v1225 = vpow.pop %v1224
  %v1226 = vmul.f32 %v1215, 1.442695
  %v1227 = vpow.pop %v1226
  %v1228 = vmul.f32 %v1216, 1.442695
  %v1229 = vpow.pop %v1228
  %v1230 = vmul.f32 %v1217, 1.442695
  %v1231 = vpow.pop %v1230
  %v1232 = vmul.f32 %v1218, 1.442695
  %v1233 = vpow.pop %v1232
  %v1234 = vmul.f32 %v1219, 1.442695
  %v1235 = vpow.pop %v1234
  %v1236 = vadd.f32 %v1221, 1.0
  %v1237 = vadd.f32 %v1223, 1.0
  %v1238 = vadd.f32 %v1225, 1.0
  %v1239 = vadd.f32 %v1227, 1.0
  %v1240 = vadd.f32 %v1229, 1.0
  %v1241 = vadd.f32 %v1231, 1.0
  %v1242 = vadd.f32 %v1233, 1.0
  %v1243 = vadd.f32 %v1235, 1.0
  %v1244 = vrcp.pop %v1236
  %v1245 = vmul.f32 1.0, %v1244
  %v1246 = vrcp.pop %v1237
  %v1247 = vmul.f32 1.0, %v1246
  %v1248 = vrcp.pop %v1238
  %v1249 = vmul.f32 1.0, %v1248
  %v1250 = vrcp.pop %v1239
  %v1251 = vmul.f32 1.0, %v1250
  %v1252 = vrcp.pop %v1240
  %v1253 = vmul.f32 1.0, %v1252
  %v1254 = vrcp.pop %v1241
  %v1255 = vmul.f32 1.0, %v1254
  %v1256 = vrcp.pop %v1242
  %v1257 = vmul.f32 1.0, %v1256
  %v1258 = vrcp.pop %v1243
  %v1259 = vmul.f32 1.0, %v1258
  %v1268 = vcombine.low %v1245, %v1247
  %v1269 = vcombine.low %v1249, %v1251
  %v1270 = vcombine.low %v1253, %v1255
  %v1271 = vcombine.low %v1257, %v1259
  %v1273 = vunpack.c.l.s4 1966171168
  %v1274 = vunpack.c.0.s8 %v1273
  %v1275 = vlaneseq
  %v1276 = vshrl.u32 %v1275, 7
  %v1277 = vsub.s32 %v1274, %v1276
  %v1278 = vrot.slane %v1268, %v1277
  %v1280 = vunpack.c.l.s4 1966171168
  %v1281 = vunpack.c.0.s8 %v1280
  %v1282 = vlaneseq
  %v1283 = vshrl.u32 %v1282, 7
  %v1284 = vsub.s32 %v1281, %v1283
  %v1285 = vrot.slane %v1269, %v1284
  %v1287 = vunpack.c.l.s4 1966171168
  %v1288 = vunpack.c.0.s8 %v1287
  %v1289 = vlaneseq
  %v1290 = vshrl.u32 %v1289, 7
  %v1291 = vsub.s32 %v1288, %v1290
  %v1292 = vrot.slane %v1270, %v1291
  %v1294 = vunpack.c.l.s4 1966171168
  %v1295 = vunpack.c.0.s8 %v1294
  %v1296 = vlaneseq
  %v1297 = vshrl.u32 %v1296, 7
  %v1298 = vsub.s32 %v1295, %v1297
  %v1299 = vrot.slane %v1271, %v1298
  %v1300 = vcombine.low %v1278, %v1285
  %v1301 = vcombine.low %v1292, %v1299
  %v1303 = vunpack.c.l.s4 1966171168
  %v1304 = vunpack.c.0.s8 %v1303
  %v1305 = vlaneseq
  %v1306 = vshrl.u32 %v1305, 7
  %v1307 = vsub.s32 %v1304, %v1306
  %v1308 = vrot.slane %v1300, %v1307
  %v1310 = vunpack.c.l.s4 1966171168
  %v1311 = vunpack.c.0.s8 %v1310
  %v1312 = vlaneseq
  %v1313 = vshrl.u32 %v1312, 7
  %v1314 = vsub.s32 %v1311, %v1313
  %v1315 = vrot.slane %v1301, %v1314
  %v1316 = vcombine.low %v1308, %v1315
  %1318 = vrot.lane.b32.xlu0 %v1316, 64
  %v1319 = vpop.permute.xlu0 %1318
  %v1321 = vcombine.high %v1142, %v1142
  %v1323 = vunpack.c.l.s4 1966171168
  %v1324 = vunpack.c.0.s8 %v1323
  %v1325 = vlaneseq
  %v1326 = vshrl.u32 %v1325, 7
  %v1327 = vsub.s32 %v1324, %v1326
  %v1328 = vrot.slane %v1142, %v1327
  %v1330 = vunpack.c.l.s4 1966171168
  %v1331 = vunpack.c.0.s8 %v1330
  %v1332 = vlaneseq
  %v1333 = vshrl.u32 %v1332, 7
  %v1334 = vsub.s32 %v1331, %v1333
  %v1335 = vrot.slane %v1321, %v1334
  %v1336 = vcombine.high %v1328, %v1328
  %v1337 = vcombine.high %v1335, %v1335
  %v1339 = vunpack.c.l.s4 1966171168
  %v1340 = vunpack.c.0.s8 %v1339
  %v1341 = vlaneseq
  %v1342 = vshrl.u32 %v1341, 7
  %v1343 = vsub.s32 %v1340, %v1342
  %v1344 = vrot.slane %v1328, %v1343
  %v1346 = vunpack.c.l.s4 1966171168
  %v1347 = vunpack.c.0.s8 %v1346
  %v1348 = vlaneseq
  %v1349 = vshrl.u32 %v1348, 7
  %v1350 = vsub.s32 %v1347, %v1349
  %v1351 = vrot.slane %v1335, %v1350
  %v1353 = vunpack.c.l.s4 1966171168
  %v1354 = vunpack.c.0.s8 %v1353
  %v1355 = vlaneseq
  %v1356 = vshrl.u32 %v1355, 7
  %v1357 = vsub.s32 %v1354, %v1356
  %v1358 = vrot.slane %v1336, %v1357
  %v1360 = vunpack.c.l.s4 1966171168
  %v1361 = vunpack.c.0.s8 %v1360
  %v1362 = vlaneseq
  %v1363 = vshrl.u32 %v1362, 7
  %v1364 = vsub.s32 %v1361, %v1363
  %v1365 = vrot.slane %v1337, %v1364
  %v1366 = vcombine.high %v1344, %v1344
  %v1367 = vcombine.high %v1351, %v1351
  %v1368 = vcombine.high %v1358, %v1358
  %v1369 = vcombine.high %v1365, %v1365
  %v1378 = vmul.f32 %v1245, %v1344
  %v1379 = vmul.f32 %v1247, %v1358
  %v1380 = vmul.f32 %v1249, %v1366
  %v1381 = vmul.f32 %v1251, %v1368
  %v1382 = vmul.f32 %v1253, %v1351
  %v1383 = vmul.f32 %v1255, %v1365
  %v1384 = vmul.f32 %v1257, %v1367
  %v1385 = vmul.f32 %v1259, %v1369
  %v1394 = vrot.slane %v1086, 1
  %v1395 = vrot.slane %v1088, 1
  %v1396 = vrot.slane %v1090, 1
  %v1397 = vrot.slane %v1092, 1
  %v1398 = vrot.slane %v1094, 1
  %v1399 = vrot.slane %v1096, 1
  %v1400 = vrot.slane %v1098, 1
  %v1401 = vrot.slane %v1100, 1
  %v1410 = vadd.f32 %v1394, %v1378
  %v1411 = vadd.f32 %v1395, %v1379
  %v1412 = vadd.f32 %v1396, %v1380
  %v1413 = vadd.f32 %v1397, %v1381
  %v1414 = vadd.f32 %v1398, %v1382
  %v1415 = vadd.f32 %v1399, %v1383
  %v1416 = vadd.f32 %v1400, %v1384
  %v1417 = vadd.f32 %v1401, %v1385
  %v1418 = vtanh.pop %v1410
  %v1419 = vtanh.pop %v1411
  %v1420 = vtanh.pop %v1412
  %v1421 = vtanh.pop %v1413
  %v1422 = vtanh.pop %v1414
  %v1423 = vtanh.pop %v1415
  %v1424 = vtanh.pop %v1416
  %v1425 = vtanh.pop %v1417
  %v1426 = vsub.f32 1.0, %v1319
  %v1435 = vcombine.low %v1418, %v1419
  %v1436 = vcombine.low %v1420, %v1421
  %v1437 = vcombine.low %v1422, %v1423
  %v1438 = vcombine.low %v1424, %v1425
  %v1440 = vunpack.c.l.s4 1966171168
  %v1441 = vunpack.c.0.s8 %v1440
  %v1442 = vlaneseq
  %v1443 = vshrl.u32 %v1442, 7
  %v1444 = vsub.s32 %v1441, %v1443
  %v1445 = vrot.slane %v1435, %v1444
  %v1447 = vunpack.c.l.s4 1966171168
  %v1448 = vunpack.c.0.s8 %v1447
  %v1449 = vlaneseq
  %v1450 = vshrl.u32 %v1449, 7
  %v1451 = vsub.s32 %v1448, %v1450
  %v1452 = vrot.slane %v1436, %v1451
  %v1454 = vunpack.c.l.s4 1966171168
  %v1455 = vunpack.c.0.s8 %v1454
  %v1456 = vlaneseq
  %v1457 = vshrl.u32 %v1456, 7
  %v1458 = vsub.s32 %v1455, %v1457
  %v1459 = vrot.slane %v1437, %v1458
  %v1461 = vunpack.c.l.s4 1966171168
  %v1462 = vunpack.c.0.s8 %v1461
  %v1463 = vlaneseq
  %v1464 = vshrl.u32 %v1463, 7
  %v1465 = vsub.s32 %v1462, %v1464
  %v1466 = vrot.slane %v1438, %v1465
  %v1467 = vcombine.low %v1445, %v1452
  %v1468 = vcombine.low %v1459, %v1466
  %v1470 = vunpack.c.l.s4 1966171168
  %v1471 = vunpack.c.0.s8 %v1470
  %v1472 = vlaneseq
  %v1473 = vshrl.u32 %v1472, 7
  %v1474 = vsub.s32 %v1471, %v1473
  %v1475 = vrot.slane %v1467, %v1474
  %v1477 = vunpack.c.l.s4 1966171168
  %v1478 = vunpack.c.0.s8 %v1477
  %v1479 = vlaneseq
  %v1480 = vshrl.u32 %v1479, 7
  %v1481 = vsub.s32 %v1478, %v1480
  %v1482 = vrot.slane %v1468, %v1481
  %v1483 = vcombine.low %v1475, %v1482
  %v1485 = vmul.f32 %v1426, %v1483
  %v1486 = vmul.f32 %v1319, %v1084
  %v1487 = vadd.f32 %v1485, %v1486
  %s1488 = scalar_lea.vmem [#allocation2], 3
  %v1489 = vld [vmem:[%s1488] ss:$8 sm:$0x3]
  %s1490 = scalar_lea.vmem [#allocation2], 19
  %v1491 = vld [vmem:[%s1490] ss:$8 sm:$0x3]
  %s1492 = scalar_lea.vmem [#allocation2], 35
  %v1493 = vld [vmem:[%s1492] ss:$8 sm:$0x3]
  %s1494 = scalar_lea.vmem [#allocation2], 51
  %v1495 = vld [vmem:[%s1494] ss:$8 sm:$0x3]
  %s1496 = scalar_lea.vmem [#allocation2], 67
  %v1497 = vld [vmem:[%s1496] ss:$8 sm:$0x3]
  %s1498 = scalar_lea.vmem [#allocation2], 83
  %v1499 = vld [vmem:[%s1498] ss:$8 sm:$0x3]
  %s1500 = scalar_lea.vmem [#allocation2], 99
  %v1501 = vld [vmem:[%s1500] ss:$8 sm:$0x3]
  %s1502 = scalar_lea.vmem [#allocation2], 115
  %v1503 = vld [vmem:[%s1502] ss:$8 sm:$0x3]
  %v1504 = vpack.c.bf16 %v1487, %v1487
  %v1506 = vsel %vm119, %v1504, 0
  %1508 = vmatprep.subr.bf16.mxu0 %v281
  %1509 = vmatpush1.bf16.msra.mxu0 %v280
  %1510 = vmatprep.subr.bf16.mxu0 %v283
  %1511 = vmatpush1.bf16.msra.mxu0 %v282
  %1512 = vmatprep.subr.bf16.mxu0 %v285
  %1513 = vmatpush1.bf16.msra.mxu0 %v284
  %1514 = vmatprep.subr.bf16.mxu0 %v287
  %1515 = vmatpush1.bf16.msra.mxu0 %v286
  %1516 = vmatprep.subr.bf16.mxu0 0
  %1517 = vmatpush1.bf16.msra.mxu0 0
  %1518 = vmatprep.subr.bf16.mxu0 0
  %1519 = vmatpush1.bf16.msra.mxu0 0
  %1520 = vmatprep.subr.bf16.mxu0 0
  %1521 = vmatpush1.bf16.msra.mxu0 0
  %1522 = vmatprep.subr.bf16.mxu0 0
  %1523 = vmatpush1.bf16.msra.mxu0 0
  %1524 = vmatprep.subr.bf16.mxu0 0
  %1525 = vmatpush1.bf16.msra.mxu0 0
  %1526 = vmatprep.subr.bf16.mxu0 0
  %1527 = vmatpush1.bf16.msra.mxu0 0
  %1528 = vmatprep.subr.bf16.mxu0 0
  %1529 = vmatpush1.bf16.msra.mxu0 0
  %1530 = vmatprep.subr.bf16.mxu0 0
  %1531 = vmatpush1.bf16.msra.mxu0 0
  %1532 = vmatprep.subr.bf16.mxu0 0
  %1533 = vmatpush1.bf16.msra.mxu0 0
  %1534 = vmatprep.subr.bf16.mxu0 0
  %1535 = vmatpush1.bf16.msra.mxu0 0
  %1536 = vmatprep.subr.bf16.mxu0 0
  %1537 = vmatpush1.bf16.msra.mxu0 0
  %1538 = vmatprep.subr.bf16.mxu0 0
  %1539 = vmatpush1.bf16.msra.mxu0 0
  %1540 = vmatprep.mubr.bf16.mxu0 0
  %1541 = vmatmul.mubr.bf16.gmra.mrb[0].mxu0 %v1506
  %v1542 = vpop.f32.mrb[0].mxu0
  %v1543 = vadd.f32 %v249, %v1542
  %v1544 = vpop.f32.mrb[0].mxu0
  %v1545 = vadd.f32 %v253, %v1544
  %v1546 = vpop.f32.mrb[0].mxu0
  %v1547 = vpop.f32.mrb[0].mxu0
  %1548 = vdwg.mxu0
  %v1550 = vcombine.high %v1543, %v1543
  %v1552 = vunpack.c.l.s4 1966171168
  %v1553 = vunpack.c.0.s8 %v1552
  %v1554 = vlaneseq
  %v1555 = vshrl.u32 %v1554, 7
  %v1556 = vsub.s32 %v1553, %v1555
  %v1557 = vrot.slane %v1543, %v1556
  %v1559 = vunpack.c.l.s4 1966171168
  %v1560 = vunpack.c.0.s8 %v1559
  %v1561 = vlaneseq
  %v1562 = vshrl.u32 %v1561, 7
  %v1563 = vsub.s32 %v1560, %v1562
  %v1564 = vrot.slane %v1550, %v1563
  %v1565 = vcombine.high %v1557, %v1557
  %v1566 = vcombine.high %v1564, %v1564
  %v1568 = vunpack.c.l.s4 1966171168
  %v1569 = vunpack.c.0.s8 %v1568
  %v1570 = vlaneseq
  %v1571 = vshrl.u32 %v1570, 7
  %v1572 = vsub.s32 %v1569, %v1571
  %v1573 = vrot.slane %v1557, %v1572
  %v1575 = vunpack.c.l.s4 1966171168
  %v1576 = vunpack.c.0.s8 %v1575
  %v1577 = vlaneseq
  %v1578 = vshrl.u32 %v1577, 7
  %v1579 = vsub.s32 %v1576, %v1578
  %v1580 = vrot.slane %v1564, %v1579
  %v1582 = vunpack.c.l.s4 1966171168
  %v1583 = vunpack.c.0.s8 %v1582
  %v1584 = vlaneseq
  %v1585 = vshrl.u32 %v1584, 7
  %v1586 = vsub.s32 %v1583, %v1585
  %v1587 = vrot.slane %v1565, %v1586
  %v1589 = vunpack.c.l.s4 1966171168
  %v1590 = vunpack.c.0.s8 %v1589
  %v1591 = vlaneseq
  %v1592 = vshrl.u32 %v1591, 7
  %v1593 = vsub.s32 %v1590, %v1592
  %v1594 = vrot.slane %v1566, %v1593
  %v1595 = vcombine.high %v1573, %v1573
  %v1596 = vcombine.high %v1580, %v1580
  %v1597 = vcombine.high %v1587, %v1587
  %v1598 = vcombine.high %v1594, %v1594
  %v1607 = vadd.f32 %v1489, %v1573
  %v1608 = vadd.f32 %v1491, %v1587
  %v1609 = vadd.f32 %v1493, %v1595
  %v1610 = vadd.f32 %v1495, %v1597
  %v1611 = vadd.f32 %v1497, %v1580
  %v1612 = vadd.f32 %v1499, %v1594
  %v1613 = vadd.f32 %v1501, %v1596
  %v1614 = vadd.f32 %v1503, %v1598
  %v1615 = vxor.u32 %v1607, 2147483648
  %v1616 = vxor.u32 %v1608, 2147483648
  %v1617 = vxor.u32 %v1609, 2147483648
  %v1618 = vxor.u32 %v1610, 2147483648
  %v1619 = vxor.u32 %v1611, 2147483648
  %v1620 = vxor.u32 %v1612, 2147483648
  %v1621 = vxor.u32 %v1613, 2147483648
  %v1622 = vxor.u32 %v1614, 2147483648
  %v1623 = vmul.f32 %v1615, 1.442695
  %v1624 = vpow.pop %v1623
  %v1625 = vmul.f32 %v1616, 1.442695
  %v1626 = vpow.pop %v1625
  %v1627 = vmul.f32 %v1617, 1.442695
  %v1628 = vpow.pop %v1627
  %v1629 = vmul.f32 %v1618, 1.442695
  %v1630 = vpow.pop %v1629
  %v1631 = vmul.f32 %v1619, 1.442695
  %v1632 = vpow.pop %v1631
  %v1633 = vmul.f32 %v1620, 1.442695
  %v1634 = vpow.pop %v1633
  %v1635 = vmul.f32 %v1621, 1.442695
  %v1636 = vpow.pop %v1635
  %v1637 = vmul.f32 %v1622, 1.442695
  %v1638 = vpow.pop %v1637
  %v1639 = vadd.f32 %v1624, 1.0
  %v1640 = vadd.f32 %v1626, 1.0
  %v1641 = vadd.f32 %v1628, 1.0
  %v1642 = vadd.f32 %v1630, 1.0
  %v1643 = vadd.f32 %v1632, 1.0
  %v1644 = vadd.f32 %v1634, 1.0
  %v1645 = vadd.f32 %v1636, 1.0
  %v1646 = vadd.f32 %v1638, 1.0
  %v1647 = vrcp.pop %v1639
  %v1648 = vmul.f32 1.0, %v1647
  %v1649 = vrcp.pop %v1640
  %v1650 = vmul.f32 1.0, %v1649
  %v1651 = vrcp.pop %v1641
  %v1652 = vmul.f32 1.0, %v1651
  %v1653 = vrcp.pop %v1642
  %v1654 = vmul.f32 1.0, %v1653
  %v1655 = vrcp.pop %v1643
  %v1656 = vmul.f32 1.0, %v1655
  %v1657 = vrcp.pop %v1644
  %v1658 = vmul.f32 1.0, %v1657
  %v1659 = vrcp.pop %v1645
  %v1660 = vmul.f32 1.0, %v1659
  %v1661 = vrcp.pop %v1646
  %v1662 = vmul.f32 1.0, %v1661
  %v1671 = vcombine.low %v1648, %v1650
  %v1672 = vcombine.low %v1652, %v1654
  %v1673 = vcombine.low %v1656, %v1658
  %v1674 = vcombine.low %v1660, %v1662
  %v1676 = vunpack.c.l.s4 1966171168
  %v1677 = vunpack.c.0.s8 %v1676
  %v1678 = vlaneseq
  %v1679 = vshrl.u32 %v1678, 7
  %v1680 = vsub.s32 %v1677, %v1679
  %v1681 = vrot.slane %v1671, %v1680
  %v1683 = vunpack.c.l.s4 1966171168
  %v1684 = vunpack.c.0.s8 %v1683
  %v1685 = vlaneseq
  %v1686 = vshrl.u32 %v1685, 7
  %v1687 = vsub.s32 %v1684, %v1686
  %v1688 = vrot.slane %v1672, %v1687
  %v1690 = vunpack.c.l.s4 1966171168
  %v1691 = vunpack.c.0.s8 %v1690
  %v1692 = vlaneseq
  %v1693 = vshrl.u32 %v1692, 7
  %v1694 = vsub.s32 %v1691, %v1693
  %v1695 = vrot.slane %v1673, %v1694
  %v1697 = vunpack.c.l.s4 1966171168
  %v1698 = vunpack.c.0.s8 %v1697
  %v1699 = vlaneseq
  %v1700 = vshrl.u32 %v1699, 7
  %v1701 = vsub.s32 %v1698, %v1700
  %v1702 = vrot.slane %v1674, %v1701
  %v1703 = vcombine.low %v1681, %v1688
  %v1704 = vcombine.low %v1695, %v1702
  %v1706 = vunpack.c.l.s4 1966171168
  %v1707 = vunpack.c.0.s8 %v1706
  %v1708 = vlaneseq
  %v1709 = vshrl.u32 %v1708, 7
  %v1710 = vsub.s32 %v1707, %v1709
  %v1711 = vrot.slane %v1703, %v1710
  %v1713 = vunpack.c.l.s4 1966171168
  %v1714 = vunpack.c.0.s8 %v1713
  %v1715 = vlaneseq
  %v1716 = vshrl.u32 %v1715, 7
  %v1717 = vsub.s32 %v1714, %v1716
  %v1718 = vrot.slane %v1704, %v1717
  %v1719 = vcombine.low %v1711, %v1718
  %1721 = vrot.lane.b32.xlu0 %v1719, 64
  %v1722 = vpop.permute.xlu0 %1721
  %v1724 = vcombine.high %v1545, %v1545
  %v1726 = vunpack.c.l.s4 1966171168
  %v1727 = vunpack.c.0.s8 %v1726
  %v1728 = vlaneseq
  %v1729 = vshrl.u32 %v1728, 7
  %v1730 = vsub.s32 %v1727, %v1729
  %v1731 = vrot.slane %v1545, %v1730
  %v1733 = vunpack.c.l.s4 1966171168
  %v1734 = vunpack.c.0.s8 %v1733
  %v1735 = vlaneseq
  %v1736 = vshrl.u32 %v1735, 7
  %v1737 = vsub.s32 %v1734, %v1736
  %v1738 = vrot.slane %v1724, %v1737
  %v1739 = vcombine.high %v1731, %v1731
  %v1740 = vcombine.high %v1738, %v1738
  %v1742 = vunpack.c.l.s4 1966171168
  %v1743 = vunpack.c.0.s8 %v1742
  %v1744 = vlaneseq
  %v1745 = vshrl.u32 %v1744, 7
  %v1746 = vsub.s32 %v1743, %v1745
  %v1747 = vrot.slane %v1731, %v1746
  %v1749 = vunpack.c.l.s4 1966171168
  %v1750 = vunpack.c.0.s8 %v1749
  %v1751 = vlaneseq
  %v1752 = vshrl.u32 %v1751, 7
  %v1753 = vsub.s32 %v1750, %v1752
  %v1754 = vrot.slane %v1738, %v1753
  %v1756 = vunpack.c.l.s4 1966171168
  %v1757 = vunpack.c.0.s8 %v1756
  %v1758 = vlaneseq
  %v1759 = vshrl.u32 %v1758, 7
  %v1760 = vsub.s32 %v1757, %v1759
  %v1761 = vrot.slane %v1739, %v1760
  %v1763 = vunpack.c.l.s4 1966171168
  %v1764 = vunpack.c.0.s8 %v1763
  %v1765 = vlaneseq
  %v1766 = vshrl.u32 %v1765, 7
  %v1767 = vsub.s32 %v1764, %v1766
  %v1768 = vrot.slane %v1740, %v1767
  %v1769 = vcombine.high %v1747, %v1747
  %v1770 = vcombine.high %v1754, %v1754
  %v1771 = vcombine.high %v1761, %v1761
  %v1772 = vcombine.high %v1768, %v1768
  %v1781 = vmul.f32 %v1648, %v1747
  %v1782 = vmul.f32 %v1650, %v1761
  %v1783 = vmul.f32 %v1652, %v1769
  %v1784 = vmul.f32 %v1654, %v1771
  %v1785 = vmul.f32 %v1656, %v1754
  %v1786 = vmul.f32 %v1658, %v1768
  %v1787 = vmul.f32 %v1660, %v1770
  %v1788 = vmul.f32 %v1662, %v1772
  %v1797 = vrot.slane %v1489, 1
  %v1798 = vrot.slane %v1491, 1
  %v1799 = vrot.slane %v1493, 1
  %v1800 = vrot.slane %v1495, 1
  %v1801 = vrot.slane %v1497, 1
  %v1802 = vrot.slane %v1499, 1
  %v1803 = vrot.slane %v1501, 1
  %v1804 = vrot.slane %v1503, 1
  %v1813 = vadd.f32 %v1797, %v1781
  %v1814 = vadd.f32 %v1798, %v1782
  %v1815 = vadd.f32 %v1799, %v1783
  %v1816 = vadd.f32 %v1800, %v1784
  %v1817 = vadd.f32 %v1801, %v1785
  %v1818 = vadd.f32 %v1802, %v1786
  %v1819 = vadd.f32 %v1803, %v1787
  %v1820 = vadd.f32 %v1804, %v1788
  %v1821 = vtanh.pop %v1813
  %v1822 = vtanh.pop %v1814
  %v1823 = vtanh.pop %v1815
  %v1824 = vtanh.pop %v1816
  %v1825 = vtanh.pop %v1817
  %v1826 = vtanh.pop %v1818
  %v1827 = vtanh.pop %v1819
  %v1828 = vtanh.pop %v1820
  %v1829 = vsub.f32 1.0, %v1722
  %v1838 = vcombine.low %v1821, %v1822
  %v1839 = vcombine.low %v1823, %v1824
  %v1840 = vcombine.low %v1825, %v1826
  %v1841 = vcombine.low %v1827, %v1828
  %v1843 = vunpack.c.l.s4 1966171168
  %v1844 = vunpack.c.0.s8 %v1843
  %v1845 = vlaneseq
  %v1846 = vshrl.u32 %v1845, 7
  %v1847 = vsub.s32 %v1844, %v1846
  %v1848 = vrot.slane %v1838, %v1847
  %v1850 = vunpack.c.l.s4 1966171168
  %v1851 = vunpack.c.0.s8 %v1850
  %v1852 = vlaneseq
  %v1853 = vshrl.u32 %v1852, 7
  %v1854 = vsub.s32 %v1851, %v1853
  %v1855 = vrot.slane %v1839, %v1854
  %v1857 = vunpack.c.l.s4 1966171168
  %v1858 = vunpack.c.0.s8 %v1857
  %v1859 = vlaneseq
  %v1860 = vshrl.u32 %v1859, 7
  %v1861 = vsub.s32 %v1858, %v1860
  %v1862 = vrot.slane %v1840, %v1861
  %v1864 = vunpack.c.l.s4 1966171168
  %v1865 = vunpack.c.0.s8 %v1864
  %v1866 = vlaneseq
  %v1867 = vshrl.u32 %v1866, 7
  %v1868 = vsub.s32 %v1865, %v1867
  %v1869 = vrot.slane %v1841, %v1868
  %v1870 = vcombine.low %v1848, %v1855
  %v1871 = vcombine.low %v1862, %v1869
  %v1873 = vunpack.c.l.s4 1966171168
  %v1874 = vunpack.c.0.s8 %v1873
  %v1875 = vlaneseq
  %v1876 = vshrl.u32 %v1875, 7
  %v1877 = vsub.s32 %v1874, %v1876
  %v1878 = vrot.slane %v1870, %v1877
  %v1880 = vunpack.c.l.s4 1966171168
  %v1881 = vunpack.c.0.s8 %v1880
  %v1882 = vlaneseq
  %v1883 = vshrl.u32 %v1882, 7
  %v1884 = vsub.s32 %v1881, %v1883
  %v1885 = vrot.slane %v1871, %v1884
  %v1886 = vcombine.low %v1878, %v1885
  %v1888 = vmul.f32 %v1829, %v1886
  %v1889 = vmul.f32 %v1722, %v1487
  %v1890 = vadd.f32 %v1888, %v1889
  %s1891 = scalar_lea.vmem [#allocation2], 4
  %v1892 = vld [vmem:[%s1891] ss:$8 sm:$0x3]
  %s1893 = scalar_lea.vmem [#allocation2], 20
  %v1894 = vld [vmem:[%s1893] ss:$8 sm:$0x3]
  %s1895 = scalar_lea.vmem [#allocation2], 36
  %v1896 = vld [vmem:[%s1895] ss:$8 sm:$0x3]
  %s1897 = scalar_lea.vmem [#allocation2], 52
  %v1898 = vld [vmem:[%s1897] ss:$8 sm:$0x3]
  %s1899 = scalar_lea.vmem [#allocation2], 68
  %v1900 = vld [vmem:[%s1899] ss:$8 sm:$0x3]
  %s1901 = scalar_lea.vmem [#allocation2], 84
  %v1902 = vld [vmem:[%s1901] ss:$8 sm:$0x3]
  %s1903 = scalar_lea.vmem [#allocation2], 100
  %v1904 = vld [vmem:[%s1903] ss:$8 sm:$0x3]
  %s1905 = scalar_lea.vmem [#allocation2], 116
  %v1906 = vld [vmem:[%s1905] ss:$8 sm:$0x3]
  %v1907 = vpack.c.bf16 %v1890, %v1890
  %v1909 = vsel %vm119, %v1907, 0
  %1911 = vmatprep.subr.bf16.mxu0 %v281
  %1912 = vmatpush1.bf16.msra.mxu0 %v280
  %1913 = vmatprep.subr.bf16.mxu0 %v283
  %1914 = vmatpush1.bf16.msra.mxu0 %v282
  %1915 = vmatprep.subr.bf16.mxu0 %v285
  %1916 = vmatpush1.bf16.msra.mxu0 %v284
  %1917 = vmatprep.subr.bf16.mxu0 %v287
  %1918 = vmatpush1.bf16.msra.mxu0 %v286
  %1919 = vmatprep.subr.bf16.mxu0 0
  %1920 = vmatpush1.bf16.msra.mxu0 0
  %1921 = vmatprep.subr.bf16.mxu0 0
  %1922 = vmatpush1.bf16.msra.mxu0 0
  %1923 = vmatprep.subr.bf16.mxu0 0
  %1924 = vmatpush1.bf16.msra.mxu0 0
  %1925 = vmatprep.subr.bf16.mxu0 0
  %1926 = vmatpush1.bf16.msra.mxu0 0
  %1927 = vmatprep.subr.bf16.mxu0 0
  %1928 = vmatpush1.bf16.msra.mxu0 0
  %1929 = vmatprep.subr.bf16.mxu0 0
  %1930 = vmatpush1.bf16.msra.mxu0 0
  %1931 = vmatprep.subr.bf16.mxu0 0
  %1932 = vmatpush1.bf16.msra.mxu0 0
  %1933 = vmatprep.subr.bf16.mxu0 0
  %1934 = vmatpush1.bf16.msra.mxu0 0
  %1935 = vmatprep.subr.bf16.mxu0 0
  %1936 = vmatpush1.bf16.msra.mxu0 0
  %1937 = vmatprep.subr.bf16.mxu0 0
  %1938 = vmatpush1.bf16.msra.mxu0 0
  %1939 = vmatprep.subr.bf16.mxu0 0
  %1940 = vmatpush1.bf16.msra.mxu0 0
  %1941 = vmatprep.subr.bf16.mxu0 0
  %1942 = vmatpush1.bf16.msra.mxu0 0
  %1943 = vmatprep.mubr.bf16.mxu0 0
  %1944 = vmatmul.mubr.bf16.gmra.mrb[0].mxu0 %v1909
  %v1945 = vpop.f32.mrb[0].mxu0
  %v1946 = vadd.f32 %v249, %v1945
  %v1947 = vpop.f32.mrb[0].mxu0
  %v1948 = vadd.f32 %v253, %v1947
  %v1949 = vpop.f32.mrb[0].mxu0
  %v1950 = vpop.f32.mrb[0].mxu0
  %1951 = vdwg.mxu0
  %v1953 = vcombine.high %v1946, %v1946
  %v1955 = vunpack.c.l.s4 1966171168
  %v1956 = vunpack.c.0.s8 %v1955
  %v1957 = vlaneseq
  %v1958 = vshrl.u32 %v1957, 7
  %v1959 = vsub.s32 %v1956, %v1958
  %v1960 = vrot.slane %v1946, %v1959
  %v1962 = vunpack.c.l.s4 1966171168
  %v1963 = vunpack.c.0.s8 %v1962
  %v1964 = vlaneseq
  %v1965 = vshrl.u32 %v1964, 7
  %v1966 = vsub.s32 %v1963, %v1965
  %v1967 = vrot.slane %v1953, %v1966
  %v1968 = vcombine.high %v1960, %v1960
  %v1969 = vcombine.high %v1967, %v1967
  %v1971 = vunpack.c.l.s4 1966171168
  %v1972 = vunpack.c.0.s8 %v1971
  %v1973 = vlaneseq
  %v1974 = vshrl.u32 %v1973, 7
  %v1975 = vsub.s32 %v1972, %v1974
  %v1976 = vrot.slane %v1960, %v1975
  %v1978 = vunpack.c.l.s4 1966171168
  %v1979 = vunpack.c.0.s8 %v1978
  %v1980 = vlaneseq
  %v1981 = vshrl.u32 %v1980, 7
  %v1982 = vsub.s32 %v1979, %v1981
  %v1983 = vrot.slane %v1967, %v1982
  %v1985 = vunpack.c.l.s4 1966171168
  %v1986 = vunpack.c.0.s8 %v1985
  %v1987 = vlaneseq
  %v1988 = vshrl.u32 %v1987, 7
  %v1989 = vsub.s32 %v1986, %v1988
  %v1990 = vrot.slane %v1968, %v1989
  %v1992 = vunpack.c.l.s4 1966171168
  %v1993 = vunpack.c.0.s8 %v1992
  %v1994 = vlaneseq
  %v1995 = vshrl.u32 %v1994, 7
  %v1996 = vsub.s32 %v1993, %v1995
  %v1997 = vrot.slane %v1969, %v1996
  %v1998 = vcombine.high %v1976, %v1976
  %v1999 = vcombine.high %v1983, %v1983
  %v2000 = vcombine.high %v1990, %v1990
  %v2001 = vcombine.high %v1997, %v1997
  %v2010 = vadd.f32 %v1892, %v1976
  %v2011 = vadd.f32 %v1894, %v1990
  %v2012 = vadd.f32 %v1896, %v1998
  %v2013 = vadd.f32 %v1898, %v2000
  %v2014 = vadd.f32 %v1900, %v1983
  %v2015 = vadd.f32 %v1902, %v1997
  %v2016 = vadd.f32 %v1904, %v1999
  %v2017 = vadd.f32 %v1906, %v2001
  %v2018 = vxor.u32 %v2010, 2147483648
  %v2019 = vxor.u32 %v2011, 2147483648
  %v2020 = vxor.u32 %v2012, 2147483648
  %v2021 = vxor.u32 %v2013, 2147483648
  %v2022 = vxor.u32 %v2014, 2147483648
  %v2023 = vxor.u32 %v2015, 2147483648
  %v2024 = vxor.u32 %v2016, 2147483648
  %v2025 = vxor.u32 %v2017, 2147483648
  %v2026 = vmul.f32 %v2018, 1.442695
  %v2027 = vpow.pop %v2026
  %v2028 = vmul.f32 %v2019, 1.442695
  %v2029 = vpow.pop %v2028
  %v2030 = vmul.f32 %v2020, 1.442695
  %v2031 = vpow.pop %v2030
  %v2032 = vmul.f32 %v2021, 1.442695
  %v2033 = vpow.pop %v2032
  %v2034 = vmul.f32 %v2022, 1.442695
  %v2035 = vpow.pop %v2034
  %v2036 = vmul.f32 %v2023, 1.442695
  %v2037 = vpow.pop %v2036
  %v2038 = vmul.f32 %v2024, 1.442695
  %v2039 = vpow.pop %v2038
  %v2040 = vmul.f32 %v2025, 1.442695
  %v2041 = vpow.pop %v2040
  %v2042 = vadd.f32 %v2027, 1.0
  %v2043 = vadd.f32 %v2029, 1.0
  %v2044 = vadd.f32 %v2031, 1.0
  %v2045 = vadd.f32 %v2033, 1.0
  %v2046 = vadd.f32 %v2035, 1.0
  %v2047 = vadd.f32 %v2037, 1.0
  %v2048 = vadd.f32 %v2039, 1.0
  %v2049 = vadd.f32 %v2041, 1.0
  %v2050 = vrcp.pop %v2042
  %v2051 = vmul.f32 1.0, %v2050
  %v2052 = vrcp.pop %v2043
  %v2053 = vmul.f32 1.0, %v2052
  %v2054 = vrcp.pop %v2044
  %v2055 = vmul.f32 1.0, %v2054
  %v2056 = vrcp.pop %v2045
  %v2057 = vmul.f32 1.0, %v2056
  %v2058 = vrcp.pop %v2046
  %v2059 = vmul.f32 1.0, %v2058
  %v2060 = vrcp.pop %v2047
  %v2061 = vmul.f32 1.0, %v2060
  %v2062 = vrcp.pop %v2048
  %v2063 = vmul.f32 1.0, %v2062
  %v2064 = vrcp.pop %v2049
  %v2065 = vmul.f32 1.0, %v2064
  %v2074 = vcombine.low %v2051, %v2053
  %v2075 = vcombine.low %v2055, %v2057
  %v2076 = vcombine.low %v2059, %v2061
  %v2077 = vcombine.low %v2063, %v2065
  %v2079 = vunpack.c.l.s4 1966171168
  %v2080 = vunpack.c.0.s8 %v2079
  %v2081 = vlaneseq
  %v2082 = vshrl.u32 %v2081, 7
  %v2083 = vsub.s32 %v2080, %v2082
  %v2084 = vrot.slane %v2074, %v2083
  %v2086 = vunpack.c.l.s4 1966171168
  %v2087 = vunpack.c.0.s8 %v2086
  %v2088 = vlaneseq
  %v2089 = vshrl.u32 %v2088, 7
  %v2090 = vsub.s32 %v2087, %v2089
  %v2091 = vrot.slane %v2075, %v2090
  %v2093 = vunpack.c.l.s4 1966171168
  %v2094 = vunpack.c.0.s8 %v2093
  %v2095 = vlaneseq
  %v2096 = vshrl.u32 %v2095, 7
  %v2097 = vsub.s32 %v2094, %v2096
  %v2098 = vrot.slane %v2076, %v2097
  %v2100 = vunpack.c.l.s4 1966171168
  %v2101 = vunpack.c.0.s8 %v2100
  %v2102 = vlaneseq
  %v2103 = vshrl.u32 %v2102, 7
  %v2104 = vsub.s32 %v2101, %v2103
  %v2105 = vrot.slane %v2077, %v2104
  %v2106 = vcombine.low %v2084, %v2091
  %v2107 = vcombine.low %v2098, %v2105
  %v2109 = vunpack.c.l.s4 1966171168
  %v2110 = vunpack.c.0.s8 %v2109
  %v2111 = vlaneseq
  %v2112 = vshrl.u32 %v2111, 7
  %v2113 = vsub.s32 %v2110, %v2112
  %v2114 = vrot.slane %v2106, %v2113
  %v2116 = vunpack.c.l.s4 1966171168
  %v2117 = vunpack.c.0.s8 %v2116
  %v2118 = vlaneseq
  %v2119 = vshrl.u32 %v2118, 7
  %v2120 = vsub.s32 %v2117, %v2119
  %v2121 = vrot.slane %v2107, %v2120
  %v2122 = vcombine.low %v2114, %v2121
  %2124 = vrot.lane.b32.xlu0 %v2122, 64
  %v2125 = vpop.permute.xlu0 %2124
  %v2127 = vcombine.high %v1948, %v1948
  %v2129 = vunpack.c.l.s4 1966171168
  %v2130 = vunpack.c.0.s8 %v2129
  %v2131 = vlaneseq
  %v2132 = vshrl.u32 %v2131, 7
  %v2133 = vsub.s32 %v2130, %v2132
  %v2134 = vrot.slane %v1948, %v2133
  %v2136 = vunpack.c.l.s4 1966171168
  %v2137 = vunpack.c.0.s8 %v2136
  %v2138 = vlaneseq
  %v2139 = vshrl.u32 %v2138, 7
  %v2140 = vsub.s32 %v2137, %v2139
  %v2141 = vrot.slane %v2127, %v2140
  %v2142 = vcombine.high %v2134, %v2134
  %v2143 = vcombine.high %v2141, %v2141
  %v2145 = vunpack.c.l.s4 1966171168
  %v2146 = vunpack.c.0.s8 %v2145
  %v2147 = vlaneseq
  %v2148 = vshrl.u32 %v2147, 7
  %v2149 = vsub.s32 %v2146, %v2148
  %v2150 = vrot.slane %v2134, %v2149
  %v2152 = vunpack.c.l.s4 1966171168
  %v2153 = vunpack.c.0.s8 %v2152
  %v2154 = vlaneseq
  %v2155 = vshrl.u32 %v2154, 7
  %v2156 = vsub.s32 %v2153, %v2155
  %v2157 = vrot.slane %v2141, %v2156
  %v2159 = vunpack.c.l.s4 1966171168
  %v2160 = vunpack.c.0.s8 %v2159
  %v2161 = vlaneseq
  %v2162 = vshrl.u32 %v2161, 7
  %v2163 = vsub.s32 %v2160, %v2162
  %v2164 = vrot.slane %v2142, %v2163
  %v2166 = vunpack.c.l.s4 1966171168
  %v2167 = vunpack.c.0.s8 %v2166
  %v2168 = vlaneseq
  %v2169 = vshrl.u32 %v2168, 7
  %v2170 = vsub.s32 %v2167, %v2169
  %v2171 = vrot.slane %v2143, %v2170
  %v2172 = vcombine.high %v2150, %v2150
  %v2173 = vcombine.high %v2157, %v2157
  %v2174 = vcombine.high %v2164, %v2164
  %v2175 = vcombine.high %v2171, %v2171
  %v2184 = vmul.f32 %v2051, %v2150
  %v2185 = vmul.f32 %v2053, %v2164
  %v2186 = vmul.f32 %v2055, %v2172
  %v2187 = vmul.f32 %v2057, %v2174
  %v2188 = vmul.f32 %v2059, %v2157
  %v2189 = vmul.f32 %v2061, %v2171
  %v2190 = vmul.f32 %v2063, %v2173
  %v2191 = vmul.f32 %v2065, %v2175
  %v2200 = vrot.slane %v1892, 1
  %v2201 = vrot.slane %v1894, 1
  %v2202 = vrot.slane %v1896, 1
  %v2203 = vrot.slane %v1898, 1
  %v2204 = vrot.slane %v1900, 1
  %v2205 = vrot.slane %v1902, 1
  %v2206 = vrot.slane %v1904, 1
  %v2207 = vrot.slane %v1906, 1
  %v2216 = vadd.f32 %v2200, %v2184
  %v2217 = vadd.f32 %v2201, %v2185
  %v2218 = vadd.f32 %v2202, %v2186
  %v2219 = vadd.f32 %v2203, %v2187
  %v2220 = vadd.f32 %v2204, %v2188
  %v2221 = vadd.f32 %v2205, %v2189
  %v2222 = vadd.f32 %v2206, %v2190
  %v2223 = vadd.f32 %v2207, %v2191
  %v2224 = vtanh.pop %v2216
  %v2225 = vtanh.pop %v2217
  %v2226 = vtanh.pop %v2218
  %v2227 = vtanh.pop %v2219
  %v2228 = vtanh.pop %v2220
  %v2229 = vtanh.pop %v2221
  %v2230 = vtanh.pop %v2222
  %v2231 = vtanh.pop %v2223
  %v2232 = vsub.f32 1.0, %v2125
  %v2241 = vcombine.low %v2224, %v2225
  %v2242 = vcombine.low %v2226, %v2227
  %v2243 = vcombine.low %v2228, %v2229
  %v2244 = vcombine.low %v2230, %v2231
  %v2246 = vunpack.c.l.s4 1966171168
  %v2247 = vunpack.c.0.s8 %v2246
  %v2248 = vlaneseq
  %v2249 = vshrl.u32 %v2248, 7
  %v2250 = vsub.s32 %v2247, %v2249
  %v2251 = vrot.slane %v2241, %v2250
  %v2253 = vunpack.c.l.s4 1966171168
  %v2254 = vunpack.c.0.s8 %v2253
  %v2255 = vlaneseq
  %v2256 = vshrl.u32 %v2255, 7
  %v2257 = vsub.s32 %v2254, %v2256
  %v2258 = vrot.slane %v2242, %v2257
  %v2260 = vunpack.c.l.s4 1966171168
  %v2261 = vunpack.c.0.s8 %v2260
  %v2262 = vlaneseq
  %v2263 = vshrl.u32 %v2262, 7
  %v2264 = vsub.s32 %v2261, %v2263
  %v2265 = vrot.slane %v2243, %v2264
  %v2267 = vunpack.c.l.s4 1966171168
  %v2268 = vunpack.c.0.s8 %v2267
  %v2269 = vlaneseq
  %v2270 = vshrl.u32 %v2269, 7
  %v2271 = vsub.s32 %v2268, %v2270
  %v2272 = vrot.slane %v2244, %v2271
  %v2273 = vcombine.low %v2251, %v2258
  %v2274 = vcombine.low %v2265, %v2272
  %v2276 = vunpack.c.l.s4 1966171168
  %v2277 = vunpack.c.0.s8 %v2276
  %v2278 = vlaneseq
  %v2279 = vshrl.u32 %v2278, 7
  %v2280 = vsub.s32 %v2277, %v2279
  %v2281 = vrot.slane %v2273, %v2280
  %v2283 = vunpack.c.l.s4 1966171168
  %v2284 = vunpack.c.0.s8 %v2283
  %v2285 = vlaneseq
  %v2286 = vshrl.u32 %v2285, 7
  %v2287 = vsub.s32 %v2284, %v2286
  %v2288 = vrot.slane %v2274, %v2287
  %v2289 = vcombine.low %v2281, %v2288
  %v2291 = vmul.f32 %v2232, %v2289
  %v2292 = vmul.f32 %v2125, %v1890
  %v2293 = vadd.f32 %v2291, %v2292
  %s2294 = scalar_lea.vmem [#allocation2], 5
  %v2295 = vld [vmem:[%s2294] ss:$8 sm:$0x3]
  %s2296 = scalar_lea.vmem [#allocation2], 21
  %v2297 = vld [vmem:[%s2296] ss:$8 sm:$0x3]
  %s2298 = scalar_lea.vmem [#allocation2], 37
  %v2299 = vld [vmem:[%s2298] ss:$8 sm:$0x3]
  %s2300 = scalar_lea.vmem [#allocation2], 53
  %v2301 = vld [vmem:[%s2300] ss:$8 sm:$0x3]
  %s2302 = scalar_lea.vmem [#allocation2], 69
  %v2303 = vld [vmem:[%s2302] ss:$8 sm:$0x3]
  %s2304 = scalar_lea.vmem [#allocation2], 85
  %v2305 = vld [vmem:[%s2304] ss:$8 sm:$0x3]
  %s2306 = scalar_lea.vmem [#allocation2], 101
  %v2307 = vld [vmem:[%s2306] ss:$8 sm:$0x3]
  %s2308 = scalar_lea.vmem [#allocation2], 117
  %v2309 = vld [vmem:[%s2308] ss:$8 sm:$0x3]
  %v2310 = vpack.c.bf16 %v2293, %v2293
  %v2312 = vsel %vm119, %v2310, 0
  %2314 = vmatprep.subr.bf16.mxu0 %v281
  %2315 = vmatpush1.bf16.msra.mxu0 %v280
  %2316 = vmatprep.subr.bf16.mxu0 %v283
  %2317 = vmatpush1.bf16.msra.mxu0 %v282
  %2318 = vmatprep.subr.bf16.mxu0 %v285
  %2319 = vmatpush1.bf16.msra.mxu0 %v284
  %2320 = vmatprep.subr.bf16.mxu0 %v287
  %2321 = vmatpush1.bf16.msra.mxu0 %v286
  %2322 = vmatprep.subr.bf16.mxu0 0
  %2323 = vmatpush1.bf16.msra.mxu0 0
  %2324 = vmatprep.subr.bf16.mxu0 0
  %2325 = vmatpush1.bf16.msra.mxu0 0
  %2326 = vmatprep.subr.bf16.mxu0 0
  %2327 = vmatpush1.bf16.msra.mxu0 0
  %2328 = vmatprep.subr.bf16.mxu0 0
  %2329 = vmatpush1.bf16.msra.mxu0 0
  %2330 = vmatprep.subr.bf16.mxu0 0
  %2331 = vmatpush1.bf16.msra.mxu0 0
  %2332 = vmatprep.subr.bf16.mxu0 0
  %2333 = vmatpush1.bf16.msra.mxu0 0
  %2334 = vmatprep.subr.bf16.mxu0 0
  %2335 = vmatpush1.bf16.msra.mxu0 0
  %2336 = vmatprep.subr.bf16.mxu0 0
  %2337 = vmatpush1.bf16.msra.mxu0 0
  %2338 = vmatprep.subr.bf16.mxu0 0
  %2339 = vmatpush1.bf16.msra.mxu0 0
  %2340 = vmatprep.subr.bf16.mxu0 0
  %2341 = vmatpush1.bf16.msra.mxu0 0
  %2342 = vmatprep.subr.bf16.mxu0 0
  %2343 = vmatpush1.bf16.msra.mxu0 0
  %2344 = vmatprep.subr.bf16.mxu0 0
  %2345 = vmatpush1.bf16.msra.mxu0 0
  %2346 = vmatprep.mubr.bf16.mxu0 0
  %2347 = vmatmul.mubr.bf16.gmra.mrb[0].mxu0 %v2312
  %v2348 = vpop.f32.mrb[0].mxu0
  %v2349 = vadd.f32 %v249, %v2348
  %v2350 = vpop.f32.mrb[0].mxu0
  %v2351 = vadd.f32 %v253, %v2350
  %v2352 = vpop.f32.mrb[0].mxu0
  %v2353 = vpop.f32.mrb[0].mxu0
  %2354 = vdwg.mxu0
  %v2356 = vcombine.high %v2349, %v2349
  %v2358 = vunpack.c.l.s4 1966171168
  %v2359 = vunpack.c.0.s8 %v2358
  %v2360 = vlaneseq
  %v2361 = vshrl.u32 %v2360, 7
  %v2362 = vsub.s32 %v2359, %v2361
  %v2363 = vrot.slane %v2349, %v2362
  %v2365 = vunpack.c.l.s4 1966171168
  %v2366 = vunpack.c.0.s8 %v2365
  %v2367 = vlaneseq
  %v2368 = vshrl.u32 %v2367, 7
  %v2369 = vsub.s32 %v2366, %v2368
  %v2370 = vrot.slane %v2356, %v2369
  %v2371 = vcombine.high %v2363, %v2363
  %v2372 = vcombine.high %v2370, %v2370
  %v2374 = vunpack.c.l.s4 1966171168
  %v2375 = vunpack.c.0.s8 %v2374
  %v2376 = vlaneseq
  %v2377 = vshrl.u32 %v2376, 7
  %v2378 = vsub.s32 %v2375, %v2377
  %v2379 = vrot.slane %v2363, %v2378
  %v2381 = vunpack.c.l.s4 1966171168
  %v2382 = vunpack.c.0.s8 %v2381
  %v2383 = vlaneseq
  %v2384 = vshrl.u32 %v2383, 7
  %v2385 = vsub.s32 %v2382, %v2384
  %v2386 = vrot.slane %v2370, %v2385
  %v2388 = vunpack.c.l.s4 1966171168
  %v2389 = vunpack.c.0.s8 %v2388
  %v2390 = vlaneseq
  %v2391 = vshrl.u32 %v2390, 7
  %v2392 = vsub.s32 %v2389, %v2391
  %v2393 = vrot.slane %v2371, %v2392
  %v2395 = vunpack.c.l.s4 1966171168
  %v2396 = vunpack.c.0.s8 %v2395
  %v2397 = vlaneseq
  %v2398 = vshrl.u32 %v2397, 7
  %v2399 = vsub.s32 %v2396, %v2398
  %v2400 = vrot.slane %v2372, %v2399
  %v2401 = vcombine.high %v2379, %v2379
  %v2402 = vcombine.high %v2386, %v2386
  %v2403 = vcombine.high %v2393, %v2393
  %v2404 = vcombine.high %v2400, %v2400
  %v2413 = vadd.f32 %v2295, %v2379
  %v2414 = vadd.f32 %v2297, %v2393
  %v2415 = vadd.f32 %v2299, %v2401
  %v2416 = vadd.f32 %v2301, %v2403
  %v2417 = vadd.f32 %v2303, %v2386
  %v2418 = vadd.f32 %v2305, %v2400
  %v2419 = vadd.f32 %v2307, %v2402
  %v2420 = vadd.f32 %v2309, %v2404
  %v2421 = vxor.u32 %v2413, 2147483648
  %v2422 = vxor.u32 %v2414, 2147483648
  %v2423 = vxor.u32 %v2415, 2147483648
  %v2424 = vxor.u32 %v2416, 2147483648
  %v2425 = vxor.u32 %v2417, 2147483648
  %v2426 = vxor.u32 %v2418, 2147483648
  %v2427 = vxor.u32 %v2419, 2147483648
  %v2428 = vxor.u32 %v2420, 2147483648
  %v2429 = vmul.f32 %v2421, 1.442695
  %v2430 = vpow.pop %v2429
  %v2431 = vmul.f32 %v2422, 1.442695
  %v2432 = vpow.pop %v2431
  %v2433 = vmul.f32 %v2423, 1.442695
  %v2434 = vpow.pop %v2433
  %v2435 = vmul.f32 %v2424, 1.442695
  %v2436 = vpow.pop %v2435
  %v2437 = vmul.f32 %v2425, 1.442695
  %v2438 = vpow.pop %v2437
  %v2439 = vmul.f32 %v2426, 1.442695
  %v2440 = vpow.pop %v2439
  %v2441 = vmul.f32 %v2427, 1.442695
  %v2442 = vpow.pop %v2441
  %v2443 = vmul.f32 %v2428, 1.442695
  %v2444 = vpow.pop %v2443
  %v2445 = vadd.f32 %v2430, 1.0
  %v2446 = vadd.f32 %v2432, 1.0
  %v2447 = vadd.f32 %v2434, 1.0
  %v2448 = vadd.f32 %v2436, 1.0
  %v2449 = vadd.f32 %v2438, 1.0
  %v2450 = vadd.f32 %v2440, 1.0
  %v2451 = vadd.f32 %v2442, 1.0
  %v2452 = vadd.f32 %v2444, 1.0
  %v2453 = vrcp.pop %v2445
  %v2454 = vmul.f32 1.0, %v2453
  %v2455 = vrcp.pop %v2446
  %v2456 = vmul.f32 1.0, %v2455
  %v2457 = vrcp.pop %v2447
  %v2458 = vmul.f32 1.0, %v2457
  %v2459 = vrcp.pop %v2448
  %v2460 = vmul.f32 1.0, %v2459
  %v2461 = vrcp.pop %v2449
  %v2462 = vmul.f32 1.0, %v2461
  %v2463 = vrcp.pop %v2450
  %v2464 = vmul.f32 1.0, %v2463
  %v2465 = vrcp.pop %v2451
  %v2466 = vmul.f32 1.0, %v2465
  %v2467 = vrcp.pop %v2452
  %v2468 = vmul.f32 1.0, %v2467
  %v2477 = vcombine.low %v2454, %v2456
  %v2478 = vcombine.low %v2458, %v2460
  %v2479 = vcombine.low %v2462, %v2464
  %v2480 = vcombine.low %v2466, %v2468
  %v2482 = vunpack.c.l.s4 1966171168
  %v2483 = vunpack.c.0.s8 %v2482
  %v2484 = vlaneseq
  %v2485 = vshrl.u32 %v2484, 7
  %v2486 = vsub.s32 %v2483, %v2485
  %v2487 = vrot.slane %v2477, %v2486
  %v2489 = vunpack.c.l.s4 1966171168
  %v2490 = vunpack.c.0.s8 %v2489
  %v2491 = vlaneseq
  %v2492 = vshrl.u32 %v2491, 7
  %v2493 = vsub.s32 %v2490, %v2492
  %v2494 = vrot.slane %v2478, %v2493
  %v2496 = vunpack.c.l.s4 1966171168
  %v2497 = vunpack.c.0.s8 %v2496
  %v2498 = vlaneseq
  %v2499 = vshrl.u32 %v2498, 7
  %v2500 = vsub.s32 %v2497, %v2499
  %v2501 = vrot.slane %v2479, %v2500
  %v2503 = vunpack.c.l.s4 1966171168
  %v2504 = vunpack.c.0.s8 %v2503
  %v2505 = vlaneseq
  %v2506 = vshrl.u32 %v2505, 7
  %v2507 = vsub.s32 %v2504, %v2506
  %v2508 = vrot.slane %v2480, %v2507
  %v2509 = vcombine.low %v2487, %v2494
  %v2510 = vcombine.low %v2501, %v2508
  %v2512 = vunpack.c.l.s4 1966171168
  %v2513 = vunpack.c.0.s8 %v2512
  %v2514 = vlaneseq
  %v2515 = vshrl.u32 %v2514, 7
  %v2516 = vsub.s32 %v2513, %v2515
  %v2517 = vrot.slane %v2509, %v2516
  %v2519 = vunpack.c.l.s4 1966171168
  %v2520 = vunpack.c.0.s8 %v2519
  %v2521 = vlaneseq
  %v2522 = vshrl.u32 %v2521, 7
  %v2523 = vsub.s32 %v2520, %v2522
  %v2524 = vrot.slane %v2510, %v2523
  %v2525 = vcombine.low %v2517, %v2524
  %2527 = vrot.lane.b32.xlu0 %v2525, 64
  %v2528 = vpop.permute.xlu0 %2527
  %v2530 = vcombine.high %v2351, %v2351
  %v2532 = vunpack.c.l.s4 1966171168
  %v2533 = vunpack.c.0.s8 %v2532
  %v2534 = vlaneseq
  %v2535 = vshrl.u32 %v2534, 7
  %v2536 = vsub.s32 %v2533, %v2535
  %v2537 = vrot.slane %v2351, %v2536
  %v2539 = vunpack.c.l.s4 1966171168
  %v2540 = vunpack.c.0.s8 %v2539
  %v2541 = vlaneseq
  %v2542 = vshrl.u32 %v2541, 7
  %v2543 = vsub.s32 %v2540, %v2542
  %v2544 = vrot.slane %v2530, %v2543
  %v2545 = vcombine.high %v2537, %v2537
  %v2546 = vcombine.high %v2544, %v2544
  %v2548 = vunpack.c.l.s4 1966171168
  %v2549 = vunpack.c.0.s8 %v2548
  %v2550 = vlaneseq
  %v2551 = vshrl.u32 %v2550, 7
  %v2552 = vsub.s32 %v2549, %v2551
  %v2553 = vrot.slane %v2537, %v2552
  %v2555 = vunpack.c.l.s4 1966171168
  %v2556 = vunpack.c.0.s8 %v2555
  %v2557 = vlaneseq
  %v2558 = vshrl.u32 %v2557, 7
  %v2559 = vsub.s32 %v2556, %v2558
  %v2560 = vrot.slane %v2544, %v2559
  %v2562 = vunpack.c.l.s4 1966171168
  %v2563 = vunpack.c.0.s8 %v2562
  %v2564 = vlaneseq
  %v2565 = vshrl.u32 %v2564, 7
  %v2566 = vsub.s32 %v2563, %v2565
  %v2567 = vrot.slane %v2545, %v2566
  %v2569 = vunpack.c.l.s4 1966171168
  %v2570 = vunpack.c.0.s8 %v2569
  %v2571 = vlaneseq
  %v2572 = vshrl.u32 %v2571, 7
  %v2573 = vsub.s32 %v2570, %v2572
  %v2574 = vrot.slane %v2546, %v2573
  %v2575 = vcombine.high %v2553, %v2553
  %v2576 = vcombine.high %v2560, %v2560
  %v2577 = vcombine.high %v2567, %v2567
  %v2578 = vcombine.high %v2574, %v2574
  %v2587 = vmul.f32 %v2454, %v2553
  %v2588 = vmul.f32 %v2456, %v2567
  %v2589 = vmul.f32 %v2458, %v2575
  %v2590 = vmul.f32 %v2460, %v2577
  %v2591 = vmul.f32 %v2462, %v2560
  %v2592 = vmul.f32 %v2464, %v2574
  %v2593 = vmul.f32 %v2466, %v2576
  %v2594 = vmul.f32 %v2468, %v2578
  %v2603 = vrot.slane %v2295, 1
  %v2604 = vrot.slane %v2297, 1
  %v2605 = vrot.slane %v2299, 1
  %v2606 = vrot.slane %v2301, 1
  %v2607 = vrot.slane %v2303, 1
  %v2608 = vrot.slane %v2305, 1
  %v2609 = vrot.slane %v2307, 1
  %v2610 = vrot.slane %v2309, 1
  %v2619 = vadd.f32 %v2603, %v2587
  %v2620 = vadd.f32 %v2604, %v2588
  %v2621 = vadd.f32 %v2605, %v2589
  %v2622 = vadd.f32 %v2606, %v2590
  %v2623 = vadd.f32 %v2607, %v2591
  %v2624 = vadd.f32 %v2608, %v2592
  %v2625 = vadd.f32 %v2609, %v2593
  %v2626 = vadd.f32 %v2610, %v2594
  %v2627 = vtanh.pop %v2619
  %v2628 = vtanh.pop %v2620
  %v2629 = vtanh.pop %v2621
  %v2630 = vtanh.pop %v2622
  %v2631 = vtanh.pop %v2623
  %v2632 = vtanh.pop %v2624
  %v2633 = vtanh.pop %v2625
  %v2634 = vtanh.pop %v2626
  %v2635 = vsub.f32 1.0, %v2528
  %v2644 = vcombine.low %v2627, %v2628
  %v2645 = vcombine.low %v2629, %v2630
  %v2646 = vcombine.low %v2631, %v2632
  %v2647 = vcombine.low %v2633, %v2634
  %v2649 = vunpack.c.l.s4 1966171168
  %v2650 = vunpack.c.0.s8 %v2649
  %v2651 = vlaneseq
  %v2652 = vshrl.u32 %v2651, 7
  %v2653 = vsub.s32 %v2650, %v2652
  %v2654 = vrot.slane %v2644, %v2653
  %v2656 = vunpack.c.l.s4 1966171168
  %v2657 = vunpack.c.0.s8 %v2656
  %v2658 = vlaneseq
  %v2659 = vshrl.u32 %v2658, 7
  %v2660 = vsub.s32 %v2657, %v2659
  %v2661 = vrot.slane %v2645, %v2660
  %v2663 = vunpack.c.l.s4 1966171168
  %v2664 = vunpack.c.0.s8 %v2663
  %v2665 = vlaneseq
  %v2666 = vshrl.u32 %v2665, 7
  %v2667 = vsub.s32 %v2664, %v2666
  %v2668 = vrot.slane %v2646, %v2667
  %v2670 = vunpack.c.l.s4 1966171168
  %v2671 = vunpack.c.0.s8 %v2670
  %v2672 = vlaneseq
  %v2673 = vshrl.u32 %v2672, 7
  %v2674 = vsub.s32 %v2671, %v2673
  %v2675 = vrot.slane %v2647, %v2674
  %v2676 = vcombine.low %v2654, %v2661
  %v2677 = vcombine.low %v2668, %v2675
  %v2679 = vunpack.c.l.s4 1966171168
  %v2680 = vunpack.c.0.s8 %v2679
  %v2681 = vlaneseq
  %v2682 = vshrl.u32 %v2681, 7
  %v2683 = vsub.s32 %v2680, %v2682
  %v2684 = vrot.slane %v2676, %v2683
  %v2686 = vunpack.c.l.s4 1966171168
  %v2687 = vunpack.c.0.s8 %v2686
  %v2688 = vlaneseq
  %v2689 = vshrl.u32 %v2688, 7
  %v2690 = vsub.s32 %v2687, %v2689
  %v2691 = vrot.slane %v2677, %v2690
  %v2692 = vcombine.low %v2684, %v2691
  %v2694 = vmul.f32 %v2635, %v2692
  %v2695 = vmul.f32 %v2528, %v2293
  %v2696 = vadd.f32 %v2694, %v2695
  %s2697 = scalar_lea.vmem [#allocation2], 6
  %v2698 = vld [vmem:[%s2697] ss:$8 sm:$0x3]
  %s2699 = scalar_lea.vmem [#allocation2], 22
  %v2700 = vld [vmem:[%s2699] ss:$8 sm:$0x3]
  %s2701 = scalar_lea.vmem [#allocation2], 38
  %v2702 = vld [vmem:[%s2701] ss:$8 sm:$0x3]
  %s2703 = scalar_lea.vmem [#allocation2], 54
  %v2704 = vld [vmem:[%s2703] ss:$8 sm:$0x3]
  %s2705 = scalar_lea.vmem [#allocation2], 70
  %v2706 = vld [vmem:[%s2705] ss:$8 sm:$0x3]
  %s2707 = scalar_lea.vmem [#allocation2], 86
  %v2708 = vld [vmem:[%s2707] ss:$8 sm:$0x3]
  %s2709 = scalar_lea.vmem [#allocation2], 102
  %v2710 = vld [vmem:[%s2709] ss:$8 sm:$0x3]
  %s2711 = scalar_lea.vmem [#allocation2], 118
  %v2712 = vld [vmem:[%s2711] ss:$8 sm:$0x3]
  %v2713 = vpack.c.bf16 %v2696, %v2696
  %v2715 = vsel %vm119, %v2713, 0
  %2717 = vmatprep.subr.bf16.mxu0 %v281
  %2718 = vmatpush1.bf16.msra.mxu0 %v280
  %2719 = vmatprep.subr.bf16.mxu0 %v283
  %2720 = vmatpush1.bf16.msra.mxu0 %v282
  %2721 = vmatprep.subr.bf16.mxu0 %v285
  %2722 = vmatpush1.bf16.msra.mxu0 %v284
  %2723 = vmatprep.subr.bf16.mxu0 %v287
  %2724 = vmatpush1.bf16.msra.mxu0 %v286
  %2725 = vmatprep.subr.bf16.mxu0 0
  %2726 = vmatpush1.bf16.msra.mxu0 0
  %2727 = vmatprep.subr.bf16.mxu0 0
  %2728 = vmatpush1.bf16.msra.mxu0 0
  %2729 = vmatprep.subr.bf16.mxu0 0
  %2730 = vmatpush1.bf16.msra.mxu0 0
  %2731 = vmatprep.subr.bf16.mxu0 0
  %2732 = vmatpush1.bf16.msra.mxu0 0
  %2733 = vmatprep.subr.bf16.mxu0 0
  %2734 = vmatpush1.bf16.msra.mxu0 0
  %2735 = vmatprep.subr.bf16.mxu0 0
  %2736 = vmatpush1.bf16.msra.mxu0 0
  %2737 = vmatprep.subr.bf16.mxu0 0
  %2738 = vmatpush1.bf16.msra.mxu0 0
  %2739 = vmatprep.subr.bf16.mxu0 0
  %2740 = vmatpush1.bf16.msra.mxu0 0
  %2741 = vmatprep.subr.bf16.mxu0 0
  %2742 = vmatpush1.bf16.msra.mxu0 0
  %2743 = vmatprep.subr.bf16.mxu0 0
  %2744 = vmatpush1.bf16.msra.mxu0 0
  %2745 = vmatprep.subr.bf16.mxu0 0
  %2746 = vmatpush1.bf16.msra.mxu0 0
  %2747 = vmatprep.subr.bf16.mxu0 0
  %2748 = vmatpush1.bf16.msra.mxu0 0
  %2749 = vmatprep.mubr.bf16.mxu0 0
  %2750 = vmatmul.mubr.bf16.gmra.mrb[0].mxu0 %v2715
  %v2751 = vpop.f32.mrb[0].mxu0
  %v2752 = vadd.f32 %v249, %v2751
  %v2753 = vpop.f32.mrb[0].mxu0
  %v2754 = vadd.f32 %v253, %v2753
  %v2755 = vpop.f32.mrb[0].mxu0
  %v2756 = vpop.f32.mrb[0].mxu0
  %2757 = vdwg.mxu0
  %v2759 = vcombine.high %v2752, %v2752
  %v2761 = vunpack.c.l.s4 1966171168
  %v2762 = vunpack.c.0.s8 %v2761
  %v2763 = vlaneseq
  %v2764 = vshrl.u32 %v2763, 7
  %v2765 = vsub.s32 %v2762, %v2764
  %v2766 = vrot.slane %v2752, %v2765
  %v2768 = vunpack.c.l.s4 1966171168
  %v2769 = vunpack.c.0.s8 %v2768
  %v2770 = vlaneseq
  %v2771 = vshrl.u32 %v2770, 7
  %v2772 = vsub.s32 %v2769, %v2771
  %v2773 = vrot.slane %v2759, %v2772
  %v2774 = vcombine.high %v2766, %v2766
  %v2775 = vcombine.high %v2773, %v2773
  %v2777 = vunpack.c.l.s4 1966171168
  %v2778 = vunpack.c.0.s8 %v2777
  %v2779 = vlaneseq
  %v2780 = vshrl.u32 %v2779, 7
  %v2781 = vsub.s32 %v2778, %v2780
  %v2782 = vrot.slane %v2766, %v2781
  %v2784 = vunpack.c.l.s4 1966171168
  %v2785 = vunpack.c.0.s8 %v2784
  %v2786 = vlaneseq
  %v2787 = vshrl.u32 %v2786, 7
  %v2788 = vsub.s32 %v2785, %v2787
  %v2789 = vrot.slane %v2773, %v2788
  %v2791 = vunpack.c.l.s4 1966171168
  %v2792 = vunpack.c.0.s8 %v2791
  %v2793 = vlaneseq
  %v2794 = vshrl.u32 %v2793, 7
  %v2795 = vsub.s32 %v2792, %v2794
  %v2796 = vrot.slane %v2774, %v2795
  %v2798 = vunpack.c.l.s4 1966171168
  %v2799 = vunpack.c.0.s8 %v2798
  %v2800 = vlaneseq
  %v2801 = vshrl.u32 %v2800, 7
  %v2802 = vsub.s32 %v2799, %v2801
  %v2803 = vrot.slane %v2775, %v2802
  %v2804 = vcombine.high %v2782, %v2782
  %v2805 = vcombine.high %v2789, %v2789
  %v2806 = vcombine.high %v2796, %v2796
  %v2807 = vcombine.high %v2803, %v2803
  %v2816 = vadd.f32 %v2698, %v2782
  %v2817 = vadd.f32 %v2700, %v2796
  %v2818 = vadd.f32 %v2702, %v2804
  %v2819 = vadd.f32 %v2704, %v2806
  %v2820 = vadd.f32 %v2706, %v2789
  %v2821 = vadd.f32 %v2708, %v2803
  %v2822 = vadd.f32 %v2710, %v2805
  %v2823 = vadd.f32 %v2712, %v2807
  %v2824 = vxor.u32 %v2816, 2147483648
  %v2825 = vxor.u32 %v2817, 2147483648
  %v2826 = vxor.u32 %v2818, 2147483648
  %v2827 = vxor.u32 %v2819, 2147483648
  %v2828 = vxor.u32 %v2820, 2147483648
  %v2829 = vxor.u32 %v2821, 2147483648
  %v2830 = vxor.u32 %v2822, 2147483648
  %v2831 = vxor.u32 %v2823, 2147483648
  %v2832 = vmul.f32 %v2824, 1.442695
  %v2833 = vpow.pop %v2832
  %v2834 = vmul.f32 %v2825, 1.442695
  %v2835 = vpow.pop %v2834
  %v2836 = vmul.f32 %v2826, 1.442695
  %v2837 = vpow.pop %v2836
  %v2838 = vmul.f32 %v2827, 1.442695
  %v2839 = vpow.pop %v2838
  %v2840 = vmul.f32 %v2828, 1.442695
  %v2841 = vpow.pop %v2840
  %v2842 = vmul.f32 %v2829, 1.442695
  %v2843 = vpow.pop %v2842
  %v2844 = vmul.f32 %v2830, 1.442695
  %v2845 = vpow.pop %v2844
  %v2846 = vmul.f32 %v2831, 1.442695
  %v2847 = vpow.pop %v2846
  %v2848 = vadd.f32 %v2833, 1.0
  %v2849 = vadd.f32 %v2835, 1.0
  %v2850 = vadd.f32 %v2837, 1.0
  %v2851 = vadd.f32 %v2839, 1.0
  %v2852 = vadd.f32 %v2841, 1.0
  %v2853 = vadd.f32 %v2843, 1.0
  %v2854 = vadd.f32 %v2845, 1.0
  %v2855 = vadd.f32 %v2847, 1.0
  %v2856 = vrcp.pop %v2848
  %v2857 = vmul.f32 1.0, %v2856
  %v2858 = vrcp.pop %v2849
  %v2859 = vmul.f32 1.0, %v2858
  %v2860 = vrcp.pop %v2850
  %v2861 = vmul.f32 1.0, %v2860
  %v2862 = vrcp.pop %v2851
  %v2863 = vmul.f32 1.0, %v2862
  %v2864 = vrcp.pop %v2852
  %v2865 = vmul.f32 1.0, %v2864
  %v2866 = vrcp.pop %v2853
  %v2867 = vmul.f32 1.0, %v2866
  %v2868 = vrcp.pop %v2854
  %v2869 = vmul.f32 1.0, %v2868
  %v2870 = vrcp.pop %v2855
  %v2871 = vmul.f32 1.0, %v2870
  %v2880 = vcombine.low %v2857, %v2859
  %v2881 = vcombine.low %v2861, %v2863
  %v2882 = vcombine.low %v2865, %v2867
  %v2883 = vcombine.low %v2869, %v2871
  %v2885 = vunpack.c.l.s4 1966171168
  %v2886 = vunpack.c.0.s8 %v2885
  %v2887 = vlaneseq
  %v2888 = vshrl.u32 %v2887, 7
  %v2889 = vsub.s32 %v2886, %v2888
  %v2890 = vrot.slane %v2880, %v2889
  %v2892 = vunpack.c.l.s4 1966171168
  %v2893 = vunpack.c.0.s8 %v2892
  %v2894 = vlaneseq
  %v2895 = vshrl.u32 %v2894, 7
  %v2896 = vsub.s32 %v2893, %v2895
  %v2897 = vrot.slane %v2881, %v2896
  %v2899 = vunpack.c.l.s4 1966171168
  %v2900 = vunpack.c.0.s8 %v2899
  %v2901 = vlaneseq
  %v2902 = vshrl.u32 %v2901, 7
  %v2903 = vsub.s32 %v2900, %v2902
  %v2904 = vrot.slane %v2882, %v2903
  %v2906 = vunpack.c.l.s4 1966171168
  %v2907 = vunpack.c.0.s8 %v2906
  %v2908 = vlaneseq
  %v2909 = vshrl.u32 %v2908, 7
  %v2910 = vsub.s32 %v2907, %v2909
  %v2911 = vrot.slane %v2883, %v2910
  %v2912 = vcombine.low %v2890, %v2897
  %v2913 = vcombine.low %v2904, %v2911
  %v2915 = vunpack.c.l.s4 1966171168
  %v2916 = vunpack.c.0.s8 %v2915
  %v2917 = vlaneseq
  %v2918 = vshrl.u32 %v2917, 7
  %v2919 = vsub.s32 %v2916, %v2918
  %v2920 = vrot.slane %v2912, %v2919
  %v2922 = vunpack.c.l.s4 1966171168
  %v2923 = vunpack.c.0.s8 %v2922
  %v2924 = vlaneseq
  %v2925 = vshrl.u32 %v2924, 7
  %v2926 = vsub.s32 %v2923, %v2925
  %v2927 = vrot.slane %v2913, %v2926
  %v2928 = vcombine.low %v2920, %v2927
  %2930 = vrot.lane.b32.xlu0 %v2928, 64
  %v2931 = vpop.permute.xlu0 %2930
  %v2933 = vcombine.high %v2754, %v2754
  %v2935 = vunpack.c.l.s4 1966171168
  %v2936 = vunpack.c.0.s8 %v2935
  %v2937 = vlaneseq
  %v2938 = vshrl.u32 %v2937, 7
  %v2939 = vsub.s32 %v2936, %v2938
  %v2940 = vrot.slane %v2754, %v2939
  %v2942 = vunpack.c.l.s4 1966171168
  %v2943 = vunpack.c.0.s8 %v2942
  %v2944 = vlaneseq
  %v2945 = vshrl.u32 %v2944, 7
  %v2946 = vsub.s32 %v2943, %v2945
  %v2947 = vrot.slane %v2933, %v2946
  %v2948 = vcombine.high %v2940, %v2940
  %v2949 = vcombine.high %v2947, %v2947
  %v2951 = vunpack.c.l.s4 1966171168
  %v2952 = vunpack.c.0.s8 %v2951
  %v2953 = vlaneseq
  %v2954 = vshrl.u32 %v2953, 7
  %v2955 = vsub.s32 %v2952, %v2954
  %v2956 = vrot.slane %v2940, %v2955
  %v2958 = vunpack.c.l.s4 1966171168
  %v2959 = vunpack.c.0.s8 %v2958
  %v2960 = vlaneseq
  %v2961 = vshrl.u32 %v2960, 7
  %v2962 = vsub.s32 %v2959, %v2961
  %v2963 = vrot.slane %v2947, %v2962
  %v2965 = vunpack.c.l.s4 1966171168
  %v2966 = vunpack.c.0.s8 %v2965
  %v2967 = vlaneseq
  %v2968 = vshrl.u32 %v2967, 7
  %v2969 = vsub.s32 %v2966, %v2968
  %v2970 = vrot.slane %v2948, %v2969
  %v2972 = vunpack.c.l.s4 1966171168
  %v2973 = vunpack.c.0.s8 %v2972
  %v2974 = vlaneseq
  %v2975 = vshrl.u32 %v2974, 7
  %v2976 = vsub.s32 %v2973, %v2975
  %v2977 = vrot.slane %v2949, %v2976
  %v2978 = vcombine.high %v2956, %v2956
  %v2979 = vcombine.high %v2963, %v2963
  %v2980 = vcombine.high %v2970, %v2970
  %v2981 = vcombine.high %v2977, %v2977
  %v2990 = vmul.f32 %v2857, %v2956
  %v2991 = vmul.f32 %v2859, %v2970
  %v2992 = vmul.f32 %v2861, %v2978
  %v2993 = vmul.f32 %v2863, %v2980
  %v2994 = vmul.f32 %v2865, %v2963
  %v2995 = vmul.f32 %v2867, %v2977
  %v2996 = vmul.f32 %v2869, %v2979
  %v2997 = vmul.f32 %v2871, %v2981
  %v3006 = vrot.slane %v2698, 1
  %v3007 = vrot.slane %v2700, 1
  %v3008 = vrot.slane %v2702, 1
  %v3009 = vrot.slane %v2704, 1
  %v3010 = vrot.slane %v2706, 1
  %v3011 = vrot.slane %v2708, 1
  %v3012 = vrot.slane %v2710, 1
  %v3013 = vrot.slane %v2712, 1
  %v3022 = vadd.f32 %v3006, %v2990
  %v3023 = vadd.f32 %v3007, %v2991
  %v3024 = vadd.f32 %v3008, %v2992
  %v3025 = vadd.f32 %v3009, %v2993
  %v3026 = vadd.f32 %v3010, %v2994
  %v3027 = vadd.f32 %v3011, %v2995
  %v3028 = vadd.f32 %v3012, %v2996
  %v3029 = vadd.f32 %v3013, %v2997
  %v3030 = vtanh.pop %v3022
  %v3031 = vtanh.pop %v3023
  %v3032 = vtanh.pop %v3024
  %v3033 = vtanh.pop %v3025
  %v3034 = vtanh.pop %v3026
  %v3035 = vtanh.pop %v3027
  %v3036 = vtanh.pop %v3028
  %v3037 = vtanh.pop %v3029
  %v3038 = vsub.f32 1.0, %v2931
  %v3047 = vcombine.low %v3030, %v3031
  %v3048 = vcombine.low %v3032, %v3033
  %v3049 = vcombine.low %v3034, %v3035
  %v3050 = vcombine.low %v3036, %v3037
  %v3052 = vunpack.c.l.s4 1966171168
  %v3053 = vunpack.c.0.s8 %v3052
  %v3054 = vlaneseq
  %v3055 = vshrl.u32 %v3054, 7
  %v3056 = vsub.s32 %v3053, %v3055
  %v3057 = vrot.slane %v3047, %v3056
  %v3059 = vunpack.c.l.s4 1966171168
  %v3060 = vunpack.c.0.s8 %v3059
  %v3061 = vlaneseq
  %v3062 = vshrl.u32 %v3061, 7
  %v3063 = vsub.s32 %v3060, %v3062
  %v3064 = vrot.slane %v3048, %v3063
  %v3066 = vunpack.c.l.s4 1966171168
  %v3067 = vunpack.c.0.s8 %v3066
  %v3068 = vlaneseq
  %v3069 = vshrl.u32 %v3068, 7
  %v3070 = vsub.s32 %v3067, %v3069
  %v3071 = vrot.slane %v3049, %v3070
  %v3073 = vunpack.c.l.s4 1966171168
  %v3074 = vunpack.c.0.s8 %v3073
  %v3075 = vlaneseq
  %v3076 = vshrl.u32 %v3075, 7
  %v3077 = vsub.s32 %v3074, %v3076
  %v3078 = vrot.slane %v3050, %v3077
  %v3079 = vcombine.low %v3057, %v3064
  %v3080 = vcombine.low %v3071, %v3078
  %v3082 = vunpack.c.l.s4 1966171168
  %v3083 = vunpack.c.0.s8 %v3082
  %v3084 = vlaneseq
  %v3085 = vshrl.u32 %v3084, 7
  %v3086 = vsub.s32 %v3083, %v3085
  %v3087 = vrot.slane %v3079, %v3086
  %v3089 = vunpack.c.l.s4 1966171168
  %v3090 = vunpack.c.0.s8 %v3089
  %v3091 = vlaneseq
  %v3092 = vshrl.u32 %v3091, 7
  %v3093 = vsub.s32 %v3090, %v3092
  %v3094 = vrot.slane %v3080, %v3093
  %v3095 = vcombine.low %v3087, %v3094
  %v3097 = vmul.f32 %v3038, %v3095
  %v3098 = vmul.f32 %v2931, %v2696
  %v3099 = vadd.f32 %v3097, %v3098
  %s3100 = scalar_lea.vmem [#allocation2], 7
  %v3101 = vld [vmem:[%s3100] ss:$8 sm:$0x3]
  %s3102 = scalar_lea.vmem [#allocation2], 23
  %v3103 = vld [vmem:[%s3102] ss:$8 sm:$0x3]
  %s3104 = scalar_lea.vmem [#allocation2], 39
  %v3105 = vld [vmem:[%s3104] ss:$8 sm:$0x3]
  %s3106 = scalar_lea.vmem [#allocation2], 55
  %v3107 = vld [vmem:[%s3106] ss:$8 sm:$0x3]
  %s3108 = scalar_lea.vmem [#allocation2], 71
  %v3109 = vld [vmem:[%s3108] ss:$8 sm:$0x3]
  %s3110 = scalar_lea.vmem [#allocation2], 87
  %v3111 = vld [vmem:[%s3110] ss:$8 sm:$0x3]
  %s3112 = scalar_lea.vmem [#allocation2], 103
  %v3113 = vld [vmem:[%s3112] ss:$8 sm:$0x3]
  %s3114 = scalar_lea.vmem [#allocation2], 119
  %v3115 = vld [vmem:[%s3114] ss:$8 sm:$0x3]
  %v3116 = vpack.c.bf16 %v3099, %v3099
  %v3118 = vsel %vm119, %v3116, 0
  %3120 = vmatprep.subr.bf16.mxu0 %v281
  %3121 = vmatpush1.bf16.msra.mxu0 %v280
  %3122 = vmatprep.subr.bf16.mxu0 %v283
  %3123 = vmatpush1.bf16.msra.mxu0 %v282
  %3124 = vmatprep.subr.bf16.mxu0 %v285
  %3125 = vmatpush1.bf16.msra.mxu0 %v284
  %3126 = vmatprep.subr.bf16.mxu0 %v287
  %3127 = vmatpush1.bf16.msra.mxu0 %v286
  %3128 = vmatprep.subr.bf16.mxu0 0
  %3129 = vmatpush1.bf16.msra.mxu0 0
  %3130 = vmatprep.subr.bf16.mxu0 0
  %3131 = vmatpush1.bf16.msra.mxu0 0
  %3132 = vmatprep.subr.bf16.mxu0 0
  %3133 = vmatpush1.bf16.msra.mxu0 0
  %3134 = vmatprep.subr.bf16.mxu0 0
  %3135 = vmatpush1.bf16.msra.mxu0 0
  %3136 = vmatprep.subr.bf16.mxu0 0
  %3137 = vmatpush1.bf16.msra.mxu0 0
  %3138 = vmatprep.subr.bf16.mxu0 0
  %3139 = vmatpush1.bf16.msra.mxu0 0
  %3140 = vmatprep.subr.bf16.mxu0 0
  %3141 = vmatpush1.bf16.msra.mxu0 0
  %3142 = vmatprep.subr.bf16.mxu0 0
  %3143 = vmatpush1.bf16.msra.mxu0 0
  %3144 = vmatprep.subr.bf16.mxu0 0
  %3145 = vmatpush1.bf16.msra.mxu0 0
  %3146 = vmatprep.subr.bf16.mxu0 0
  %3147 = vmatpush1.bf16.msra.mxu0 0
  %3148 = vmatprep.subr.bf16.mxu0 0
  %3149 = vmatpush1.bf16.msra.mxu0 0
  %3150 = vmatprep.subr.bf16.mxu0 0
  %3151 = vmatpush1.bf16.msra.mxu0 0
  %3152 = vmatprep.mubr.bf16.mxu0 0
  %3153 = vmatmul.mubr.bf16.gmra.mrb[0].mxu0 %v3118
  %v3154 = vpop.f32.mrb[0].mxu0
  %v3155 = vadd.f32 %v249, %v3154
  %v3156 = vpop.f32.mrb[0].mxu0
  %v3157 = vadd.f32 %v253, %v3156
  %v3158 = vpop.f32.mrb[0].mxu0
  %v3159 = vpop.f32.mrb[0].mxu0
  %3160 = vdwg.mxu0
  %v3162 = vcombine.high %v3155, %v3155
  %v3164 = vunpack.c.l.s4 1966171168
  %v3165 = vunpack.c.0.s8 %v3164
  %v3166 = vlaneseq
  %v3167 = vshrl.u32 %v3166, 7
  %v3168 = vsub.s32 %v3165, %v3167
  %v3169 = vrot.slane %v3155, %v3168
  %v3171 = vunpack.c.l.s4 1966171168
  %v3172 = vunpack.c.0.s8 %v3171
  %v3173 = vlaneseq
  %v3174 = vshrl.u32 %v3173, 7
  %v3175 = vsub.s32 %v3172, %v3174
  %v3176 = vrot.slane %v3162, %v3175
  %v3177 = vcombine.high %v3169, %v3169
  %v3178 = vcombine.high %v3176, %v3176
  %v3180 = vunpack.c.l.s4 1966171168
  %v3181 = vunpack.c.0.s8 %v3180
  %v3182 = vlaneseq
  %v3183 = vshrl.u32 %v3182, 7
  %v3184 = vsub.s32 %v3181, %v3183
  %v3185 = vrot.slane %v3169, %v3184
  %v3187 = vunpack.c.l.s4 1966171168
  %v3188 = vunpack.c.0.s8 %v3187
  %v3189 = vlaneseq
  %v3190 = vshrl.u32 %v3189, 7
  %v3191 = vsub.s32 %v3188, %v3190
  %v3192 = vrot.slane %v3176, %v3191
  %v3194 = vunpack.c.l.s4 1966171168
  %v3195 = vunpack.c.0.s8 %v3194
  %v3196 = vlaneseq
  %v3197 = vshrl.u32 %v3196, 7
  %v3198 = vsub.s32 %v3195, %v3197
  %v3199 = vrot.slane %v3177, %v3198
  %v3201 = vunpack.c.l.s4 1966171168
  %v3202 = vunpack.c.0.s8 %v3201
  %v3203 = vlaneseq
  %v3204 = vshrl.u32 %v3203, 7
  %v3205 = vsub.s32 %v3202, %v3204
  %v3206 = vrot.slane %v3178, %v3205
  %v3207 = vcombine.high %v3185, %v3185
  %v3208 = vcombine.high %v3192, %v3192
  %v3209 = vcombine.high %v3199, %v3199
  %v3210 = vcombine.high %v3206, %v3206
  %v3219 = vadd.f32 %v3101, %v3185
  %v3220 = vadd.f32 %v3103, %v3199
  %v3221 = vadd.f32 %v3105, %v3207
  %v3222 = vadd.f32 %v3107, %v3209
  %v3223 = vadd.f32 %v3109, %v3192
  %v3224 = vadd.f32 %v3111, %v3206
  %v3225 = vadd.f32 %v3113, %v3208
  %v3226 = vadd.f32 %v3115, %v3210
  %v3227 = vxor.u32 %v3219, 2147483648
  %v3228 = vxor.u32 %v3220, 2147483648
  %v3229 = vxor.u32 %v3221, 2147483648
  %v3230 = vxor.u32 %v3222, 2147483648
  %v3231 = vxor.u32 %v3223, 2147483648
  %v3232 = vxor.u32 %v3224, 2147483648
  %v3233 = vxor.u32 %v3225, 2147483648
  %v3234 = vxor.u32 %v3226, 2147483648
  %v3235 = vmul.f32 %v3227, 1.442695
  %v3236 = vpow.pop %v3235
  %v3237 = vmul.f32 %v3228, 1.442695
  %v3238 = vpow.pop %v3237
  %v3239 = vmul.f32 %v3229, 1.442695
  %v3240 = vpow.pop %v3239
  %v3241 = vmul.f32 %v3230, 1.442695
  %v3242 = vpow.pop %v3241
  %v3243 = vmul.f32 %v3231, 1.442695
  %v3244 = vpow.pop %v3243
  %v3245 = vmul.f32 %v3232, 1.442695
  %v3246 = vpow.pop %v3245
  %v3247 = vmul.f32 %v3233, 1.442695
  %v3248 = vpow.pop %v3247
  %v3249 = vmul.f32 %v3234, 1.442695
  %v3250 = vpow.pop %v3249
  %v3251 = vadd.f32 %v3236, 1.0
  %v3252 = vadd.f32 %v3238, 1.0
  %v3253 = vadd.f32 %v3240, 1.0
  %v3254 = vadd.f32 %v3242, 1.0
  %v3255 = vadd.f32 %v3244, 1.0
  %v3256 = vadd.f32 %v3246, 1.0
  %v3257 = vadd.f32 %v3248, 1.0
  %v3258 = vadd.f32 %v3250, 1.0
  %v3259 = vrcp.pop %v3251
  %v3260 = vmul.f32 1.0, %v3259
  %v3261 = vrcp.pop %v3252
  %v3262 = vmul.f32 1.0, %v3261
  %v3263 = vrcp.pop %v3253
  %v3264 = vmul.f32 1.0, %v3263
  %v3265 = vrcp.pop %v3254
  %v3266 = vmul.f32 1.0, %v3265
  %v3267 = vrcp.pop %v3255
  %v3268 = vmul.f32 1.0, %v3267
  %v3269 = vrcp.pop %v3256
  %v3270 = vmul.f32 1.0, %v3269
  %v3271 = vrcp.pop %v3257
  %v3272 = vmul.f32 1.0, %v3271
  %v3273 = vrcp.pop %v3258
  %v3274 = vmul.f32 1.0, %v3273
  %v3283 = vcombine.low %v3260, %v3262
  %v3284 = vcombine.low %v3264, %v3266
  %v3285 = vcombine.low %v3268, %v3270
  %v3286 = vcombine.low %v3272, %v3274
  %v3288 = vunpack.c.l.s4 1966171168
  %v3289 = vunpack.c.0.s8 %v3288
  %v3290 = vlaneseq
  %v3291 = vshrl.u32 %v3290, 7
  %v3292 = vsub.s32 %v3289, %v3291
  %v3293 = vrot.slane %v3283, %v3292
  %v3295 = vunpack.c.l.s4 1966171168
  %v3296 = vunpack.c.0.s8 %v3295
  %v3297 = vlaneseq
  %v3298 = vshrl.u32 %v3297, 7
  %v3299 = vsub.s32 %v3296, %v3298
  %v3300 = vrot.slane %v3284, %v3299
  %v3302 = vunpack.c.l.s4 1966171168
  %v3303 = vunpack.c.0.s8 %v3302
  %v3304 = vlaneseq
  %v3305 = vshrl.u32 %v3304, 7
  %v3306 = vsub.s32 %v3303, %v3305
  %v3307 = vrot.slane %v3285, %v3306
  %v3309 = vunpack.c.l.s4 1966171168
  %v3310 = vunpack.c.0.s8 %v3309
  %v3311 = vlaneseq
  %v3312 = vshrl.u32 %v3311, 7
  %v3313 = vsub.s32 %v3310, %v3312
  %v3314 = vrot.slane %v3286, %v3313
  %v3315 = vcombine.low %v3293, %v3300
  %v3316 = vcombine.low %v3307, %v3314
  %v3318 = vunpack.c.l.s4 1966171168
  %v3319 = vunpack.c.0.s8 %v3318
  %v3320 = vlaneseq
  %v3321 = vshrl.u32 %v3320, 7
  %v3322 = vsub.s32 %v3319, %v3321
  %v3323 = vrot.slane %v3315, %v3322
  %v3325 = vunpack.c.l.s4 1966171168
  %v3326 = vunpack.c.0.s8 %v3325
  %v3327 = vlaneseq
  %v3328 = vshrl.u32 %v3327, 7
  %v3329 = vsub.s32 %v3326, %v3328
  %v3330 = vrot.slane %v3316, %v3329
  %v3331 = vcombine.low %v3323, %v3330
  %3333 = vrot.lane.b32.xlu0 %v3331, 64
  %v3334 = vpop.permute.xlu0 %3333
  %v3336 = vcombine.high %v3157, %v3157
  %v3338 = vunpack.c.l.s4 1966171168
  %v3339 = vunpack.c.0.s8 %v3338
  %v3340 = vlaneseq
  %v3341 = vshrl.u32 %v3340, 7
  %v3342 = vsub.s32 %v3339, %v3341
  %v3343 = vrot.slane %v3157, %v3342
  %v3345 = vunpack.c.l.s4 1966171168
  %v3346 = vunpack.c.0.s8 %v3345
  %v3347 = vlaneseq
  %v3348 = vshrl.u32 %v3347, 7
  %v3349 = vsub.s32 %v3346, %v3348
  %v3350 = vrot.slane %v3336, %v3349
  %v3351 = vcombine.high %v3343, %v3343
  %v3352 = vcombine.high %v3350, %v3350
  %v3354 = vunpack.c.l.s4 1966171168
  %v3355 = vunpack.c.0.s8 %v3354
  %v3356 = vlaneseq
  %v3357 = vshrl.u32 %v3356, 7
  %v3358 = vsub.s32 %v3355, %v3357
  %v3359 = vrot.slane %v3343, %v3358
  %v3361 = vunpack.c.l.s4 1966171168
  %v3362 = vunpack.c.0.s8 %v3361
  %v3363 = vlaneseq
  %v3364 = vshrl.u32 %v3363, 7
  %v3365 = vsub.s32 %v3362, %v3364
  %v3366 = vrot.slane %v3350, %v3365
  %v3368 = vunpack.c.l.s4 1966171168
  %v3369 = vunpack.c.0.s8 %v3368
  %v3370 = vlaneseq
  %v3371 = vshrl.u32 %v3370, 7
  %v3372 = vsub.s32 %v3369, %v3371
  %v3373 = vrot.slane %v3351, %v3372
  %v3375 = vunpack.c.l.s4 1966171168
  %v3376 = vunpack.c.0.s8 %v3375
  %v3377 = vlaneseq
  %v3378 = vshrl.u32 %v3377, 7
  %v3379 = vsub.s32 %v3376, %v3378
  %v3380 = vrot.slane %v3352, %v3379
  %v3381 = vcombine.high %v3359, %v3359
  %v3382 = vcombine.high %v3366, %v3366
  %v3383 = vcombine.high %v3373, %v3373
  %v3384 = vcombine.high %v3380, %v3380
  %v3393 = vmul.f32 %v3260, %v3359
  %v3394 = vmul.f32 %v3262, %v3373
  %v3395 = vmul.f32 %v3264, %v3381
  %v3396 = vmul.f32 %v3266, %v3383
  %v3397 = vmul.f32 %v3268, %v3366
  %v3398 = vmul.f32 %v3270, %v3380
  %v3399 = vmul.f32 %v3272, %v3382
  %v3400 = vmul.f32 %v3274, %v3384
  %v3409 = vrot.slane %v3101, 1
  %v3410 = vrot.slane %v3103, 1
  %v3411 = vrot.slane %v3105, 1
  %v3412 = vrot.slane %v3107, 1
  %v3413 = vrot.slane %v3109, 1
  %v3414 = vrot.slane %v3111, 1
  %v3415 = vrot.slane %v3113, 1
  %v3416 = vrot.slane %v3115, 1
  %v3425 = vadd.f32 %v3409, %v3393
  %v3426 = vadd.f32 %v3410, %v3394
  %v3427 = vadd.f32 %v3411, %v3395
  %v3428 = vadd.f32 %v3412, %v3396
  %v3429 = vadd.f32 %v3413, %v3397
  %v3430 = vadd.f32 %v3414, %v3398
  %v3431 = vadd.f32 %v3415, %v3399
  %v3432 = vadd.f32 %v3416, %v3400
  %v3433 = vtanh.pop %v3425
  %v3434 = vtanh.pop %v3426
  %v3435 = vtanh.pop %v3427
  %v3436 = vtanh.pop %v3428
  %v3437 = vtanh.pop %v3429
  %v3438 = vtanh.pop %v3430
  %v3439 = vtanh.pop %v3431
  %v3440 = vtanh.pop %v3432
  %v3441 = vsub.f32 1.0, %v3334
  %v3450 = vcombine.low %v3433, %v3434
  %v3451 = vcombine.low %v3435, %v3436
  %v3452 = vcombine.low %v3437, %v3438
  %v3453 = vcombine.low %v3439, %v3440
  %v3455 = vunpack.c.l.s4 1966171168
  %v3456 = vunpack.c.0.s8 %v3455
  %v3457 = vlaneseq
  %v3458 = vshrl.u32 %v3457, 7
  %v3459 = vsub.s32 %v3456, %v3458
  %v3460 = vrot.slane %v3450, %v3459
  %v3462 = vunpack.c.l.s4 1966171168
  %v3463 = vunpack.c.0.s8 %v3462
  %v3464 = vlaneseq
  %v3465 = vshrl.u32 %v3464, 7
  %v3466 = vsub.s32 %v3463, %v3465
  %v3467 = vrot.slane %v3451, %v3466
  %v3469 = vunpack.c.l.s4 1966171168
  %v3470 = vunpack.c.0.s8 %v3469
  %v3471 = vlaneseq
  %v3472 = vshrl.u32 %v3471, 7
  %v3473 = vsub.s32 %v3470, %v3472
  %v3474 = vrot.slane %v3452, %v3473
  %v3476 = vunpack.c.l.s4 1966171168
  %v3477 = vunpack.c.0.s8 %v3476
  %v3478 = vlaneseq
  %v3479 = vshrl.u32 %v3478, 7
  %v3480 = vsub.s32 %v3477, %v3479
  %v3481 = vrot.slane %v3453, %v3480
  %v3482 = vcombine.low %v3460, %v3467
  %v3483 = vcombine.low %v3474, %v3481
  %v3485 = vunpack.c.l.s4 1966171168
  %v3486 = vunpack.c.0.s8 %v3485
  %v3487 = vlaneseq
  %v3488 = vshrl.u32 %v3487, 7
  %v3489 = vsub.s32 %v3486, %v3488
  %v3490 = vrot.slane %v3482, %v3489
  %v3492 = vunpack.c.l.s4 1966171168
  %v3493 = vunpack.c.0.s8 %v3492
  %v3494 = vlaneseq
  %v3495 = vshrl.u32 %v3494, 7
  %v3496 = vsub.s32 %v3493, %v3495
  %v3497 = vrot.slane %v3483, %v3496
  %v3498 = vcombine.low %v3490, %v3497
  %v3500 = vmul.f32 %v3441, %v3498
  %v3501 = vmul.f32 %v3334, %v3099
  %v3502 = vadd.f32 %v3500, %v3501
  %v3503 = vpack.c.bf16 %v3502, %v3502
  %v3504 = vld [vmem:[%s5] sm:$0xff]
  %v3505 = vld [vmem:[%s5 + $0x8] sm:$0xff]
  %v3506 = vld [vmem:[%s5 + $0x10] sm:$0xff]
  %v3507 = vld [vmem:[%s5 + $0x18] sm:$0xff]
  %v3508 = vld [vmem:[%s5 + $0x20] sm:$0xff]
  %v3509 = vld [vmem:[%s5 + $0x28] sm:$0xff]
  %v3510 = vld [vmem:[%s5 + $0x30] sm:$0xff]
  %v3511 = vld [vmem:[%s5 + $0x38] sm:$0xff]
  %v3512 = vld [vmem:[%s6] sm:$0x3]
  %v3514 = vlaneseq
  %v3515 = vshrl.u32 %v3514, 7
  %v3516 = vsub.s32 0, %v3515
  %v3517 = vrot.slane %v3512, %v3516
  %v3518 = vlaneseq
  %v3519 = vshrl.u32 %v3518, 7
  %v3520 = vsub.s32 1, %v3519
  %v3521 = vrot.slane %v3512, %v3520
  %v3532 = vunpack.c.l.b16 %v3504
  %v3533 = vunpack.c.h.b16 %v3504
  %v3534 = vunpack.c.l.b16 %v3505
  %v3535 = vunpack.c.h.b16 %v3505
  %v3536 = vunpack.c.l.b16 %v3506
  %v3537 = vunpack.c.h.b16 %v3506
  %v3538 = vunpack.c.l.b16 %v3507
  %v3539 = vunpack.c.h.b16 %v3507
  %v3540 = vunpack.c.l.b16 %v3508
  %v3541 = vunpack.c.h.b16 %v3508
  %v3542 = vunpack.c.l.b16 %v3509
  %v3543 = vunpack.c.h.b16 %v3509
  %v3544 = vunpack.c.l.b16 %v3510
  %v3545 = vunpack.c.h.b16 %v3510
  %v3546 = vunpack.c.l.b16 %v3511
  %v3547 = vunpack.c.h.b16 %v3511
  %v3548 = vpack.c.b16 %v3534, %v3532
  %v3549 = vpack.c.b16 %v3535, %v3533
  %v3550 = vpack.c.b16 %v3538, %v3536
  %v3551 = vpack.c.b16 %v3539, %v3537
  %v3552 = vpack.c.b16 %v3542, %v3540
  %v3553 = vpack.c.b16 %v3543, %v3541
  %v3554 = vpack.c.b16 %v3546, %v3544
  %v3555 = vpack.c.b16 %v3547, %v3545
  %v3565 = vsel %vm119, %v3503, 0
  %3567 = vmatprep.subr.bf16.mxu0 %v3549
  %3568 = vmatpush1.bf16.msra.mxu0 %v3548
  %3569 = vmatprep.subr.bf16.mxu0 %v3551
  %3570 = vmatpush1.bf16.msra.mxu0 %v3550
  %3571 = vmatprep.subr.bf16.mxu0 %v3553
  %3572 = vmatpush1.bf16.msra.mxu0 %v3552
  %3573 = vmatprep.subr.bf16.mxu0 %v3555
  %3574 = vmatpush1.bf16.msra.mxu0 %v3554
  %3575 = vmatprep.subr.bf16.mxu0 0
  %3576 = vmatpush1.bf16.msra.mxu0 0
  %3577 = vmatprep.subr.bf16.mxu0 0
  %3578 = vmatpush1.bf16.msra.mxu0 0
  %3579 = vmatprep.subr.bf16.mxu0 0
  %3580 = vmatpush1.bf16.msra.mxu0 0
  %3581 = vmatprep.subr.bf16.mxu0 0
  %3582 = vmatpush1.bf16.msra.mxu0 0
  %3583 = vmatprep.subr.bf16.mxu0 0
  %3584 = vmatpush1.bf16.msra.mxu0 0
  %3585 = vmatprep.subr.bf16.mxu0 0
  %3586 = vmatpush1.bf16.msra.mxu0 0
  %3587 = vmatprep.subr.bf16.mxu0 0
  %3588 = vmatpush1.bf16.msra.mxu0 0
  %3589 = vmatprep.subr.bf16.mxu0 0
  %3590 = vmatpush1.bf16.msra.mxu0 0
  %3591 = vmatprep.subr.bf16.mxu0 0
  %3592 = vmatpush1.bf16.msra.mxu0 0
  %3593 = vmatprep.subr.bf16.mxu0 0
  %3594 = vmatpush1.bf16.msra.mxu0 0
  %3595 = vmatprep.subr.bf16.mxu0 0
  %3596 = vmatpush1.bf16.msra.mxu0 0
  %3597 = vmatprep.subr.bf16.mxu0 0
  %3598 = vmatpush1.bf16.msra.mxu0 0
  %3599 = vmatprep.mubr.bf16.mxu0 0
  %3600 = vmatmul.mubr.bf16.gmra.mrb[0].mxu0 %v3565
  %v3601 = vpop.f32.mrb[0].mxu0
  %v3602 = vadd.f32 %v3517, %v3601
  %v3603 = vpop.f32.mrb[0].mxu0
  %v3604 = vadd.f32 %v3521, %v3603
  %v3605 = vpop.f32.mrb[0].mxu0
  %v3606 = vpop.f32.mrb[0].mxu0
  %3607 = vdwg.mxu0
  %vm3608 = vcmp.gt.f32.partialorder %v3602, 0.0
  %vm3609 = vcmp.gt.f32.partialorder %v3604, 0.0
  %v3610 = vmul.f32 %v3602, 0.01
  %v3611 = vmul.f32 %v3604, 0.01
  %v3612 = vsel %vm3608, %v3602, %v3610
  %v3613 = vsel %vm3609, %v3604, %v3611
  %v3614 = vpack.c.bf16 %v3612, %v3612
  %v3615 = vpack.c.bf16 %v3613, %v3613
  %v3616 = vld [vmem:[%s7] sm:$0xf]
  %v3617 = vld [vmem:[%s7 + $0x4] sm:$0xf]
  %v3618 = vld [vmem:[%s7 + $0x8] sm:$0xf]
  %v3619 = vld [vmem:[%s7 + $0xc] sm:$0xf]
  %v3620 = vld [vmem:[%s7 + $0x10] sm:$0xf]
  %v3621 = vld [vmem:[%s7 + $0x14] sm:$0xf]
  %v3622 = vld [vmem:[%s7 + $0x18] sm:$0xf]
  %v3623 = vld [vmem:[%s7 + $0x1c] sm:$0xf]
  %v3624 = vld [vmem:[%s7 + $0x20] sm:$0xf]
  %v3625 = vld [vmem:[%s7 + $0x24] sm:$0xf]
  %v3626 = vld [vmem:[%s7 + $0x28] sm:$0xf]
  %v3627 = vld [vmem:[%s7 + $0x2c] sm:$0xf]
  %v3628 = vld [vmem:[%s7 + $0x30] sm:$0xf]
  %v3629 = vld [vmem:[%s7 + $0x34] sm:$0xf]
  %v3630 = vld [vmem:[%s7 + $0x38] sm:$0xf]
  %v3631 = vld [vmem:[%s7 + $0x3c] sm:$0xf]
  %v3632 = vld [vmem:[%s7 + $0x40] sm:$0xf]
  %v3633 = vld [vmem:[%s7 + $0x44] sm:$0xf]
  %v3634 = vld [vmem:[%s7 + $0x48] sm:$0xf]
  %v3635 = vld [vmem:[%s7 + $0x4c] sm:$0xf]
  %v3636 = vld [vmem:[%s7 + $0x50] sm:$0xf]
  %v3637 = vld [vmem:[%s7 + $0x54] sm:$0xf]
  %v3638 = vld [vmem:[%s7 + $0x58] sm:$0xf]
  %v3639 = vld [vmem:[%s7 + $0x5c] sm:$0xf]
  %v3640 = vld [vmem:[%s7 + $0x60] sm:$0xf]
  %v3641 = vld [vmem:[%s7 + $0x64] sm:$0xf]
  %v3642 = vld [vmem:[%s7 + $0x68] sm:$0xf]
  %v3643 = vld [vmem:[%s7 + $0x6c] sm:$0xf]
  %v3644 = vld [vmem:[%s7 + $0x70] sm:$0xf]
  %v3645 = vld [vmem:[%s7 + $0x74] sm:$0xf]
  %v3646 = vld [vmem:[%s7 + $0x78] sm:$0xf]
  %v3647 = vld [vmem:[%s7 + $0x7c] sm:$0xf]
  %v3648 = vld [vmem:[%s8] sm:$0x1]
  %v3650 = vlaneseq
  %v3651 = vshrl.u32 %v3650, 7
  %v3652 = vsub.s32 0, %v3651
  %v3653 = vrot.slane %v3648, %v3652
  %v3687 = vunpack.c.l.b16 %v3616
  %v3688 = vunpack.c.l.b16 %v3617
  %v3689 = vunpack.c.l.b16 %v3618
  %v3690 = vunpack.c.l.b16 %v3619
  %v3691 = vunpack.c.l.b16 %v3620
  %v3692 = vunpack.c.l.b16 %v3621
  %v3693 = vunpack.c.l.b16 %v3622
  %v3694 = vunpack.c.l.b16 %v3623
  %v3695 = vunpack.c.l.b16 %v3624
  %v3696 = vunpack.c.l.b16 %v3625
  %v3697 = vunpack.c.l.b16 %v3626
  %v3698 = vunpack.c.l.b16 %v3627
  %v3699 = vunpack.c.l.b16 %v3628
  %v3700 = vunpack.c.l.b16 %v3629
  %v3701 = vunpack.c.l.b16 %v3630
  %v3702 = vunpack.c.l.b16 %v3631
  %v3703 = vunpack.c.l.b16 %v3632
  %v3704 = vunpack.c.l.b16 %v3633
  %v3705 = vunpack.c.l.b16 %v3634
  %v3706 = vunpack.c.l.b16 %v3635
  %v3707 = vunpack.c.l.b16 %v3636
  %v3708 = vunpack.c.l.b16 %v3637
  %v3709 = vunpack.c.l.b16 %v3638
  %v3710 = vunpack.c.l.b16 %v3639
  %v3711 = vunpack.c.l.b16 %v3640
  %v3712 = vunpack.c.l.b16 %v3641
  %v3713 = vunpack.c.l.b16 %v3642
  %v3714 = vunpack.c.l.b16 %v3643
  %v3715 = vunpack.c.l.b16 %v3644
  %v3716 = vunpack.c.l.b16 %v3645
  %v3717 = vunpack.c.l.b16 %v3646
  %v3718 = vunpack.c.l.b16 %v3647
  %v3719 = vpack.c.b16 %v3688, %v3687
  %v3720 = vpack.c.b16 %v3690, %v3689
  %v3721 = vpack.c.b16 %v3692, %v3691
  %v3722 = vpack.c.b16 %v3694, %v3693
  %v3723 = vpack.c.b16 %v3696, %v3695
  %v3724 = vpack.c.b16 %v3698, %v3697
  %v3725 = vpack.c.b16 %v3700, %v3699
  %v3726 = vpack.c.b16 %v3702, %v3701
  %v3727 = vpack.c.b16 %v3704, %v3703
  %v3728 = vpack.c.b16 %v3706, %v3705
  %v3729 = vpack.c.b16 %v3708, %v3707
  %v3730 = vpack.c.b16 %v3710, %v3709
  %v3731 = vpack.c.b16 %v3712, %v3711
  %v3732 = vpack.c.b16 %v3714, %v3713
  %v3733 = vpack.c.b16 %v3716, %v3715
  %v3734 = vpack.c.b16 %v3718, %v3717
  %3751 = vmatprep.subr.bf16.mxu0 0
  %3752 = vmatpush1.bf16.msra.mxu0 %v3719
  %3753 = vmatprep.subr.bf16.mxu0 0
  %3754 = vmatpush1.bf16.msra.mxu0 %v3720
  %3755 = vmatprep.subr.bf16.mxu0 0
  %3756 = vmatpush1.bf16.msra.mxu0 %v3721
  %3757 = vmatprep.subr.bf16.mxu0 0
  %3758 = vmatpush1.bf16.msra.mxu0 %v3722
  %3759 = vmatprep.subr.bf16.mxu0 0
  %3760 = vmatpush1.bf16.msra.mxu0 %v3723
  %3761 = vmatprep.subr.bf16.mxu0 0
  %3762 = vmatpush1.bf16.msra.mxu0 %v3724
  %3763 = vmatprep.subr.bf16.mxu0 0
  %3764 = vmatpush1.bf16.msra.mxu0 %v3725
  %3765 = vmatprep.subr.bf16.mxu0 0
  %3766 = vmatpush1.bf16.msra.mxu0 %v3726
  %3767 = vmatprep.subr.bf16.mxu0 0
  %3768 = vmatpush1.bf16.msra.mxu0 %v3727
  %3769 = vmatprep.subr.bf16.mxu0 0
  %3770 = vmatpush1.bf16.msra.mxu0 %v3728
  %3771 = vmatprep.subr.bf16.mxu0 0
  %3772 = vmatpush1.bf16.msra.mxu0 %v3729
  %3773 = vmatprep.subr.bf16.mxu0 0
  %3774 = vmatpush1.bf16.msra.mxu0 %v3730
  %3775 = vmatprep.subr.bf16.mxu0 0
  %3776 = vmatpush1.bf16.msra.mxu0 %v3731
  %3777 = vmatprep.subr.bf16.mxu0 0
  %3778 = vmatpush1.bf16.msra.mxu0 %v3732
  %3779 = vmatprep.subr.bf16.mxu0 0
  %3780 = vmatpush1.bf16.msra.mxu0 %v3733
  %3781 = vmatprep.subr.bf16.mxu0 0
  %3782 = vmatpush1.bf16.msra.mxu0 %v3734
  %3783 = vmatprep.mubr.bf16.mxu0 %v3615
  %3784 = vmatmul.mubr.bf16.gmra.mrb[0].mxu0 %v3614
  %v3785 = vpop.f32.mrb[0].mxu0
  %v3786 = vadd.f32 %v3653, %v3785
  %v3787 = vpop.f32.mrb[0].mxu0
  %v3788 = vpop.f32.mrb[0].mxu0
  %v3789 = vpop.f32.mrb[0].mxu0
  %3790 = vdwg.mxu0
  %vm3791 = vcmp.gt.f32.partialorder %v3786, 0.0
  %v3792 = vmul.f32 %v3786, 0.01
  %v3793 = vsel %vm3791, %v3786, %v3792
  %v3794 = vpack.c.bf16 %v3793, %v3793
  %v3795 = vld [vmem:[%s9] sm:$0xf]
  %v3796 = vld [vmem:[%s9 + $0x4] sm:$0xf]
  %v3797 = vld [vmem:[%s9 + $0x8] sm:$0xf]
  %v3798 = vld [vmem:[%s9 + $0xc] sm:$0xf]
  %v3799 = vld [vmem:[%s9 + $0x10] sm:$0xf]
  %v3800 = vld [vmem:[%s9 + $0x14] sm:$0xf]
  %v3801 = vld [vmem:[%s9 + $0x18] sm:$0xf]
  %v3802 = vld [vmem:[%s9 + $0x1c] sm:$0xf]
  %v3803 = vld [vmem:[%s9 + $0x20] sm:$0xf]
  %v3804 = vld [vmem:[%s9 + $0x24] sm:$0xf]
  %v3805 = vld [vmem:[%s9 + $0x28] sm:$0xf]
  %v3806 = vld [vmem:[%s9 + $0x2c] sm:$0xf]
  %v3807 = vld [vmem:[%s9 + $0x30] sm:$0xf]
  %v3808 = vld [vmem:[%s9 + $0x34] sm:$0xf]
  %v3809 = vld [vmem:[%s9 + $0x38] sm:$0xf]
  %v3810 = vld [vmem:[%s9 + $0x3c] sm:$0xf]
  %v3811 = vld [vmem:[%s10] sm:$0x1]
  %v3813 = vlaneseq
  %v3814 = vshrl.u32 %v3813, 7
  %v3815 = vsub.s32 0, %v3814
  %v3816 = vrot.slane %v3811, %v3815
  %v3834 = vunpack.c.l.b16 %v3795
  %v3835 = vunpack.c.l.b16 %v3796
  %v3836 = vunpack.c.l.b16 %v3797
  %v3837 = vunpack.c.l.b16 %v3798
  %v3838 = vunpack.c.l.b16 %v3799
  %v3839 = vunpack.c.l.b16 %v3800
  %v3840 = vunpack.c.l.b16 %v3801
  %v3841 = vunpack.c.l.b16 %v3802
  %v3842 = vunpack.c.l.b16 %v3803
  %v3843 = vunpack.c.l.b16 %v3804
  %v3844 = vunpack.c.l.b16 %v3805
  %v3845 = vunpack.c.l.b16 %v3806
  %v3846 = vunpack.c.l.b16 %v3807
  %v3847 = vunpack.c.l.b16 %v3808
  %v3848 = vunpack.c.l.b16 %v3809
  %v3849 = vunpack.c.l.b16 %v3810
  %v3850 = vpack.c.b16 %v3835, %v3834
  %v3851 = vpack.c.b16 %v3837, %v3836
  %v3852 = vpack.c.b16 %v3839, %v3838
  %v3853 = vpack.c.b16 %v3841, %v3840
  %v3854 = vpack.c.b16 %v3843, %v3842
  %v3855 = vpack.c.b16 %v3845, %v3844
  %v3856 = vpack.c.b16 %v3847, %v3846
  %v3857 = vpack.c.b16 %v3849, %v3848
  %3866 = vmatprep.subr.bf16.mxu0 0
  %3867 = vmatpush1.bf16.msra.mxu0 %v3850
  %3868 = vmatprep.subr.bf16.mxu0 0
  %3869 = vmatpush1.bf16.msra.mxu0 %v3851
  %3870 = vmatprep.subr.bf16.mxu0 0
  %3871 = vmatpush1.bf16.msra.mxu0 %v3852
  %3872 = vmatprep.subr.bf16.mxu0 0
  %3873 = vmatpush1.bf16.msra.mxu0 %v3853
  %3874 = vmatprep.subr.bf16.mxu0 0
  %3875 = vmatpush1.bf16.msra.mxu0 %v3854
  %3876 = vmatprep.subr.bf16.mxu0 0
  %3877 = vmatpush1.bf16.msra.mxu0 %v3855
  %3878 = vmatprep.subr.bf16.mxu0 0
  %3879 = vmatpush1.bf16.msra.mxu0 %v3856
  %3880 = vmatprep.subr.bf16.mxu0 0
  %3881 = vmatpush1.bf16.msra.mxu0 %v3857
  %3882 = vmatprep.subr.bf16.mxu0 0
  %3883 = vmatpush1.bf16.msra.mxu0 0
  %3884 = vmatprep.subr.bf16.mxu0 0
  %3885 = vmatpush1.bf16.msra.mxu0 0
  %3886 = vmatprep.subr.bf16.mxu0 0
  %3887 = vmatpush1.bf16.msra.mxu0 0
  %3888 = vmatprep.subr.bf16.mxu0 0
  %3889 = vmatpush1.bf16.msra.mxu0 0
  %3890 = vmatprep.subr.bf16.mxu0 0
  %3891 = vmatpush1.bf16.msra.mxu0 0
  %3892 = vmatprep.subr.bf16.mxu0 0
  %3893 = vmatpush1.bf16.msra.mxu0 0
  %3894 = vmatprep.subr.bf16.mxu0 0
  %3895 = vmatpush1.bf16.msra.mxu0 0
  %3896 = vmatprep.subr.bf16.mxu0 0
  %3897 = vmatpush1.bf16.msra.mxu0 0
  %3898 = vmatprep.mubr.bf16.mxu0 0
  %3899 = vmatmul.mubr.bf16.gmra.mrb[0].mxu0 %v3794
  %v3900 = vpop.f32.mrb[0].mxu0
  %v3901 = vadd.f32 %v3816, %v3900
  %v3902 = vpop.f32.mrb[0].mxu0
  %v3903 = vpop.f32.mrb[0].mxu0
  %v3904 = vpop.f32.mrb[0].mxu0
  %3905 = vdwg.mxu0
  %vm3906 = vcmp.gt.f32.partialorder %v3901, 0.0
  %v3907 = vmul.f32 %v3901, 0.01
  %v3908 = vsel %vm3906, %v3901, %v3907
  %v3909 = vld [vmem:[%s11] sm:$0x1]
  %v3911 = vlaneseq
  %v3912 = vshrl.u32 %v3911, 7
  %v3913 = vsub.s32 0, %v3912
  %v3914 = vrot.slane %v3909, %v3913
  %v3916 = vmul.f32 %v3908, %v3914
  %v3917 = vsel %vm119, %v3916, 0.0
  %3918 = vadd.xlane.f32.xlu0 %v3917
  %v3919 = vpop.xlane.xlu0 %3918
  %v3920 = vld [vmem:[#allocation3] sm:$0x1]
  %v3922 = vlaneseq
  %v3923 = vshrl.u32 %v3922, 7
  %v3924 = vsub.s32 0, %v3923
  %v3925 = vrot.slane %v3920, %v3924
  %v3927 = vadd.f32 %v3919, %v3925
  %v3928 = vxor.u32 %v3927, 2147483648
  %v3929 = vmul.f32 %v3928, 1.442695
  %v3930 = vpow.pop %v3929
  %v3931 = vadd.f32 %v3930, 1.0
  %v3932 = vrcp.pop %v3931
  %v3933 = vmul.f32 1.0, %v3932
  %vm3934 = vcmask 7168
  %3935 = vst.msk [vmem:[%s13] sm:$0xff] %vm3934, %v3933
  // Predicated region
  $region54: #{discriminator_forward.1} parent=0 // pred_check
    _
  $region55: #{discriminator_forward.1} parent=0 // pred_check_branch
    %3937 = sbr.rel (0) target = $region57
  $region56: #{discriminator_forward.1} parent=0 // pred_region
    _
  $region57: #{discriminator_forward.1} parent=0 // pred_fallthru
    _
  // Predicated region
  $region58: #{discriminator_forward.1} parent=0 // pred_check
    _
  $region59: #{discriminator_forward.1} parent=0 // pred_check_branch
    %3939 = sbr.rel (0) target = $region61
  $region60: #{discriminator_forward.1} parent=0 // pred_region
    _
  $region61: #{discriminator_forward.1} parent=0 // pred_fallthru
    _

</llo_original>
